<compile_context>
chip_gen: v7x
topology: tpu7x:2x2x1
jax: 0.10.0
libtpu: 0.0.40
codegen_flags: <defaults>
</compile_context>

<pallas_src>
import numpy as np
import jax
import jax.numpy as jnp
from jax import lax
from jax.experimental import pallas as pl
from jax.experimental.pallas import tpu as pltpu

# ------------------------- model configuration (small) ----------------------
B = 2                      # batch
C_IN = 3                   # image channels
IMG = 16                   # image height / width
PATCH = 8                  # patch size  -> 2x2 = 4 patches
NP_SIDE = IMG // PATCH
NUM_PATCHES = NP_SIDE * NP_SIDE
SEQ = NUM_PATCHES + 1      # +1 CLS token
HIDDEN = 32                # config.hidden_size
NUM_HEADS = 2
HEAD_DIM = HIDDEN // NUM_HEADS
INTER = 64                 # MLP intermediate size
NUM_LAYERS = 2             # ViT encoder depth
NUM_CLASSES = 8
DEPTH = 2                  # number of early-exit heads (== depth in ViTSAE)
LN_EPS = 1e-12
PATCH_DIM = C_IN * PATCH * PATCH
LANES = 128


# ------------------------------ kernel helpers -------------------------------
def _layernorm(x, gamma, beta, eps=LN_EPS):
    mean = jnp.mean(x, axis=-1, keepdims=True)
    var = jnp.mean((x - mean) ** 2, axis=-1, keepdims=True)
    return (x - mean) * lax.rsqrt(var + eps) * gamma + beta


def _softmax_lastdim(x):
    m = jnp.max(x, axis=-1, keepdims=True)
    e = jnp.exp(x - m)
    return e * pl.reciprocal(jnp.sum(e, axis=-1, keepdims=True), approx=True)


# ------------------------- single fused forward kernel -----------------------
def _fused_vit_sae_kernel(thr_ref, patches_ref, addf_ref, mask_ref, wp_ref,
                          wqkv_ref, wo_ref, wfc1_ref, wfc2_ref, lvec_ref,
                          exit_w_ref, hvec_ref, out_ref):
    tokens = patches_ref.shape[0]          # static: B * SEQ
    bsz = tokens // SEQ
    scale = 1.0 / (HEAD_DIM ** 0.5)

    # ---- patch embedding.  CLS rows of `patches` are zero; CLS token, patch
    #      bias and positional embeddings are pre-folded into addf. ----
    x = jnp.dot(patches_ref[...], wp_ref[...],
                preferred_element_type=jnp.float32) + addf_ref[...]      # (T, H)
    mask = mask_ref[...]                                                  # (T, T)

    # ---- transformer encoder (layers fully unrolled, whole slab at once) ----
    for l in range(NUM_LAYERS):
        vecs = lvec_ref[l]                                                # (8, 128)
        ln1g, ln1b = vecs[0:1, :HIDDEN], vecs[1:2, :HIDDEN]
        bqkv = vecs[2:3, :3 * HIDDEN]
        bo = vecs[3:4, :HIDDEN]
        ln2g, ln2b = vecs[4:5, :HIDDEN], vecs[5:6, :HIDDEN]
        b1 = vecs[6:7, :INTER]
        b2 = vecs[7:8, :HIDDEN]

        xn = _layernorm(x, ln1g, ln1b)
        qkv = jnp.dot(xn, wqkv_ref[l],
                      preferred_element_type=jnp.float32) + bqkv          # (T, 3H)

        # Per-head attention with block-diagonal batch mask.  The output
        # projection is folded per head (no lane concatenate).
        attn = jnp.zeros((tokens, HIDDEN), jnp.float32)
        for h in range(NUM_HEADS):                                        # NH = 2
            q = qkv[:, h * HEAD_DIM:(h + 1) * HEAD_DIM]
            k = qkv[:, HIDDEN + h * HEAD_DIM:HIDDEN + (h + 1) * HEAD_DIM]
            v = qkv[:, 2 * HIDDEN + h * HEAD_DIM:2 * HIDDEN + (h + 1) * HEAD_DIM]
            s = jnp.einsum("qd,kd->qk", q, k,
                           preferred_element_type=jnp.float32) * scale + mask
            p = _softmax_lastdim(s)
            ctx = jnp.dot(p, v, preferred_element_type=jnp.float32)       # (T, HD)
            attn = attn + jnp.dot(ctx, wo_ref[l * NUM_HEADS + h],
                                  preferred_element_type=jnp.float32)
        x1 = x + attn + bo

        x1n = _layernorm(x1, ln2g, ln2b)
        hmid = jnp.dot(x1n, wfc1_ref[l],
                       preferred_element_type=jnp.float32) + b1
        # TODO(synk): HF ViT uses exact erf-GELU; tanh approximation used here.
        hmid = jax.nn.gelu(hmid, approximate=True)
        x = x1 + jnp.dot(hmid, wfc2_ref[l],
                         preferred_element_type=jnp.float32) + b2

    # ---- final encoder LayerNorm on the CLS rows only ----
    hv = hvec_ref[...]                                                    # (8, 128)
    fg, fb = hv[0:1, :HIDDEN], hv[1:2, :HIDDEN]
    exit_logits = hv[2:3, :DEPTH]                                         # (1, DEPTH)
    cls = jnp.concatenate([x[b * SEQ:b * SEQ + 1, :] for b in range(bsz)],
                          axis=0)                                         # (B, H)
    cls = _layernorm(cls, fg, fb)

    # ---- SAE early-exit head ----
    thr = thr_ref[0, 0]
    inv_thr = 1.0 / thr                                                   # reused 3x
    probs = _softmax_lastdim(exit_logits * inv_thr)                       # (1, DEPTH)

    # Single packed output tile:
    #   rows [0, DEPTH*B): lanes 0:C  = exit_out[i][b], lane C = max_conf[i][b]
    #   row  DEPTH*B     : lanes 0:DEPTH = exit_probs
    #   rows [DEPTH*B+1, DEPTH*B+1+B): lanes 0:C = weighted-sum final output
    out_ref[...] = jnp.zeros_like(out_ref)
    final = jnp.zeros((bsz, NUM_CLASSES), jnp.float32)
    for i in range(DEPTH):                                                # static
        bi = hv[3 + i:4 + i, :NUM_CLASSES]                                # (1, C)
        oi = jnp.dot(cls, exit_w_ref[i],
                     preferred_element_type=jnp.float32) + bi             # (B, C)
        conf = _softmax_lastdim(oi * inv_thr)
        mc = jnp.max(conf, axis=-1, keepdims=True)                        # (B, 1)
        final = final + probs[0:1, i:i + 1] * oi
        out_ref[i * bsz:(i + 1) * bsz, 0:NUM_CLASSES] = oi
        out_ref[i * bsz:(i + 1) * bsz, NUM_CLASSES:NUM_CLASSES + 1] = mc
    row = DEPTH * bsz
    out_ref[row:row + 1, 0:DEPTH] = probs
    out_ref[row + 1:row + 1 + bsz, 0:NUM_CLASSES] = final


# ------------------------------- parameters ----------------------------------
def init_params(seed=0):
    key = jax.random.PRNGKey(seed)
    keys = iter(jax.random.split(key, 64))

    def nrm(shape, scale=0.02):
        return scale * jax.random.normal(next(keys), shape, jnp.float32)

    params = {
        "patch_w": nrm((PATCH_DIM, HIDDEN)),
        "patch_b": jnp.zeros((1, HIDDEN), jnp.float32),
        "cls": nrm((1, 1, HIDDEN)),
        "pos": nrm((1, SEQ, HIDDEN)),
        "final_ln_g": jnp.ones((1, HIDDEN), jnp.float32),
        "final_ln_b": jnp.zeros((1, HIDDEN), jnp.float32),
        "exit_w": nrm((DEPTH, HIDDEN, NUM_CLASSES)),
        "exit_b": jnp.zeros((DEPTH, 1, NUM_CLASSES), jnp.float32),
        # nn.Parameter(torch.zeros(depth))
        "exit_logits": jnp.zeros((1, DEPTH), jnp.float32),
    }
    layers = []
    for _ in range(NUM_LAYERS):
        layers.append([
            jnp.ones((1, HIDDEN), jnp.float32),    # 0  ln1 gamma
            jnp.zeros((1, HIDDEN), jnp.float32),   # 1  ln1 beta
            nrm((HIDDEN, 3 * HIDDEN)),             # 2  W_qkv
            jnp.zeros((1, 3 * HIDDEN), jnp.float32),  # 3 b_qkv
            nrm((HIDDEN, HIDDEN)),                 # 4  W_out
            jnp.zeros((1, HIDDEN), jnp.float32),   # 5  b_out
            jnp.ones((1, HIDDEN), jnp.float32),    # 6  ln2 gamma
            jnp.zeros((1, HIDDEN), jnp.float32),   # 7  ln2 beta
            nrm((HIDDEN, INTER)),                  # 8  W_fc1
            jnp.zeros((1, INTER), jnp.float32),    # 9  b_fc1
            nrm((INTER, HIDDEN)),                  # 10 W_fc2
            jnp.zeros((1, HIDDEN), jnp.float32),   # 11 b_fc2
        ])
    params["layers"] = layers
    return params


def pack_params(params):
    """One-time host-side repack into kernel-friendly, lane-padded tensors."""
    def row128(v):
        v = v.reshape(1, -1)
        return jnp.pad(v, ((0, 0), (0, LANES - v.shape[1])))

    layers = params["layers"]
    wqkv = jnp.stack([lp[2] for lp in layers])                       # (L, H, 3H)
    wo_heads = jnp.stack(
        [lp[4].reshape(NUM_HEADS, HEAD_DIM, HIDDEN) for lp in layers]
    ).reshape(NUM_LAYERS * NUM_HEADS, HEAD_DIM, HIDDEN)              # (L*NH, HD, H)
    wfc1 = jnp.stack([lp[8] for lp in layers])                       # (L, H, INTER)
    wfc2 = jnp.stack([lp[10] for lp in layers])                      # (L, INTER, H)
    layer_vecs = jnp.stack([
        jnp.concatenate([row128(lp[0]), row128(lp[1]), row128(lp[3]),
                         row128(lp[5]), row128(lp[6]), row128(lp[7]),
                         row128(lp[9]), row128(lp[11])], axis=0)
        for lp in layers])                                           # (L, 8, 128)

    head_rows = [row128(params["final_ln_g"]), row128(params["final_ln_b"]),
                 row128(params["exit_logits"])]
    head_rows += [row128(params["exit_b"][i]) for i in range(DEPTH)]
    pad = max(8, 3 + DEPTH) - len(head_rows)
    if pad > 0:
        head_rows.append(jnp.zeros((pad, LANES), jnp.float32))
    head_vecs = jnp.concatenate(head_rows, axis=0)                   # (>=8, 128)

    # Fold CLS token + positional embedding + patch bias into one add tensor.
    cls_pos = params["cls"][0] + params["pos"][0, 0:1]               # (1, H)
    patch_pos = params["patch_b"] + params["pos"][0, 1:]             # (NP, H)
    add_one = jnp.concatenate([cls_pos, patch_pos], axis=0)          # (SEQ, H)

    return {"patch_w": params["patch_w"], "wqkv": wqkv, "wo_heads": wo_heads,
            "wfc1": wfc1, "wfc2": wfc2, "layer_vecs": layer_vecs,
            "exit_w": params["exit_w"], "head_vecs": head_vecs,
            "add_one": add_one}


# ------------------------------ forward pass ----------------------------------
def _fused_forward(packed, x, thr):
    bsz = x.shape[0]
    tokens = bsz * SEQ

    # Patch unfold (tiny reshape/transpose of the 3 KiB image, done by XLA
    # inside the same jit; CLS positions get zero rows so the kernel needs no
    # in-kernel concat/scatter).
    # TODO(synk): the unfold itself has no clean single-invocation BlockSpec
    # expression; it stays as one small XLA op feeding the fused kernel.
    p = x.reshape(bsz, C_IN, NP_SIDE, PATCH, NP_SIDE, PATCH)
    p = p.transpose(0, 2, 4, 1, 3, 5).reshape(bsz, NUM_PATCHES, PATCH_DIM)
    patches = jnp.concatenate(
        [jnp.zeros((bsz, 1, PATCH_DIM), jnp.float32), p],
        axis=1).reshape(tokens, PATCH_DIM)                           # (T, 192)

    # Block-diagonal additive attention mask (constant-folded by XLA).
    tok_batch = jnp.arange(tokens, dtype=jnp.int32) // SEQ
    attn_mask = jnp.where(tok_batch[:, None] == tok_batch[None, :],
                          0.0, -1e30).astype(jnp.float32)            # (T, T)

    add_full = jnp.tile(packed["add_one"], (bsz, 1))                 # (T, H)

    out_rows = ((DEPTH * bsz + 1 + bsz + 7) // 8) * 8
    thr_arr = jnp.asarray(thr, jnp.float32).reshape(1, 1)

    vmem = pl.BlockSpec(memory_space=pltpu.MemorySpace.VMEM)
    smem = pl.BlockSpec(memory_space=pltpu.MemorySpace.SMEM)
    return pl.pallas_call(
        _fused_vit_sae_kernel,
        out_shape=jax.ShapeDtypeStruct((out_rows, LANES), jnp.float32),
        in_specs=[smem] + [vmem] * 11,
        out_specs=vmem,
    )(thr_arr, patches, add_full, attn_mask, packed["patch_w"],
      packed["wqkv"], packed["wo_heads"], packed["wfc1"], packed["wfc2"],
      packed["layer_vecs"], packed["exit_w"], packed["head_vecs"])


_device_forward = jax.jit(_fused_forward)


def vit_sae_forward(packed_params, x, confidence_threshold=0.5):
    """Mirrors ViTSAE.forward.

    Note: the reference loop `for i, exit_layer in enumerate(self.depth[:self.early_exits])`
    is a type bug in the original code; the intended iteration over the `depth`
    early-exit heads is implemented.  The redundant second vit(x) call is folded
    into a single evaluation (identical result).  The boolean-masked early-exit
    return is inherently dynamic-shape, so it is resolved from a SINGLE packed
    device->host transfer of the kernel output.
    """
    bsz = x.shape[0]
    packed = jax.block_until_ready(
        _device_forward(packed_params, x, confidence_threshold))
    packed = np.asarray(packed)                       # one small transfer
    exit_out = packed[:DEPTH * bsz, :NUM_CLASSES].reshape(DEPTH, bsz, NUM_CLASSES)
    max_conf = packed[:DEPTH * bsz, NUM_CLASSES].reshape(DEPTH, bsz)
    probs = packed[DEPTH * bsz, :DEPTH]
    final = packed[DEPTH * bsz + 1:DEPTH * bsz + 1 + bsz, :NUM_CLASSES]
    for i in range(DEPTH):
        m = max_conf[i] > confidence_threshold
        if m.any():
            # boolean-masked early-exit output (dynamic shape, host-resolved)
            return exit_out[i][m], probs[i]
    return final, probs


# ---------------------------------- main --------------------------------------
if __name__ == "__main__":
    params = init_params(0)
    packed_params = pack_params(params)
    x = jax.random.normal(jax.random.PRNGKey(0), (B, C_IN, IMG, IMG),
                          jnp.float32)
    out, probs = vit_sae_forward(packed_params, x, confidence_threshold=0.5)
    print("KERNEL_OK")
</pallas_src>

<mosaic_0001>
module attributes {stable_mosaic.version = 11 : i64} {
  func.func @_fused_vit_sae_kernel(%arg0: memref<1x1xf32, #tpu.memory_space<smem>>, %arg1: memref<10x192xf32, #tpu.memory_space<vmem>>, %arg2: memref<10x32xf32, #tpu.memory_space<vmem>>, %arg3: memref<10x10xf32, #tpu.memory_space<vmem>>, %arg4: memref<192x32xf32, #tpu.memory_space<vmem>>, %arg5: memref<2x32x96xf32, #tpu.memory_space<vmem>>, %arg6: memref<4x16x32xf32, #tpu.memory_space<vmem>>, %arg7: memref<2x32x64xf32, #tpu.memory_space<vmem>>, %arg8: memref<2x64x32xf32, #tpu.memory_space<vmem>>, %arg9: memref<2x8x128xf32, #tpu.memory_space<vmem>>, %arg10: memref<2x32x8xf32, #tpu.memory_space<vmem>>, %arg11: memref<8x128xf32, #tpu.memory_space<vmem>>, %arg12: memref<8x128xf32, #tpu.memory_space<vmem>>) attributes {dimension_semantics = [], scalar_prefetch = 0 : i64, scratch_operands = 0 : i64, tpu.core_type = #tpu.core_type<tc>} {
    %c0 = arith.constant 0 : index
    %c0_0 = arith.constant 0 : index
    %0 = vector.load %arg1[%c0, %c0_0] : memref<10x192xf32, #tpu.memory_space<vmem>>, vector<10x192xf32>
    %c0_1 = arith.constant 0 : index
    %c0_2 = arith.constant 0 : index
    %1 = vector.load %arg4[%c0_1, %c0_2] : memref<192x32xf32, #tpu.memory_space<vmem>>, vector<192x32xf32>
    %cst = arith.constant dense<0.000000e+00> : vector<10x32xf32>
    %2 = tpu.matmul %0, %1, %cst {dimension_numbers = #tpu.dot_dimension_numbers<[1], [0], [0], [1], [0, 0, 1, 1], [], []>} : vector<10x192xf32>, vector<192x32xf32>, vector<10x32xf32> -> vector<10x32xf32>
    %c0_3 = arith.constant 0 : index
    %c0_4 = arith.constant 0 : index
    %3 = vector.load %arg2[%c0_3, %c0_4] : memref<10x32xf32, #tpu.memory_space<vmem>>, vector<10x32xf32>
    %4 = arith.addf %2, %3 : vector<10x32xf32>
    %c0_5 = arith.constant 0 : index
    %c0_6 = arith.constant 0 : index
    %5 = vector.load %arg3[%c0_5, %c0_6] : memref<10x10xf32, #tpu.memory_space<vmem>>, vector<10x10xf32>
    %c0_7 = arith.constant 0 : index
    %c0_8 = arith.constant 0 : index
    %c0_9 = arith.constant 0 : index
    %6 = vector.load %arg9[%c0_7, %c0_8, %c0_9] : memref<2x8x128xf32, #tpu.memory_space<vmem>>, vector<1x8x128xf32>
    %7 = vector.shape_cast %6 : vector<1x8x128xf32> to vector<8x128xf32>
    %8 = vector.extract_strided_slice %7 {offsets = [0, 0], sizes = [1, 32], strides = [1, 1]} : vector<8x128xf32> to vector<1x32xf32>
    %9 = vector.extract_strided_slice %7 {offsets = [1, 0], sizes = [1, 32], strides = [1, 1]} : vector<8x128xf32> to vector<1x32xf32>
    %10 = vector.extract_strided_slice %7 {offsets = [2, 0], sizes = [1, 96], strides = [1, 1]} : vector<8x128xf32> to vector<1x96xf32>
    %11 = vector.extract_strided_slice %7 {offsets = [3, 0], sizes = [1, 32], strides = [1, 1]} : vector<8x128xf32> to vector<1x32xf32>
    %12 = vector.extract_strided_slice %7 {offsets = [4, 0], sizes = [1, 32], strides = [1, 1]} : vector<8x128xf32> to vector<1x32xf32>
    %13 = vector.extract_strided_slice %7 {offsets = [5, 0], sizes = [1, 32], strides = [1, 1]} : vector<8x128xf32> to vector<1x32xf32>
    %14 = vector.extract_strided_slice %7 {offsets = [6, 0], sizes = [1, 64], strides = [1, 1]} : vector<8x128xf32> to vector<1x64xf32>
    %15 = vector.extract_strided_slice %7 {offsets = [7, 0], sizes = [1, 32], strides = [1, 1]} : vector<8x128xf32> to vector<1x32xf32>
    %cst_10 = arith.constant dense<0.000000e+00> : vector<10xf32>
    %16 = vector.multi_reduction <add>, %4, %cst_10 [1] : vector<10x32xf32> to vector<10xf32>
    %17 = vector.shape_cast %16 : vector<10xf32> to vector<10x1xf32>
    %cst_11 = arith.constant 3.200000e+01 : f32
    %18 = vector.broadcast %cst_11 : f32 to vector<10x1xf32>
    %19 = arith.divf %17, %18 : vector<10x1xf32>
    %20 = vector.broadcast %19 : vector<10x1xf32> to vector<10x32xf32>
    %21 = arith.subf %4, %20 : vector<10x32xf32>
    %22 = arith.mulf %21, %21 : vector<10x32xf32>
    %cst_12 = arith.constant dense<0.000000e+00> : vector<10xf32>
    %23 = vector.multi_reduction <add>, %22, %cst_12 [1] : vector<10x32xf32> to vector<10xf32>
    %24 = vector.shape_cast %23 : vector<10xf32> to vector<10x1xf32>
    %cst_13 = arith.constant 3.200000e+01 : f32
    %25 = vector.broadcast %cst_13 : f32 to vector<10x1xf32>
    %26 = arith.divf %24, %25 : vector<10x1xf32>
    %27 = vector.broadcast %19 : vector<10x1xf32> to vector<10x32xf32>
    %28 = arith.subf %4, %27 : vector<10x32xf32>
    %cst_14 = arith.constant 9.99999996E-13 : f32
    %29 = vector.broadcast %cst_14 : f32 to vector<10x1xf32>
    %30 = arith.addf %26, %29 : vector<10x1xf32>
    %31 = math.rsqrt %30 : vector<10x1xf32>
    %32 = vector.broadcast %31 : vector<10x1xf32> to vector<10x32xf32>
    %33 = arith.mulf %28, %32 : vector<10x32xf32>
    %34 = vector.broadcast %8 : vector<1x32xf32> to vector<10x32xf32>
    %35 = arith.mulf %33, %34 : vector<10x32xf32>
    %36 = vector.broadcast %9 : vector<1x32xf32> to vector<10x32xf32>
    %37 = arith.addf %35, %36 : vector<10x32xf32>
    %c0_15 = arith.constant 0 : index
    %c0_16 = arith.constant 0 : index
    %c0_17 = arith.constant 0 : index
    %38 = vector.load %arg5[%c0_15, %c0_16, %c0_17] : memref<2x32x96xf32, #tpu.memory_space<vmem>>, vector<1x32x96xf32>
    %39 = vector.shape_cast %38 : vector<1x32x96xf32> to vector<32x96xf32>
    %cst_18 = arith.constant dense<0.000000e+00> : vector<10x96xf32>
    %40 = tpu.matmul %37, %39, %cst_18 {dimension_numbers = #tpu.dot_dimension_numbers<[1], [0], [0], [1], [0, 0, 1, 1], [], []>} : vector<10x32xf32>, vector<32x96xf32>, vector<10x96xf32> -> vector<10x96xf32>
    %41 = vector.broadcast %10 : vector<1x96xf32> to vector<10x96xf32>
    %42 = arith.addf %40, %41 : vector<10x96xf32>
    %cst_19 = arith.constant 0.000000e+00 : f32
    %43 = vector.broadcast %cst_19 : f32 to vector<10x32xf32>
    %44 = vector.extract_strided_slice %42 {offsets = [0, 0], sizes = [10, 16], strides = [1, 1]} : vector<10x96xf32> to vector<10x16xf32>
    %45 = vector.extract_strided_slice %42 {offsets = [0, 32], sizes = [10, 16], strides = [1, 1]} : vector<10x96xf32> to vector<10x16xf32>
    %46 = vector.extract_strided_slice %42 {offsets = [0, 64], sizes = [10, 16], strides = [1, 1]} : vector<10x96xf32> to vector<10x16xf32>
    "tpu.trace_start"() <{level = 10 : i32, message = "qd,kd->qk"}> : () -> ()
    %cst_20 = arith.constant dense<0.000000e+00> : vector<10x10xf32>
    %47 = tpu.matmul %44, %45, %cst_20 {dimension_numbers = #tpu.dot_dimension_numbers<[1], [1], [0], [0], [0, 0, 1, 0], [], []>} : vector<10x16xf32>, vector<10x16xf32>, vector<10x10xf32> -> vector<10x10xf32>
    "tpu.trace_stop"() : () -> ()
    %cst_21 = arith.constant 2.500000e-01 : f32
    %48 = vector.broadcast %cst_21 : f32 to vector<10x10xf32>
    %49 = arith.mulf %47, %48 : vector<10x10xf32>
    %50 = arith.addf %49, %5 : vector<10x10xf32>
    %cst_22 = arith.constant dense<0xFF800000> : vector<10xf32>
    %51 = vector.multi_reduction <maximumf>, %50, %cst_22 [1] : vector<10x10xf32> to vector<10xf32>
    %52 = vector.shape_cast %51 : vector<10xf32> to vector<10x1xf32>
    %53 = vector.broadcast %52 : vector<10x1xf32> to vector<10x10xf32>
    %54 = arith.subf %50, %53 : vector<10x10xf32>
    %55 = math.exp %54 : vector<10x10xf32>
    %cst_23 = arith.constant dense<0.000000e+00> : vector<10xf32>
    %56 = vector.multi_reduction <add>, %55, %cst_23 [1] : vector<10x10xf32> to vector<10xf32>
    %57 = vector.shape_cast %56 : vector<10xf32> to vector<10x1xf32>
    %58 = tpu.reciprocal %57 {approx = true} : vector<10x1xf32> -> vector<10x1xf32>
    %59 = vector.broadcast %58 : vector<10x1xf32> to vector<10x10xf32>
    %60 = arith.mulf %55, %59 : vector<10x10xf32>
    %cst_24 = arith.constant dense<0.000000e+00> : vector<10x16xf32>
    %61 = tpu.matmul %60, %46, %cst_24 {dimension_numbers = #tpu.dot_dimension_numbers<[1], [0], [0], [1], [0, 0, 1, 1], [], []>} : vector<10x10xf32>, vector<10x16xf32>, vector<10x16xf32> -> vector<10x16xf32>
    %c0_25 = arith.constant 0 : index
    %c0_26 = arith.constant 0 : index
    %c0_27 = arith.constant 0 : index
    %62 = vector.load %arg6[%c0_25, %c0_26, %c0_27] : memref<4x16x32xf32, #tpu.memory_space<vmem>>, vector<1x16x32xf32>
    %63 = vector.shape_cast %62 : vector<1x16x32xf32> to vector<16x32xf32>
    %cst_28 = arith.constant dense<0.000000e+00> : vector<10x32xf32>
    %64 = tpu.matmul %61, %63, %cst_28 {dimension_numbers = #tpu.dot_dimension_numbers<[1], [0], [0], [1], [0, 0, 1, 1], [], []>} : vector<10x16xf32>, vector<16x32xf32>, vector<10x32xf32> -> vector<10x32xf32>
    %65 = arith.addf %43, %64 : vector<10x32xf32>
    %66 = vector.extract_strided_slice %42 {offsets = [0, 16], sizes = [10, 16], strides = [1, 1]} : vector<10x96xf32> to vector<10x16xf32>
    %67 = vector.extract_strided_slice %42 {offsets = [0, 48], sizes = [10, 16], strides = [1, 1]} : vector<10x96xf32> to vector<10x16xf32>
    %68 = vector.extract_strided_slice %42 {offsets = [0, 80], sizes = [10, 16], strides = [1, 1]} : vector<10x96xf32> to vector<10x16xf32>
    "tpu.trace_start"() <{level = 10 : i32, message = "qd,kd->qk"}> : () -> ()
    %cst_29 = arith.constant dense<0.000000e+00> : vector<10x10xf32>
    %69 = tpu.matmul %66, %67, %cst_29 {dimension_numbers = #tpu.dot_dimension_numbers<[1], [1], [0], [0], [0, 0, 1, 0], [], []>} : vector<10x16xf32>, vector<10x16xf32>, vector<10x10xf32> -> vector<10x10xf32>
    "tpu.trace_stop"() : () -> ()
    %cst_30 = arith.constant 2.500000e-01 : f32
    %70 = vector.broadcast %cst_30 : f32 to vector<10x10xf32>
    %71 = arith.mulf %69, %70 : vector<10x10xf32>
    %72 = arith.addf %71, %5 : vector<10x10xf32>
    %cst_31 = arith.constant dense<0xFF800000> : vector<10xf32>
    %73 = vector.multi_reduction <maximumf>, %72, %cst_31 [1] : vector<10x10xf32> to vector<10xf32>
    %74 = vector.shape_cast %73 : vector<10xf32> to vector<10x1xf32>
    %75 = vector.broadcast %74 : vector<10x1xf32> to vector<10x10xf32>
    %76 = arith.subf %72, %75 : vector<10x10xf32>
    %77 = math.exp %76 : vector<10x10xf32>
    %cst_32 = arith.constant dense<0.000000e+00> : vector<10xf32>
    %78 = vector.multi_reduction <add>, %77, %cst_32 [1] : vector<10x10xf32> to vector<10xf32>
    %79 = vector.shape_cast %78 : vector<10xf32> to vector<10x1xf32>
    %80 = tpu.reciprocal %79 {approx = true} : vector<10x1xf32> -> vector<10x1xf32>
    %81 = vector.broadcast %80 : vector<10x1xf32> to vector<10x10xf32>
    %82 = arith.mulf %77, %81 : vector<10x10xf32>
    %cst_33 = arith.constant dense<0.000000e+00> : vector<10x16xf32>
    %83 = tpu.matmul %82, %68, %cst_33 {dimension_numbers = #tpu.dot_dimension_numbers<[1], [0], [0], [1], [0, 0, 1, 1], [], []>} : vector<10x10xf32>, vector<10x16xf32>, vector<10x16xf32> -> vector<10x16xf32>
    %c1 = arith.constant 1 : index
    %c0_34 = arith.constant 0 : index
    %c0_35 = arith.constant 0 : index
    %84 = vector.load %arg6[%c1, %c0_34, %c0_35] : memref<4x16x32xf32, #tpu.memory_space<vmem>>, vector<1x16x32xf32>
    %85 = vector.shape_cast %84 : vector<1x16x32xf32> to vector<16x32xf32>
    %cst_36 = arith.constant dense<0.000000e+00> : vector<10x32xf32>
    %86 = tpu.matmul %83, %85, %cst_36 {dimension_numbers = #tpu.dot_dimension_numbers<[1], [0], [0], [1], [0, 0, 1, 1], [], []>} : vector<10x16xf32>, vector<16x32xf32>, vector<10x32xf32> -> vector<10x32xf32>
    %87 = arith.addf %65, %86 : vector<10x32xf32>
    %88 = arith.addf %4, %87 : vector<10x32xf32>
    %89 = vector.broadcast %11 : vector<1x32xf32> to vector<10x32xf32>
    %90 = arith.addf %88, %89 : vector<10x32xf32>
    %cst_37 = arith.constant dense<0.000000e+00> : vector<10xf32>
    %91 = vector.multi_reduction <add>, %90, %cst_37 [1] : vector<10x32xf32> to vector<10xf32>
    %92 = vector.shape_cast %91 : vector<10xf32> to vector<10x1xf32>
    %cst_38 = arith.constant 3.200000e+01 : f32
    %93 = vector.broadcast %cst_38 : f32 to vector<10x1xf32>
    %94 = arith.divf %92, %93 : vector<10x1xf32>
    %95 = vector.broadcast %94 : vector<10x1xf32> to vector<10x32xf32>
    %96 = arith.subf %90, %95 : vector<10x32xf32>
    %97 = arith.mulf %96, %96 : vector<10x32xf32>
    %cst_39 = arith.constant dense<0.000000e+00> : vector<10xf32>
    %98 = vector.multi_reduction <add>, %97, %cst_39 [1] : vector<10x32xf32> to vector<10xf32>
    %99 = vector.shape_cast %98 : vector<10xf32> to vector<10x1xf32>
    %cst_40 = arith.constant 3.200000e+01 : f32
    %100 = vector.broadcast %cst_40 : f32 to vector<10x1xf32>
    %101 = arith.divf %99, %100 : vector<10x1xf32>
    %102 = vector.broadcast %94 : vector<10x1xf32> to vector<10x32xf32>
    %103 = arith.subf %90, %102 : vector<10x32xf32>
    %cst_41 = arith.constant 9.99999996E-13 : f32
    %104 = vector.broadcast %cst_41 : f32 to vector<10x1xf32>
    %105 = arith.addf %101, %104 : vector<10x1xf32>
    %106 = math.rsqrt %105 : vector<10x1xf32>
    %107 = vector.broadcast %106 : vector<10x1xf32> to vector<10x32xf32>
    %108 = arith.mulf %103, %107 : vector<10x32xf32>
    %109 = vector.broadcast %12 : vector<1x32xf32> to vector<10x32xf32>
    %110 = arith.mulf %108, %109 : vector<10x32xf32>
    %111 = vector.broadcast %13 : vector<1x32xf32> to vector<10x32xf32>
    %112 = arith.addf %110, %111 : vector<10x32xf32>
    %c0_42 = arith.constant 0 : index
    %c0_43 = arith.constant 0 : index
    %c0_44 = arith.constant 0 : index
    %113 = vector.load %arg7[%c0_42, %c0_43, %c0_44] : memref<2x32x64xf32, #tpu.memory_space<vmem>>, vector<1x32x64xf32>
    %114 = vector.shape_cast %113 : vector<1x32x64xf32> to vector<32x64xf32>
    %cst_45 = arith.constant dense<0.000000e+00> : vector<10x64xf32>
    %115 = tpu.matmul %112, %114, %cst_45 {dimension_numbers = #tpu.dot_dimension_numbers<[1], [0], [0], [1], [0, 0, 1, 1], [], []>} : vector<10x32xf32>, vector<32x64xf32>, vector<10x64xf32> -> vector<10x64xf32>
    %116 = vector.broadcast %14 : vector<1x64xf32> to vector<10x64xf32>
    %117 = arith.addf %115, %116 : vector<10x64xf32>
    %118 = arith.mulf %117, %117 : vector<10x64xf32>
    %119 = arith.mulf %117, %118 : vector<10x64xf32>
    %cst_46 = arith.constant 4.471500e-02 : f32
    %120 = vector.broadcast %cst_46 : f32 to vector<10x64xf32>
    %121 = arith.mulf %120, %119 : vector<10x64xf32>
    %122 = arith.addf %117, %121 : vector<10x64xf32>
    %cst_47 = arith.constant 0.797884583 : f32
    %123 = vector.broadcast %cst_47 : f32 to vector<10x64xf32>
    %124 = arith.mulf %123, %122 : vector<10x64xf32>
    %125 = math.tanh %124 : vector<10x64xf32>
    %cst_48 = arith.constant 1.000000e+00 : f32
    %126 = vector.broadcast %cst_48 : f32 to vector<10x64xf32>
    %127 = arith.addf %126, %125 : vector<10x64xf32>
    %cst_49 = arith.constant 5.000000e-01 : f32
    %128 = vector.broadcast %cst_49 : f32 to vector<10x64xf32>
    %129 = arith.mulf %128, %127 : vector<10x64xf32>
    %130 = arith.mulf %117, %129 : vector<10x64xf32>
    %c0_50 = arith.constant 0 : index
    %c0_51 = arith.constant 0 : index
    %c0_52 = arith.constant 0 : index
    %131 = vector.load %arg8[%c0_50, %c0_51, %c0_52] : memref<2x64x32xf32, #tpu.memory_space<vmem>>, vector<1x64x32xf32>
    %132 = vector.shape_cast %131 : vector<1x64x32xf32> to vector<64x32xf32>
    %cst_53 = arith.constant dense<0.000000e+00> : vector<10x32xf32>
    %133 = tpu.matmul %130, %132, %cst_53 {dimension_numbers = #tpu.dot_dimension_numbers<[1], [0], [0], [1], [0, 0, 1, 1], [], []>} : vector<10x64xf32>, vector<64x32xf32>, vector<10x32xf32> -> vector<10x32xf32>
    %134 = arith.addf %90, %133 : vector<10x32xf32>
    %135 = vector.broadcast %15 : vector<1x32xf32> to vector<10x32xf32>
    %136 = arith.addf %134, %135 : vector<10x32xf32>
    %c1_54 = arith.constant 1 : index
    %c0_55 = arith.constant 0 : index
    %c0_56 = arith.constant 0 : index
    %137 = vector.load %arg9[%c1_54, %c0_55, %c0_56] : memref<2x8x128xf32, #tpu.memory_space<vmem>>, vector<1x8x128xf32>
    %138 = vector.shape_cast %137 : vector<1x8x128xf32> to vector<8x128xf32>
    %139 = vector.extract_strided_slice %138 {offsets = [0, 0], sizes = [1, 32], strides = [1, 1]} : vector<8x128xf32> to vector<1x32xf32>
    %140 = vector.extract_strided_slice %138 {offsets = [1, 0], sizes = [1, 32], strides = [1, 1]} : vector<8x128xf32> to vector<1x32xf32>
    %141 = vector.extract_strided_slice %138 {offsets = [2, 0], sizes = [1, 96], strides = [1, 1]} : vector<8x128xf32> to vector<1x96xf32>
    %142 = vector.extract_strided_slice %138 {offsets = [3, 0], sizes = [1, 32], strides = [1, 1]} : vector<8x128xf32> to vector<1x32xf32>
    %143 = vector.extract_strided_slice %138 {offsets = [4, 0], sizes = [1, 32], strides = [1, 1]} : vector<8x128xf32> to vector<1x32xf32>
    %144 = vector.extract_strided_slice %138 {offsets = [5, 0], sizes = [1, 32], strides = [1, 1]} : vector<8x128xf32> to vector<1x32xf32>
    %145 = vector.extract_strided_slice %138 {offsets = [6, 0], sizes = [1, 64], strides = [1, 1]} : vector<8x128xf32> to vector<1x64xf32>
    %146 = vector.extract_strided_slice %138 {offsets = [7, 0], sizes = [1, 32], strides = [1, 1]} : vector<8x128xf32> to vector<1x32xf32>
    %cst_57 = arith.constant dense<0.000000e+00> : vector<10xf32>
    %147 = vector.multi_reduction <add>, %136, %cst_57 [1] : vector<10x32xf32> to vector<10xf32>
    %148 = vector.shape_cast %147 : vector<10xf32> to vector<10x1xf32>
    %cst_58 = arith.constant 3.200000e+01 : f32
    %149 = vector.broadcast %cst_58 : f32 to vector<10x1xf32>
    %150 = arith.divf %148, %149 : vector<10x1xf32>
    %151 = vector.broadcast %150 : vector<10x1xf32> to vector<10x32xf32>
    %152 = arith.subf %136, %151 : vector<10x32xf32>
    %153 = arith.mulf %152, %152 : vector<10x32xf32>
    %cst_59 = arith.constant dense<0.000000e+00> : vector<10xf32>
    %154 = vector.multi_reduction <add>, %153, %cst_59 [1] : vector<10x32xf32> to vector<10xf32>
    %155 = vector.shape_cast %154 : vector<10xf32> to vector<10x1xf32>
    %cst_60 = arith.constant 3.200000e+01 : f32
    %156 = vector.broadcast %cst_60 : f32 to vector<10x1xf32>
    %157 = arith.divf %155, %156 : vector<10x1xf32>
    %158 = vector.broadcast %150 : vector<10x1xf32> to vector<10x32xf32>
    %159 = arith.subf %136, %158 : vector<10x32xf32>
    %cst_61 = arith.constant 9.99999996E-13 : f32
    %160 = vector.broadcast %cst_61 : f32 to vector<10x1xf32>
    %161 = arith.addf %157, %160 : vector<10x1xf32>
    %162 = math.rsqrt %161 : vector<10x1xf32>
    %163 = vector.broadcast %162 : vector<10x1xf32> to vector<10x32xf32>
    %164 = arith.mulf %159, %163 : vector<10x32xf32>
    %165 = vector.broadcast %139 : vector<1x32xf32> to vector<10x32xf32>
    %166 = arith.mulf %164, %165 : vector<10x32xf32>
    %167 = vector.broadcast %140 : vector<1x32xf32> to vector<10x32xf32>
    %168 = arith.addf %166, %167 : vector<10x32xf32>
    %c1_62 = arith.constant 1 : index
    %c0_63 = arith.constant 0 : index
    %c0_64 = arith.constant 0 : index
    %169 = vector.load %arg5[%c1_62, %c0_63, %c0_64] : memref<2x32x96xf32, #tpu.memory_space<vmem>>, vector<1x32x96xf32>
    %170 = vector.shape_cast %169 : vector<1x32x96xf32> to vector<32x96xf32>
    %cst_65 = arith.constant dense<0.000000e+00> : vector<10x96xf32>
    %171 = tpu.matmul %168, %170, %cst_65 {dimension_numbers = #tpu.dot_dimension_numbers<[1], [0], [0], [1], [0, 0, 1, 1], [], []>} : vector<10x32xf32>, vector<32x96xf32>, vector<10x96xf32> -> vector<10x96xf32>
    %172 = vector.broadcast %141 : vector<1x96xf32> to vector<10x96xf32>
    %173 = arith.addf %171, %172 : vector<10x96xf32>
    %cst_66 = arith.constant 0.000000e+00 : f32
    %174 = vector.broadcast %cst_66 : f32 to vector<10x32xf32>
    %175 = vector.extract_strided_slice %173 {offsets = [0, 0], sizes = [10, 16], strides = [1, 1]} : vector<10x96xf32> to vector<10x16xf32>
    %176 = vector.extract_strided_slice %173 {offsets = [0, 32], sizes = [10, 16], strides = [1, 1]} : vector<10x96xf32> to vector<10x16xf32>
    %177 = vector.extract_strided_slice %173 {offsets = [0, 64], sizes = [10, 16], strides = [1, 1]} : vector<10x96xf32> to vector<10x16xf32>
    "tpu.trace_start"() <{level = 10 : i32, message = "qd,kd->qk"}> : () -> ()
    %cst_67 = arith.constant dense<0.000000e+00> : vector<10x10xf32>
    %178 = tpu.matmul %175, %176, %cst_67 {dimension_numbers = #tpu.dot_dimension_numbers<[1], [1], [0], [0], [0, 0, 1, 0], [], []>} : vector<10x16xf32>, vector<10x16xf32>, vector<10x10xf32> -> vector<10x10xf32>
    "tpu.trace_stop"() : () -> ()
    %cst_68 = arith.constant 2.500000e-01 : f32
    %179 = vector.broadcast %cst_68 : f32 to vector<10x10xf32>
    %180 = arith.mulf %178, %179 : vector<10x10xf32>
    %181 = arith.addf %180, %5 : vector<10x10xf32>
    %cst_69 = arith.constant dense<0xFF800000> : vector<10xf32>
    %182 = vector.multi_reduction <maximumf>, %181, %cst_69 [1] : vector<10x10xf32> to vector<10xf32>
    %183 = vector.shape_cast %182 : vector<10xf32> to vector<10x1xf32>
    %184 = vector.broadcast %183 : vector<10x1xf32> to vector<10x10xf32>
    %185 = arith.subf %181, %184 : vector<10x10xf32>
    %186 = math.exp %185 : vector<10x10xf32>
    %cst_70 = arith.constant dense<0.000000e+00> : vector<10xf32>
    %187 = vector.multi_reduction <add>, %186, %cst_70 [1] : vector<10x10xf32> to vector<10xf32>
    %188 = vector.shape_cast %187 : vector<10xf32> to vector<10x1xf32>
    %189 = tpu.reciprocal %188 {approx = true} : vector<10x1xf32> -> vector<10x1xf32>
    %190 = vector.broadcast %189 : vector<10x1xf32> to vector<10x10xf32>
    %191 = arith.mulf %186, %190 : vector<10x10xf32>
    %cst_71 = arith.constant dense<0.000000e+00> : vector<10x16xf32>
    %192 = tpu.matmul %191, %177, %cst_71 {dimension_numbers = #tpu.dot_dimension_numbers<[1], [0], [0], [1], [0, 0, 1, 1], [], []>} : vector<10x10xf32>, vector<10x16xf32>, vector<10x16xf32> -> vector<10x16xf32>
    %c2 = arith.constant 2 : index
    %c0_72 = arith.constant 0 : index
    %c0_73 = arith.constant 0 : index
    %193 = vector.load %arg6[%c2, %c0_72, %c0_73] : memref<4x16x32xf32, #tpu.memory_space<vmem>>, vector<1x16x32xf32>
    %194 = vector.shape_cast %193 : vector<1x16x32xf32> to vector<16x32xf32>
    %cst_74 = arith.constant dense<0.000000e+00> : vector<10x32xf32>
    %195 = tpu.matmul %192, %194, %cst_74 {dimension_numbers = #tpu.dot_dimension_numbers<[1], [0], [0], [1], [0, 0, 1, 1], [], []>} : vector<10x16xf32>, vector<16x32xf32>, vector<10x32xf32> -> vector<10x32xf32>
    %196 = arith.addf %174, %195 : vector<10x32xf32>
    %197 = vector.extract_strided_slice %173 {offsets = [0, 16], sizes = [10, 16], strides = [1, 1]} : vector<10x96xf32> to vector<10x16xf32>
    %198 = vector.extract_strided_slice %173 {offsets = [0, 48], sizes = [10, 16], strides = [1, 1]} : vector<10x96xf32> to vector<10x16xf32>
    %199 = vector.extract_strided_slice %173 {offsets = [0, 80], sizes = [10, 16], strides = [1, 1]} : vector<10x96xf32> to vector<10x16xf32>
    "tpu.trace_start"() <{level = 10 : i32, message = "qd,kd->qk"}> : () -> ()
    %cst_75 = arith.constant dense<0.000000e+00> : vector<10x10xf32>
    %200 = tpu.matmul %197, %198, %cst_75 {dimension_numbers = #tpu.dot_dimension_numbers<[1], [1], [0], [0], [0, 0, 1, 0], [], []>} : vector<10x16xf32>, vector<10x16xf32>, vector<10x10xf32> -> vector<10x10xf32>
    "tpu.trace_stop"() : () -> ()
    %cst_76 = arith.constant 2.500000e-01 : f32
    %201 = vector.broadcast %cst_76 : f32 to vector<10x10xf32>
    %202 = arith.mulf %200, %201 : vector<10x10xf32>
    %203 = arith.addf %202, %5 : vector<10x10xf32>
    %cst_77 = arith.constant dense<0xFF800000> : vector<10xf32>
    %204 = vector.multi_reduction <maximumf>, %203, %cst_77 [1] : vector<10x10xf32> to vector<10xf32>
    %205 = vector.shape_cast %204 : vector<10xf32> to vector<10x1xf32>
    %206 = vector.broadcast %205 : vector<10x1xf32> to vector<10x10xf32>
    %207 = arith.subf %203, %206 : vector<10x10xf32>
    %208 = math.exp %207 : vector<10x10xf32>
    %cst_78 = arith.constant dense<0.000000e+00> : vector<10xf32>
    %209 = vector.multi_reduction <add>, %208, %cst_78 [1] : vector<10x10xf32> to vector<10xf32>
    %210 = vector.shape_cast %209 : vector<10xf32> to vector<10x1xf32>
    %211 = tpu.reciprocal %210 {approx = true} : vector<10x1xf32> -> vector<10x1xf32>
    %212 = vector.broadcast %211 : vector<10x1xf32> to vector<10x10xf32>
    %213 = arith.mulf %208, %212 : vector<10x10xf32>
    %cst_79 = arith.constant dense<0.000000e+00> : vector<10x16xf32>
    %214 = tpu.matmul %213, %199, %cst_79 {dimension_numbers = #tpu.dot_dimension_numbers<[1], [0], [0], [1], [0, 0, 1, 1], [], []>} : vector<10x10xf32>, vector<10x16xf32>, vector<10x16xf32> -> vector<10x16xf32>
    %c3 = arith.constant 3 : index
    %c0_80 = arith.constant 0 : index
    %c0_81 = arith.constant 0 : index
    %215 = vector.load %arg6[%c3, %c0_80, %c0_81] : memref<4x16x32xf32, #tpu.memory_space<vmem>>, vector<1x16x32xf32>
    %216 = vector.shape_cast %215 : vector<1x16x32xf32> to vector<16x32xf32>
    %cst_82 = arith.constant dense<0.000000e+00> : vector<10x32xf32>
    %217 = tpu.matmul %214, %216, %cst_82 {dimension_numbers = #tpu.dot_dimension_numbers<[1], [0], [0], [1], [0, 0, 1, 1], [], []>} : vector<10x16xf32>, vector<16x32xf32>, vector<10x32xf32> -> vector<10x32xf32>
    %218 = arith.addf %196, %217 : vector<10x32xf32>
    %219 = arith.addf %136, %218 : vector<10x32xf32>
    %220 = vector.broadcast %142 : vector<1x32xf32> to vector<10x32xf32>
    %221 = arith.addf %219, %220 : vector<10x32xf32>
    %cst_83 = arith.constant dense<0.000000e+00> : vector<10xf32>
    %222 = vector.multi_reduction <add>, %221, %cst_83 [1] : vector<10x32xf32> to vector<10xf32>
    %223 = vector.shape_cast %222 : vector<10xf32> to vector<10x1xf32>
    %cst_84 = arith.constant 3.200000e+01 : f32
    %224 = vector.broadcast %cst_84 : f32 to vector<10x1xf32>
    %225 = arith.divf %223, %224 : vector<10x1xf32>
    %226 = vector.broadcast %225 : vector<10x1xf32> to vector<10x32xf32>
    %227 = arith.subf %221, %226 : vector<10x32xf32>
    %228 = arith.mulf %227, %227 : vector<10x32xf32>
    %cst_85 = arith.constant dense<0.000000e+00> : vector<10xf32>
    %229 = vector.multi_reduction <add>, %228, %cst_85 [1] : vector<10x32xf32> to vector<10xf32>
    %230 = vector.shape_cast %229 : vector<10xf32> to vector<10x1xf32>
    %cst_86 = arith.constant 3.200000e+01 : f32
    %231 = vector.broadcast %cst_86 : f32 to vector<10x1xf32>
    %232 = arith.divf %230, %231 : vector<10x1xf32>
    %233 = vector.broadcast %225 : vector<10x1xf32> to vector<10x32xf32>
    %234 = arith.subf %221, %233 : vector<10x32xf32>
    %cst_87 = arith.constant 9.99999996E-13 : f32
    %235 = vector.broadcast %cst_87 : f32 to vector<10x1xf32>
    %236 = arith.addf %232, %235 : vector<10x1xf32>
    %237 = math.rsqrt %236 : vector<10x1xf32>
    %238 = vector.broadcast %237 : vector<10x1xf32> to vector<10x32xf32>
    %239 = arith.mulf %234, %238 : vector<10x32xf32>
    %240 = vector.broadcast %143 : vector<1x32xf32> to vector<10x32xf32>
    %241 = arith.mulf %239, %240 : vector<10x32xf32>
    %242 = vector.broadcast %144 : vector<1x32xf32> to vector<10x32xf32>
    %243 = arith.addf %241, %242 : vector<10x32xf32>
    %c1_88 = arith.constant 1 : index
    %c0_89 = arith.constant 0 : index
    %c0_90 = arith.constant 0 : index
    %244 = vector.load %arg7[%c1_88, %c0_89, %c0_90] : memref<2x32x64xf32, #tpu.memory_space<vmem>>, vector<1x32x64xf32>
    %245 = vector.shape_cast %244 : vector<1x32x64xf32> to vector<32x64xf32>
    %cst_91 = arith.constant dense<0.000000e+00> : vector<10x64xf32>
    %246 = tpu.matmul %243, %245, %cst_91 {dimension_numbers = #tpu.dot_dimension_numbers<[1], [0], [0], [1], [0, 0, 1, 1], [], []>} : vector<10x32xf32>, vector<32x64xf32>, vector<10x64xf32> -> vector<10x64xf32>
    %247 = vector.broadcast %145 : vector<1x64xf32> to vector<10x64xf32>
    %248 = arith.addf %246, %247 : vector<10x64xf32>
    %249 = arith.mulf %248, %248 : vector<10x64xf32>
    %250 = arith.mulf %248, %249 : vector<10x64xf32>
    %cst_92 = arith.constant 4.471500e-02 : f32
    %251 = vector.broadcast %cst_92 : f32 to vector<10x64xf32>
    %252 = arith.mulf %251, %250 : vector<10x64xf32>
    %253 = arith.addf %248, %252 : vector<10x64xf32>
    %cst_93 = arith.constant 0.797884583 : f32
    %254 = vector.broadcast %cst_93 : f32 to vector<10x64xf32>
    %255 = arith.mulf %254, %253 : vector<10x64xf32>
    %256 = math.tanh %255 : vector<10x64xf32>
    %cst_94 = arith.constant 1.000000e+00 : f32
    %257 = vector.broadcast %cst_94 : f32 to vector<10x64xf32>
    %258 = arith.addf %257, %256 : vector<10x64xf32>
    %cst_95 = arith.constant 5.000000e-01 : f32
    %259 = vector.broadcast %cst_95 : f32 to vector<10x64xf32>
    %260 = arith.mulf %259, %258 : vector<10x64xf32>
    %261 = arith.mulf %248, %260 : vector<10x64xf32>
    %c1_96 = arith.constant 1 : index
    %c0_97 = arith.constant 0 : index
    %c0_98 = arith.constant 0 : index
    %262 = vector.load %arg8[%c1_96, %c0_97, %c0_98] : memref<2x64x32xf32, #tpu.memory_space<vmem>>, vector<1x64x32xf32>
    %263 = vector.shape_cast %262 : vector<1x64x32xf32> to vector<64x32xf32>
    %cst_99 = arith.constant dense<0.000000e+00> : vector<10x32xf32>
    %264 = tpu.matmul %261, %263, %cst_99 {dimension_numbers = #tpu.dot_dimension_numbers<[1], [0], [0], [1], [0, 0, 1, 1], [], []>} : vector<10x64xf32>, vector<64x32xf32>, vector<10x32xf32> -> vector<10x32xf32>
    %265 = arith.addf %221, %264 : vector<10x32xf32>
    %266 = vector.broadcast %146 : vector<1x32xf32> to vector<10x32xf32>
    %267 = arith.addf %265, %266 : vector<10x32xf32>
    %c0_100 = arith.constant 0 : index
    %c0_101 = arith.constant 0 : index
    %268 = vector.load %arg11[%c0_100, %c0_101] : memref<8x128xf32, #tpu.memory_space<vmem>>, vector<8x128xf32>
    %269 = vector.extract_strided_slice %268 {offsets = [0, 0], sizes = [1, 32], strides = [1, 1]} : vector<8x128xf32> to vector<1x32xf32>
    %270 = vector.extract_strided_slice %268 {offsets = [1, 0], sizes = [1, 32], strides = [1, 1]} : vector<8x128xf32> to vector<1x32xf32>
    %271 = vector.extract_strided_slice %268 {offsets = [2, 0], sizes = [1, 2], strides = [1, 1]} : vector<8x128xf32> to vector<1x2xf32>
    %272 = vector.extract_strided_slice %267 {offsets = [0, 0], sizes = [1, 32], strides = [1, 1]} : vector<10x32xf32> to vector<1x32xf32>
    %273 = vector.extract_strided_slice %267 {offsets = [5, 0], sizes = [1, 32], strides = [1, 1]} : vector<10x32xf32> to vector<1x32xf32>
    %274 = tpu.concatenate %272, %273 in 0 : vector<1x32xf32>, vector<1x32xf32> -> vector<2x32xf32>
    %cst_102 = arith.constant dense<0.000000e+00> : vector<2xf32>
    %275 = vector.multi_reduction <add>, %274, %cst_102 [1] : vector<2x32xf32> to vector<2xf32>
    %276 = vector.shape_cast %275 : vector<2xf32> to vector<2x1xf32>
    %cst_103 = arith.constant 3.200000e+01 : f32
    %277 = vector.broadcast %cst_103 : f32 to vector<2x1xf32>
    %278 = arith.divf %276, %277 : vector<2x1xf32>
    %279 = vector.broadcast %278 : vector<2x1xf32> to vector<2x32xf32>
    %280 = arith.subf %274, %279 : vector<2x32xf32>
    %281 = arith.mulf %280, %280 : vector<2x32xf32>
    %cst_104 = arith.constant dense<0.000000e+00> : vector<2xf32>
    %282 = vector.multi_reduction <add>, %281, %cst_104 [1] : vector<2x32xf32> to vector<2xf32>
    %283 = vector.shape_cast %282 : vector<2xf32> to vector<2x1xf32>
    %cst_105 = arith.constant 3.200000e+01 : f32
    %284 = vector.broadcast %cst_105 : f32 to vector<2x1xf32>
    %285 = arith.divf %283, %284 : vector<2x1xf32>
    %286 = vector.broadcast %278 : vector<2x1xf32> to vector<2x32xf32>
    %287 = arith.subf %274, %286 : vector<2x32xf32>
    %cst_106 = arith.constant 9.99999996E-13 : f32
    %288 = vector.broadcast %cst_106 : f32 to vector<2x1xf32>
    %289 = arith.addf %285, %288 : vector<2x1xf32>
    %290 = math.rsqrt %289 : vector<2x1xf32>
    %291 = vector.broadcast %290 : vector<2x1xf32> to vector<2x32xf32>
    %292 = arith.mulf %287, %291 : vector<2x32xf32>
    %293 = vector.broadcast %269 : vector<1x32xf32> to vector<2x32xf32>
    %294 = arith.mulf %292, %293 : vector<2x32xf32>
    %295 = vector.broadcast %270 : vector<1x32xf32> to vector<2x32xf32>
    %296 = arith.addf %294, %295 : vector<2x32xf32>
    %c0_107 = arith.constant 0 : index
    %c0_108 = arith.constant 0 : index
    %297 = memref.load %arg0[%c0_107, %c0_108] : memref<1x1xf32, #tpu.memory_space<smem>>
    %cst_109 = arith.constant 1.000000e+00 : f32
    %298 = arith.divf %cst_109, %297 : f32
    %299 = vector.broadcast %298 : f32 to vector<1x2xf32>
    %300 = arith.mulf %271, %299 : vector<1x2xf32>
    %cst_110 = arith.constant dense<0xFF800000> : vector<1xf32>
    %301 = vector.multi_reduction <maximumf>, %300, %cst_110 [1] : vector<1x2xf32> to vector<1xf32>
    %302 = vector.shape_cast %301 : vector<1xf32> to vector<1x1xf32>
    %303 = vector.broadcast %302 : vector<1x1xf32> to vector<1x2xf32>
    %304 = arith.subf %300, %303 : vector<1x2xf32>
    %305 = math.exp %304 : vector<1x2xf32>
    %cst_111 = arith.constant dense<0.000000e+00> : vector<1xf32>
    %306 = vector.multi_reduction <add>, %305, %cst_111 [1] : vector<1x2xf32> to vector<1xf32>
    %307 = vector.shape_cast %306 : vector<1xf32> to vector<1x1xf32>
    %308 = tpu.reciprocal %307 {approx = true} : vector<1x1xf32> -> vector<1x1xf32>
    %309 = vector.broadcast %308 : vector<1x1xf32> to vector<1x2xf32>
    %310 = arith.mulf %305, %309 : vector<1x2xf32>
    %cst_112 = arith.constant 0.000000e+00 : f32
    %311 = vector.broadcast %cst_112 : f32 to vector<8x128xf32>
    %c0_113 = arith.constant 0 : index
    %c0_114 = arith.constant 0 : index
    %312 = vector.load %arg12[%c0_113, %c0_114] : memref<8x128xf32, #tpu.memory_space<vmem>>, vector<8x128xf32>
    tpu.vector_store %arg12[%c0_113, %c0_114], %311 {strides = array<i32>} : memref<8x128xf32, #tpu.memory_space<vmem>>, vector<8x128xf32>,
    %cst_115 = arith.constant 0.000000e+00 : f32
    %313 = vector.broadcast %cst_115 : f32 to vector<2x8xf32>
    %314 = vector.extract_strided_slice %268 {offsets = [3, 0], sizes = [1, 8], strides = [1, 1]} : vector<8x128xf32> to vector<1x8xf32>
    %c0_116 = arith.constant 0 : index
    %c0_117 = arith.constant 0 : index
    %c0_118 = arith.constant 0 : index
    %315 = vector.load %arg10[%c0_116, %c0_117, %c0_118] : memref<2x32x8xf32, #tpu.memory_space<vmem>>, vector<1x32x8xf32>
    %316 = vector.shape_cast %315 : vector<1x32x8xf32> to vector<32x8xf32>
    %cst_119 = arith.constant dense<0.000000e+00> : vector<2x8xf32>
    %317 = tpu.matmul %296, %316, %cst_119 {dimension_numbers = #tpu.dot_dimension_numbers<[1], [0], [0], [1], [0, 0, 1, 1], [], []>} : vector<2x32xf32>, vector<32x8xf32>, vector<2x8xf32> -> vector<2x8xf32>
    %318 = vector.broadcast %314 : vector<1x8xf32> to vector<2x8xf32>
    %319 = arith.addf %317, %318 : vector<2x8xf32>
    %320 = vector.broadcast %298 : f32 to vector<2x8xf32>
    %321 = arith.mulf %319, %320 : vector<2x8xf32>
    %cst_120 = arith.constant dense<0xFF800000> : vector<2xf32>
    %322 = vector.multi_reduction <maximumf>, %321, %cst_120 [1] : vector<2x8xf32> to vector<2xf32>
    %323 = vector.shape_cast %322 : vector<2xf32> to vector<2x1xf32>
    %324 = vector.broadcast %323 : vector<2x1xf32> to vector<2x8xf32>
    %325 = arith.subf %321, %324 : vector<2x8xf32>
    %326 = math.exp %325 : vector<2x8xf32>
    %cst_121 = arith.constant dense<0.000000e+00> : vector<2xf32>
    %327 = vector.multi_reduction <add>, %326, %cst_121 [1] : vector<2x8xf32> to vector<2xf32>
    %328 = vector.shape_cast %327 : vector<2xf32> to vector<2x1xf32>
    %329 = tpu.reciprocal %328 {approx = true} : vector<2x1xf32> -> vector<2x1xf32>
    %330 = vector.broadcast %329 : vector<2x1xf32> to vector<2x8xf32>
    %331 = arith.mulf %326, %330 : vector<2x8xf32>
    %cst_122 = arith.constant dense<0xFF800000> : vector<2xf32>
    %332 = vector.multi_reduction <maximumf>, %331, %cst_122 [1] : vector<2x8xf32> to vector<2xf32>
    %333 = vector.shape_cast %332 : vector<2xf32> to vector<2x1xf32>
    %334 = vector.extract_strided_slice %310 {offsets = [0, 0], sizes = [1, 1], strides = [1, 1]} : vector<1x2xf32> to vector<1x1xf32>
    %335 = vector.broadcast %334 : vector<1x1xf32> to vector<2x8xf32>
    %336 = arith.mulf %335, %319 : vector<2x8xf32>
    %337 = arith.addf %313, %336 : vector<2x8xf32>
    %c0_123 = arith.constant 0 : index
    %c0_124 = arith.constant 0 : index
    %338 = vector.load %arg12[%c0_123, %c0_124] : memref<8x128xf32, #tpu.memory_space<vmem>>, vector<2x8xf32>
    tpu.vector_store %arg12[%c0_123, %c0_124], %319 {strides = array<i32>} : memref<8x128xf32, #tpu.memory_space<vmem>>, vector<2x8xf32>,
    %c0_125 = arith.constant 0 : index
    %c8 = arith.constant 8 : index
    %339 = vector.load %arg12[%c0_125, %c8] : memref<8x128xf32, #tpu.memory_space<vmem>>, vector<2x1xf32>
    tpu.vector_store %arg12[%c0_125, %c8], %333 {strides = array<i32>} : memref<8x128xf32, #tpu.memory_space<vmem>>, vector<2x1xf32>,
    %340 = vector.extract_strided_slice %268 {offsets = [4, 0], sizes = [1, 8], strides = [1, 1]} : vector<8x128xf32> to vector<1x8xf32>
    %c1_126 = arith.constant 1 : index
    %c0_127 = arith.constant 0 : index
    %c0_128 = arith.constant 0 : index
    %341 = vector.load %arg10[%c1_126, %c0_127, %c0_128] : memref<2x32x8xf32, #tpu.memory_space<vmem>>, vector<1x32x8xf32>
    %342 = vector.shape_cast %341 : vector<1x32x8xf32> to vector<32x8xf32>
    %cst_129 = arith.constant dense<0.000000e+00> : vector<2x8xf32>
    %343 = tpu.matmul %296, %342, %cst_129 {dimension_numbers = #tpu.dot_dimension_numbers<[1], [0], [0], [1], [0, 0, 1, 1], [], []>} : vector<2x32xf32>, vector<32x8xf32>, vector<2x8xf32> -> vector<2x8xf32>
    %344 = vector.broadcast %340 : vector<1x8xf32> to vector<2x8xf32>
    %345 = arith.addf %343, %344 : vector<2x8xf32>
    %346 = vector.broadcast %298 : f32 to vector<2x8xf32>
    %347 = arith.mulf %345, %346 : vector<2x8xf32>
    %cst_130 = arith.constant dense<0xFF800000> : vector<2xf32>
    %348 = vector.multi_reduction <maximumf>, %347, %cst_130 [1] : vector<2x8xf32> to vector<2xf32>
    %349 = vector.shape_cast %348 : vector<2xf32> to vector<2x1xf32>
    %350 = vector.broadcast %349 : vector<2x1xf32> to vector<2x8xf32>
    %351 = arith.subf %347, %350 : vector<2x8xf32>
    %352 = math.exp %351 : vector<2x8xf32>
    %cst_131 = arith.constant dense<0.000000e+00> : vector<2xf32>
    %353 = vector.multi_reduction <add>, %352, %cst_131 [1] : vector<2x8xf32> to vector<2xf32>
    %354 = vector.shape_cast %353 : vector<2xf32> to vector<2x1xf32>
    %355 = tpu.reciprocal %354 {approx = true} : vector<2x1xf32> -> vector<2x1xf32>
    %356 = vector.broadcast %355 : vector<2x1xf32> to vector<2x8xf32>
    %357 = arith.mulf %352, %356 : vector<2x8xf32>
    %cst_132 = arith.constant dense<0xFF800000> : vector<2xf32>
    %358 = vector.multi_reduction <maximumf>, %357, %cst_132 [1] : vector<2x8xf32> to vector<2xf32>
    %359 = vector.shape_cast %358 : vector<2xf32> to vector<2x1xf32>
    %360 = vector.extract_strided_slice %310 {offsets = [0, 1], sizes = [1, 1], strides = [1, 1]} : vector<1x2xf32> to vector<1x1xf32>
    %361 = vector.broadcast %360 : vector<1x1xf32> to vector<2x8xf32>
    %362 = arith.mulf %361, %345 : vector<2x8xf32>
    %363 = arith.addf %337, %362 : vector<2x8xf32>
    %c2_133 = arith.constant 2 : index
    %c0_134 = arith.constant 0 : index
    %364 = vector.load %arg12[%c2_133, %c0_134] : memref<8x128xf32, #tpu.memory_space<vmem>>, vector<2x8xf32>
    tpu.vector_store %arg12[%c2_133, %c0_134], %345 {strides = array<i32>} : memref<8x128xf32, #tpu.memory_space<vmem>>, vector<2x8xf32>,
    %c2_135 = arith.constant 2 : index
    %c8_136 = arith.constant 8 : index
    %365 = vector.load %arg12[%c2_135, %c8_136] : memref<8x128xf32, #tpu.memory_space<vmem>>, vector<2x1xf32>
    tpu.vector_store %arg12[%c2_135, %c8_136], %359 {strides = array<i32>} : memref<8x128xf32, #tpu.memory_space<vmem>>, vector<2x1xf32>,
    %c4 = arith.constant 4 : index
    %c0_137 = arith.constant 0 : index
    %366 = vector.load %arg12[%c4, %c0_137] : memref<8x128xf32, #tpu.memory_space<vmem>>, vector<1x2xf32>
    tpu.vector_store %arg12[%c4, %c0_137], %310 {strides = array<i32>} : memref<8x128xf32, #tpu.memory_space<vmem>>, vector<1x2xf32>,
    %c5 = arith.constant 5 : index
    %c0_138 = arith.constant 0 : index
    %367 = vector.load %arg12[%c5, %c0_138] : memref<8x128xf32, #tpu.memory_space<vmem>>, vector<2x8xf32>
    tpu.vector_store %arg12[%c5, %c0_138], %363 {strides = array<i32>} : memref<8x128xf32, #tpu.memory_space<vmem>>, vector<2x8xf32>,
    return
  }
}

</mosaic_0001>

<llo_original>
// kernel: tile.9
$region0: #{tile.9}
  %s0 = inlined_call_operand.vmem [shape: f32[2,5,32], index: 0, kind: input, shape index: {}]
  %s1 = inlined_call_operand.vmem [shape: f32[10,32], index: 1, kind: output, shape index: {}]
  %v2 = vld [vmem:[%s0] sm:$0x1f]
  %vm3 = vcmask 261120
  %4 = vst.msk [vmem:[%s1] sm:$0x1f] %vm3, %v2
  %s5 = scalar_lea.vmem %s0, 8
  %v6 = vld [vmem:[%s5] sm:$0x1f]
  %vm7 = vcmask 261120
  %s8 = scalar_lea.vmem %s1, 5
  %9 = vst.msk [vmem:[%s8] sm:$0x1f] %vm7, %v6

// kernel: _fused_forward.1
$region0: #{_fused_forward.1}
  #allocation0 [shape = 'u32[]', space=smem, size = 0x4, offset = 0x4, fixed_abs, tag = 'smem constant byte address 0x4 - core index']
  #allocation1 [shape = 'u32[144,128]{1,0:T(1,128)}', space=vmem, size = 0x12000, scoped, tag = 'internal scratch']
  #allocation2 [shape = 'f32[1,1]{1,0:T(1,128)S(6)}', space=smem, size = 0x200, scoped, tag = 'scoped memory for _fused_forward.1']
  %s0 = inlined_call_operand.<no memory space> [shape: f32[1,1], index: 0, kind: input, shape index: {}]
  %s1 = inlined_call_operand.vmem [shape: f32[10,192], index: 1, kind: input, shape index: {}]
  %s2 = inlined_call_operand.vmem [shape: f32[10,32], index: 2, kind: input, shape index: {}]
  %s3 = inlined_call_operand.vmem [shape: f32[10,10], index: 3, kind: input, shape index: {}]
  %s4 = inlined_call_operand.vmem [shape: f32[192,32], index: 4, kind: input, shape index: {}]
  %s5 = inlined_call_operand.vmem [shape: f32[2,32,96], index: 5, kind: input, shape index: {}]
  %s6 = inlined_call_operand.vmem [shape: f32[4,16,32], index: 6, kind: input, shape index: {}]
  %s7 = inlined_call_operand.vmem [shape: f32[2,32,64], index: 7, kind: input, shape index: {}]
  %s8 = inlined_call_operand.vmem [shape: f32[2,64,32], index: 8, kind: input, shape index: {}]
  %s9 = inlined_call_operand.vmem [shape: f32[2,8,128], index: 9, kind: input, shape index: {}]
  %s10 = inlined_call_operand.vmem [shape: f32[2,32,8], index: 10, kind: input, shape index: {}]
  %s11 = inlined_call_operand.vmem [shape: f32[8,128], index: 11, kind: input, shape index: {}]
  %s12 = inlined_call_operand.hbm [shape: f32[8,128], index: 12, kind: output, shape index: {}]
  %s13 = sld [smem:[#allocation0]]
  $region58: #{_fused_forward.1} parent=0
    _
  %s15 = ssub.s32 1, %s13
  %s16 = scalar_select 0, %s15, %s13
  %17 = sst [smem:[#allocation2]] %s0
  $region1: #{_fused_forward.1} parent=0
    #allocation3 [shape = 'u8[4096]{0}', space=vmem, size = 0x1000, scoped, tag = 'output window, operand 0, single buffered']
    #allocation4 [shape = 's32[1]{0}', space=sflag, size = 0x4, scoped, tag = 'scoped memory for _fused_forward.1']
    %18 = vsyncpa [#allocation4], 0
    // Predicated region
    $region2: #{_fused_forward.1} parent=1 // pred_check
      _
    $region3: #{_fused_forward.1} parent=1 // pred_check_branch
      %20 = sbr.rel (0) target = $region5
    $region4: #{_fused_forward.1} parent=1 // pred_region
      _
    $region5: #{_fused_forward.1} parent=1 // pred_fallthru
      _
    // Predicated region
    $region6: #{_fused_forward.1} parent=1 // pred_check
      _
    $region7: #{_fused_forward.1} parent=1 // pred_check_branch
      %22 = sbr.rel (0) target = $region9
    $region8: #{_fused_forward.1} parent=1 // pred_region
      _
    $region9: #{_fused_forward.1} parent=1 // pred_fallthru
      _
    // Predicated region
    $region10: #{_fused_forward.1} parent=1 // pred_check
      _
    $region11: #{_fused_forward.1} parent=1 // pred_check_branch
      %24 = sbr.rel (0) target = $region13
    $region12: #{_fused_forward.1} parent=1 // pred_region
      _
    $region13: #{_fused_forward.1} parent=1 // pred_fallthru
      _
    // Predicated region
    $region14: #{_fused_forward.1} parent=1 // pred_check
      _
    $region15: #{_fused_forward.1} parent=1 // pred_check_branch
      %26 = sbr.rel (0) target = $region17
    $region16: #{_fused_forward.1} parent=1 // pred_region
      _
    $region17: #{_fused_forward.1} parent=1 // pred_fallthru
      _
    // Predicated region
    $region18: #{_fused_forward.1} parent=1 // pred_check
      _
    $region19: #{_fused_forward.1} parent=1 // pred_check_branch
      %28 = sbr.rel (0) target = $region21
    $region20: #{_fused_forward.1} parent=1 // pred_region
      _
    $region21: #{_fused_forward.1} parent=1 // pred_fallthru
      _
    // Predicated region
    $region22: #{_fused_forward.1} parent=1 // pred_check
      _
    $region23: #{_fused_forward.1} parent=1 // pred_check_branch
      %30 = sbr.rel (0) target = $region25
    $region24: #{_fused_forward.1} parent=1 // pred_region
      _
    $region25: #{_fused_forward.1} parent=1 // pred_fallthru
      _
    // Predicated region
    $region26: #{_fused_forward.1} parent=1 // pred_check
      _
    $region27: #{_fused_forward.1} parent=1 // pred_check_branch
      %32 = sbr.rel (0) target = $region29
    $region28: #{_fused_forward.1} parent=1 // pred_region
      _
    $region29: #{_fused_forward.1} parent=1 // pred_fallthru
      _
    // Predicated region
    $region30: #{_fused_forward.1} parent=1 // pred_check
      _
    $region31: #{_fused_forward.1} parent=1 // pred_check_branch
      %34 = sbr.rel (0) target = $region33
    $region32: #{_fused_forward.1} parent=1 // pred_region
      _
    $region33: #{_fused_forward.1} parent=1 // pred_fallthru
      _
    // Predicated region
    $region34: #{_fused_forward.1} parent=1 // pred_check
      _
    $region35: #{_fused_forward.1} parent=1 // pred_check_branch
      %36 = sbr.rel (0) target = $region37
    $region36: #{_fused_forward.1} parent=1 // pred_region
      _
    $region37: #{_fused_forward.1} parent=1 // pred_fallthru
      _
    // Predicated region
    $region38: #{_fused_forward.1} parent=1 // pred_check
      _
    $region39: #{_fused_forward.1} parent=1 // pred_check_branch
      %38 = sbr.rel (0) target = $region41
    $region40: #{_fused_forward.1} parent=1 // pred_region
      _
    $region41: #{_fused_forward.1} parent=1 // pred_fallthru
      _
    // Predicated region
    $region42: #{_fused_forward.1} parent=1 // pred_check
      _
    $region43: #{_fused_forward.1} parent=1 // pred_check_branch
      %40 = sbr.rel (0) target = $region45
    $region44: #{_fused_forward.1} parent=1 // pred_region
      _
    $region45: #{_fused_forward.1} parent=1 // pred_fallthru
      _
    // Predicated region
    $region46: #{_fused_forward.1} parent=1 // pred_check
      _
    $region47: #{_fused_forward.1} parent=1 // pred_check_branch
      %42 = sbr.rel (0) target = $region49
    $region48: #{_fused_forward.1} parent=1 // pred_region
      _
    $region49: #{_fused_forward.1} parent=1 // pred_fallthru
      _
    %v43 = vld [vmem:[%s1] sm:$0xff]
    %v44 = vld [vmem:[%s1 + $0x8] sm:$0xff]
    %v45 = vld [vmem:[%s1 + $0x10] sm:$0x3]
    %v46 = vld [vmem:[%s1 + $0x18] sm:$0x3]
    %v47 = vld [vmem:[%s4] sm:$0xff]
    %v48 = vld [vmem:[%s4 + $0x8] sm:$0xff]
    %v49 = vld [vmem:[%s4 + $0x10] sm:$0xff]
    %v50 = vld [vmem:[%s4 + $0x18] sm:$0xff]
    %v51 = vld [vmem:[%s4 + $0x20] sm:$0xff]
    %v52 = vld [vmem:[%s4 + $0x28] sm:$0xff]
    %v53 = vld [vmem:[%s4 + $0x30] sm:$0xff]
    %v54 = vld [vmem:[%s4 + $0x38] sm:$0xff]
    %v55 = vld [vmem:[%s4 + $0x40] sm:$0xff]
    %v56 = vld [vmem:[%s4 + $0x48] sm:$0xff]
    %v57 = vld [vmem:[%s4 + $0x50] sm:$0xff]
    %v58 = vld [vmem:[%s4 + $0x58] sm:$0xff]
    %v59 = vld [vmem:[%s4 + $0x60] sm:$0xff]
    %v60 = vld [vmem:[%s4 + $0x68] sm:$0xff]
    %v61 = vld [vmem:[%s4 + $0x70] sm:$0xff]
    %v62 = vld [vmem:[%s4 + $0x78] sm:$0xff]
    %v63 = vld [vmem:[%s4 + $0x80] sm:$0xff]
    %v64 = vld [vmem:[%s4 + $0x88] sm:$0xff]
    %v65 = vld [vmem:[%s4 + $0x90] sm:$0xff]
    %v66 = vld [vmem:[%s4 + $0x98] sm:$0xff]
    %v67 = vld [vmem:[%s4 + $0xa0] sm:$0xff]
    %v68 = vld [vmem:[%s4 + $0xa8] sm:$0xff]
    %v69 = vld [vmem:[%s4 + $0xb0] sm:$0xff]
    %v70 = vld [vmem:[%s4 + $0xb8] sm:$0xff]
    %v71 = vld [vmem:[%s2] sm:$0xff]
    %v72 = vld [vmem:[%s2 + $0x8] sm:$0x3]
    %vm73 = vcmask 523264
    %v75 = vsel %vm73, %v44, 0
    %v78 = vsel %vm73, %v46, 0
    %80 = vmatprep.subr.mxu0 0.0
    %81 = vmatpush1.msra.mxu0 %v47
    %82 = vmatprep.subr.mxu0 0.0
    %83 = vmatpush1.msra.mxu0 %v48
    %84 = vmatprep.subr.mxu0 0.0
    %85 = vmatpush1.msra.mxu0 %v49
    %86 = vmatprep.subr.mxu0 0.0
    %87 = vmatpush1.msra.mxu0 %v50
    %88 = vmatprep.subr.mxu0 0.0
    %89 = vmatpush1.msra.mxu0 %v51
    %90 = vmatprep.subr.mxu0 0.0
    %91 = vmatpush1.msra.mxu0 %v52
    %92 = vmatprep.subr.mxu0 0.0
    %93 = vmatpush1.msra.mxu0 %v53
    %94 = vmatprep.subr.mxu0 0.0
    %95 = vmatpush1.msra.mxu0 %v54
    %96 = vmatprep.subr.mxu0 0.0
    %97 = vmatpush1.msra.mxu0 %v55
    %98 = vmatprep.subr.mxu0 0.0
    %99 = vmatpush1.msra.mxu0 %v56
    %100 = vmatprep.subr.mxu0 0.0
    %101 = vmatpush1.msra.mxu0 %v57
    %102 = vmatprep.subr.mxu0 0.0
    %103 = vmatpush1.msra.mxu0 %v58
    %104 = vmatprep.subr.mxu0 0.0
    %105 = vmatpush1.msra.mxu0 %v59
    %106 = vmatprep.subr.mxu0 0.0
    %107 = vmatpush1.msra.mxu0 %v60
    %108 = vmatprep.subr.mxu0 0.0
    %109 = vmatpush1.msra.mxu0 %v61
    %110 = vmatprep.subr.mxu0 0.0
    %111 = vmatpush1.msra.mxu0 %v62
    %112 = vmatprep.subr.mxu0 0.0
    %113 = vmatpush1.msra.mxu0 %v63
    %114 = vmatprep.subr.mxu0 0.0
    %115 = vmatpush1.msra.mxu0 %v64
    %116 = vmatprep.subr.mxu0 0.0
    %117 = vmatpush1.msra.mxu0 %v65
    %118 = vmatprep.subr.mxu0 0.0
    %119 = vmatpush1.msra.mxu0 %v66
    %120 = vmatprep.subr.mxu0 0.0
    %121 = vmatpush1.msra.mxu0 %v67
    %122 = vmatprep.subr.mxu0 0.0
    %123 = vmatpush1.msra.mxu0 %v68
    %124 = vmatprep.subr.mxu0 0.0
    %125 = vmatpush1.msra.mxu0 %v69
    %126 = vmatprep.subr.mxu0 0.0
    %127 = vmatpush1.msra.mxu0 %v70
    %128 = vmatprep.subr.mxu0 0.0
    %129 = vmatpush1.msra.mxu0 0.0
    %130 = vmatprep.subr.mxu0 0.0
    %131 = vmatpush1.msra.mxu0 0.0
    %132 = vmatprep.subr.mxu0 0.0
    %133 = vmatpush1.msra.mxu0 0.0
    %134 = vmatprep.subr.mxu0 0.0
    %135 = vmatpush1.msra.mxu0 0.0
    %136 = vmatprep.subr.mxu0 0.0
    %137 = vmatpush1.msra.mxu0 0.0
    %138 = vmatprep.subr.mxu0 0.0
    %139 = vmatpush1.msra.mxu0 0.0
    %140 = vmatprep.subr.mxu0 0.0
    %141 = vmatpush1.msra.mxu0 0.0
    %142 = vmatprep.subr.mxu0 0.0
    %143 = vmatpush1.msra.mxu0 0.0
    %144 = vmatprep.mubr.f32.mxu0 %v75
    %145 = vmatmul.mubr.f32.gmra.mrb[0].mxu0 %v43
    %v146 = vpop.f32.mrb[0].mxu0
    %v147 = vadd.f32 %v71, %v146
    %v148 = vpop.f32.mrb[0].mxu0
    %149 = vmatprep.mubr.f32.mxu0 %v78
    %150 = vmatmul.mubr.f32.gmra.mrb[0].mxu0 %v45
    %v151 = vpop.f32.mrb[0].mxu0
    %v152 = vadd.f32 %v72, %v151
    %v153 = vpop.f32.mrb[0].mxu0
    %154 = vdwg.mxu0
    %v155 = vld [vmem:[%s3] sm:$0xff]
    %v156 = vld [vmem:[%s3 + $0x8] sm:$0x3]
    %v157 = vld [vmem:[%s9] sm:$0xff]
    %vm158 = vcmask 261120
    %v159 = vsel %vm158, %v147, 0.0
    %160 = vadd.xlane.f32.xlu0 %v159
    %v161 = vpop.xlane.xlu0 %160
    %vm162 = vcmask 254976
    %v163 = vsel %vm162, %v152, 0.0
    %164 = vadd.xlane.f32.xlu0 %v163
    %v165 = vpop.xlane.xlu0 %164
    %v166 = vrcp.pop 32.0
    %v167 = vmul.f32 %v161, %v166
    %v168 = vmul.f32 %v165, %v166
    %v169 = vsub.f32 %v147, %v167
    %v170 = vsub.f32 %v152, %v168
    %v171 = vmul.f32 %v169, %v169
    %v172 = vmul.f32 %v170, %v170
    %v173 = vsel %vm158, %v171, 0.0
    %174 = vadd.xlane.f32.xlu0 %v173
    %v175 = vpop.xlane.xlu0 %174
    %v176 = vsel %vm162, %v172, 0.0
    %177 = vadd.xlane.f32.xlu0 %v176
    %v178 = vpop.xlane.xlu0 %177
    %v179 = vmul.f32 %v175, %v166
    %v180 = vmul.f32 %v178, %v166
    %v181 = vadd.f32 %v179, 1e-12
    %v182 = vadd.f32 %v180, 1e-12
    %v183 = vrsqrt.pop %v181
    %v184 = vrsqrt.pop %v182
    %v185 = vmul.f32 %v169, %v183
    %v186 = vmul.f32 %v170, %v184
    %v187 = vlaneseq
    %v188 = vshrl.u32 %v187, 7
    %v189 = vsub.s32 0, %v188
    %v190 = vrot.slane %v157, %v189
    %v191 = vmul.f32 %v185, %v190
    %v192 = vmul.f32 %v186, %v190
    %v193 = vlaneseq
    %v194 = vshrl.u32 %v193, 7
    %v195 = vsub.s32 1, %v194
    %v196 = vrot.slane %v157, %v195
    %v197 = vadd.f32 %v191, %v196
    %v198 = vadd.f32 %v192, %v196
    %v199 = vld [vmem:[%s5] sm:$0xff]
    %v200 = vld [vmem:[%s5 + $0x8] sm:$0xff]
    %v201 = vld [vmem:[%s5 + $0x10] sm:$0xff]
    %v202 = vld [vmem:[%s5 + $0x18] sm:$0xff]
    %v203 = vlaneseq
    %v204 = vshrl.u32 %v203, 7
    %v205 = vsub.s32 2, %v204
    %v206 = vrot.slane %v157, %v205
    %v208 = vsel %vm158, %v197, 0
    %v211 = vsel %vm158, %v198, 0
    %213 = vmatprep.subr.mxu0 0.0
    %214 = vmatpush1.msra.mxu0 %v199
    %215 = vmatprep.subr.mxu0 0.0
    %216 = vmatpush1.msra.mxu0 %v200
    %217 = vmatprep.subr.mxu0 0.0
    %218 = vmatpush1.msra.mxu0 %v201
    %219 = vmatprep.subr.mxu0 0.0
    %220 = vmatpush1.msra.mxu0 %v202
    %221 = vmatprep.subr.mxu0 0.0
    %222 = vmatpush1.msra.mxu0 0.0
    %223 = vmatprep.subr.mxu0 0.0
    %224 = vmatpush1.msra.mxu0 0.0
    %225 = vmatprep.subr.mxu0 0.0
    %226 = vmatpush1.msra.mxu0 0.0
    %227 = vmatprep.subr.mxu0 0.0
    %228 = vmatpush1.msra.mxu0 0.0
    %229 = vmatprep.subr.mxu0 0.0
    %230 = vmatpush1.msra.mxu0 0.0
    %231 = vmatprep.subr.mxu0 0.0
    %232 = vmatpush1.msra.mxu0 0.0
    %233 = vmatprep.subr.mxu0 0.0
    %234 = vmatpush1.msra.mxu0 0.0
    %235 = vmatprep.subr.mxu0 0.0
    %236 = vmatpush1.msra.mxu0 0.0
    %237 = vmatprep.subr.mxu0 0.0
    %238 = vmatpush1.msra.mxu0 0.0
    %239 = vmatprep.subr.mxu0 0.0
    %240 = vmatpush1.msra.mxu0 0.0
    %241 = vmatprep.subr.mxu0 0.0
    %242 = vmatpush1.msra.mxu0 0.0
    %243 = vmatprep.subr.mxu0 0.0
    %244 = vmatpush1.msra.mxu0 0.0
    %245 = vmatprep.subr.mxu0 0.0
    %246 = vmatpush1.msra.mxu0 0.0
    %247 = vmatprep.subr.mxu0 0.0
    %248 = vmatpush1.msra.mxu0 0.0
    %249 = vmatprep.subr.mxu0 0.0
    %250 = vmatpush1.msra.mxu0 0.0
    %251 = vmatprep.subr.mxu0 0.0
    %252 = vmatpush1.msra.mxu0 0.0
    %253 = vmatprep.subr.mxu0 0.0
    %254 = vmatpush1.msra.mxu0 0.0
    %255 = vmatprep.subr.mxu0 0.0
    %256 = vmatpush1.msra.mxu0 0.0
    %257 = vmatprep.subr.mxu0 0.0
    %258 = vmatpush1.msra.mxu0 0.0
    %259 = vmatprep.subr.mxu0 0.0
    %260 = vmatpush1.msra.mxu0 0.0
    %261 = vmatprep.subr.mxu0 0.0
    %262 = vmatpush1.msra.mxu0 0.0
    %263 = vmatprep.subr.mxu0 0.0
    %264 = vmatpush1.msra.mxu0 0.0
    %265 = vmatprep.subr.mxu0 0.0
    %266 = vmatpush1.msra.mxu0 0.0
    %267 = vmatprep.subr.mxu0 0.0
    %268 = vmatpush1.msra.mxu0 0.0
    %269 = vmatprep.subr.mxu0 0.0
    %270 = vmatpush1.msra.mxu0 0.0
    %271 = vmatprep.subr.mxu0 0.0
    %272 = vmatpush1.msra.mxu0 0.0
    %273 = vmatprep.subr.mxu0 0.0
    %274 = vmatpush1.msra.mxu0 0.0
    %275 = vmatprep.subr.mxu0 0.0
    %276 = vmatpush1.msra.mxu0 0.0
    %277 = vmatprep.mubr.f32.mxu0 0.0
    %278 = vmatmul.mubr.f32.gmra.mrb[0].mxu0 %v208
    %v279 = vpop.f32.mrb[0].mxu0
    %v280 = vadd.f32 %v206, %v279
    %v281 = vpop.f32.mrb[0].mxu0
    %282 = vmatprep.mubr.f32.mxu0 0.0
    %283 = vmatmul.mubr.f32.gmra.mrb[0].mxu0 %v211
    %v284 = vpop.f32.mrb[0].mxu0
    %v285 = vadd.f32 %v206, %v284
    %v286 = vpop.f32.mrb[0].mxu0
    %287 = vdwg.mxu0
    %290 = vrot.lane.b32.xlu0 %v280, 96
    %v291 = vpop.permute.xlu0 %290
    %292 = vrot.lane.b32.xlu0 %v285, 96
    %v293 = vpop.permute.xlu0 %292
    %vm294 = vcmask 130048
    %v295 = vsel %vm294, %v280, 0
    %v297 = vsel %vm294, %v285, 0
    %v299 = vsel %vm294, %v291, 0
    %v301 = vsel %vm294, %v293, 0
    %303 = vmatprep.subr.mxu0 0.0
    %304 = vmatpush1.xpose.msra.mxu0 %v299
    %305 = vmatprep.subr.mxu0 0.0
    %306 = vmatpush1.xpose.msra.mxu0 %v301
    %307 = vmatprep.subr.mxu0 0.0
    %308 = vmatpush1.xpose.msra.mxu0 0.0
    %309 = vmatprep.subr.mxu0 0.0
    %310 = vmatpush1.xpose.msra.mxu0 0.0
    %311 = vmatprep.subr.mxu0 0.0
    %312 = vmatpush1.xpose.msra.mxu0 0.0
    %313 = vmatprep.subr.mxu0 0.0
    %314 = vmatpush1.xpose.msra.mxu0 0.0
    %315 = vmatprep.subr.mxu0 0.0
    %316 = vmatpush1.xpose.msra.mxu0 0.0
    %317 = vmatprep.subr.mxu0 0.0
    %318 = vmatpush1.xpose.msra.mxu0 0.0
    %319 = vmatprep.subr.mxu0 0.0
    %320 = vmatpush1.xpose.msra.mxu0 0.0
    %321 = vmatprep.subr.mxu0 0.0
    %322 = vmatpush1.xpose.msra.mxu0 0.0
    %323 = vmatprep.subr.mxu0 0.0
    %324 = vmatpush1.xpose.msra.mxu0 0.0
    %325 = vmatprep.subr.mxu0 0.0
    %326 = vmatpush1.xpose.msra.mxu0 0.0
    %327 = vmatprep.subr.mxu0 0.0
    %328 = vmatpush1.xpose.msra.mxu0 0.0
    %329 = vmatprep.subr.mxu0 0.0
    %330 = vmatpush1.xpose.msra.mxu0 0.0
    %331 = vmatprep.subr.mxu0 0.0
    %332 = vmatpush1.xpose.msra.mxu0 0.0
    %333 = vmatprep.subr.mxu0 0.0
    %334 = vmatpush1.xpose.msra.mxu0 0.0
    %335 = vmatprep.subr.mxu0 0.0
    %336 = vmatpush1.xpose.msra.mxu0 0.0
    %337 = vmatprep.subr.mxu0 0.0
    %338 = vmatpush1.xpose.msra.mxu0 0.0
    %339 = vmatprep.subr.mxu0 0.0
    %340 = vmatpush1.xpose.msra.mxu0 0.0
    %341 = vmatprep.subr.mxu0 0.0
    %342 = vmatpush1.xpose.msra.mxu0 0.0
    %343 = vmatprep.subr.mxu0 0.0
    %344 = vmatpush1.xpose.msra.mxu0 0.0
    %345 = vmatprep.subr.mxu0 0.0
    %346 = vmatpush1.xpose.msra.mxu0 0.0
    %347 = vmatprep.subr.mxu0 0.0
    %348 = vmatpush1.xpose.msra.mxu0 0.0
    %349 = vmatprep.subr.mxu0 0.0
    %350 = vmatpush1.xpose.msra.mxu0 0.0
    %351 = vmatprep.subr.mxu0 0.0
    %352 = vmatpush1.xpose.msra.mxu0 0.0
    %353 = vmatprep.subr.mxu0 0.0
    %354 = vmatpush1.xpose.msra.mxu0 0.0
    %355 = vmatprep.subr.mxu0 0.0
    %356 = vmatpush1.xpose.msra.mxu0 0.0
    %357 = vmatprep.subr.mxu0 0.0
    %358 = vmatpush1.xpose.msra.mxu0 0.0
    %359 = vmatprep.subr.mxu0 0.0
    %360 = vmatpush1.xpose.msra.mxu0 0.0
    %361 = vmatprep.subr.mxu0 0.0
    %362 = vmatpush1.xpose.msra.mxu0 0.0
    %363 = vmatprep.subr.mxu0 0.0
    %364 = vmatpush1.xpose.msra.mxu0 0.0
    %365 = vmatprep.subr.mxu0 0.0
    %366 = vmatpush1.xpose.msra.mxu0 0.0
    %367 = vmatprep.mubr.f32.mxu0 0.0
    %368 = vmatmul.mubr.f32.gmra.mrb[0].mxu0 %v295
    %v369 = vpop.f32.mrb[0].mxu0
    %v370 = vadd.f32 0.0, %v369
    %v371 = vpop.f32.mrb[0].mxu0
    %372 = vmatprep.mubr.f32.mxu0 0.0
    %373 = vmatmul.mubr.f32.gmra.mrb[0].mxu0 %v297
    %v374 = vpop.f32.mrb[0].mxu0
    %v375 = vadd.f32 0.0, %v374
    %v376 = vpop.f32.mrb[0].mxu0
    %377 = vdwg.mxu0
    %v378 = vmul.f32 %v370, 0.25
    %v379 = vmul.f32 %v375, 0.25
    %v380 = vadd.f32 %v378, %v155
    %v381 = vadd.f32 %v379, %v156
    %vm382 = vcmask 80896
    %v383 = vsel %vm382, %v380, -inf
    %384 = vmax.xlane.f32.xlu0 %v383
    %v385 = vpop.xlane.xlu0 %384
    %vm386 = vcmask 74752
    %v387 = vsel %vm386, %v381, -inf
    %388 = vmax.xlane.f32.xlu0 %v387
    %v389 = vpop.xlane.xlu0 %388
    %v390 = vsub.f32 %v380, %v385
    %v391 = vsub.f32 %v381, %v389
    %v392 = vmul.f32 %v390, 1.442695
    %v393 = vpow.pop %v392
    %v394 = vmul.f32 %v391, 1.442695
    %v395 = vpow.pop %v394
    %v396 = vsel %vm382, %v393, 0.0
    %397 = vadd.xlane.f32.xlu0 %v396
    %v398 = vpop.xlane.xlu0 %397
    %v399 = vsel %vm386, %v395, 0.0
    %400 = vadd.xlane.f32.xlu0 %v399
    %v401 = vpop.xlane.xlu0 %400
    %v402 = vrcp.pop %v398
    %v403 = vrcp.pop %v401
    %v404 = vmul.f32 %v393, %v402
    %v405 = vmul.f32 %v395, %v403
    %406 = vrot.lane.b32.xlu0 %v280, 64
    %v407 = vpop.permute.xlu0 %406
    %408 = vrot.lane.b32.xlu0 %v285, 64
    %v409 = vpop.permute.xlu0 %408
    %v412 = vsel %vm382, %v404, 0
    %v415 = vsel %vm382, %v405, 0
    %vm417 = vcmask 1041408
    %v418 = vsel %vm417, %v409, 0
    %420 = vmatprep.subr.mxu0 0.0
    %421 = vmatpush1.msra.mxu0 %v407
    %422 = vmatprep.subr.mxu0 0.0
    %423 = vmatpush1.msra.mxu0 %v418
    %424 = vmatprep.subr.mxu0 0.0
    %425 = vmatpush1.msra.mxu0 0.0
    %426 = vmatprep.subr.mxu0 0.0
    %427 = vmatpush1.msra.mxu0 0.0
    %428 = vmatprep.subr.mxu0 0.0
    %429 = vmatpush1.msra.mxu0 0.0
    %430 = vmatprep.subr.mxu0 0.0
    %431 = vmatpush1.msra.mxu0 0.0
    %432 = vmatprep.subr.mxu0 0.0
    %433 = vmatpush1.msra.mxu0 0.0
    %434 = vmatprep.subr.mxu0 0.0
    %435 = vmatpush1.msra.mxu0 0.0
    %436 = vmatprep.subr.mxu0 0.0
    %437 = vmatpush1.msra.mxu0 0.0
    %438 = vmatprep.subr.mxu0 0.0
    %439 = vmatpush1.msra.mxu0 0.0
    %440 = vmatprep.subr.mxu0 0.0
    %441 = vmatpush1.msra.mxu0 0.0
    %442 = vmatprep.subr.mxu0 0.0
    %443 = vmatpush1.msra.mxu0 0.0
    %444 = vmatprep.subr.mxu0 0.0
    %445 = vmatpush1.msra.mxu0 0.0
    %446 = vmatprep.subr.mxu0 0.0
    %447 = vmatpush1.msra.mxu0 0.0
    %448 = vmatprep.subr.mxu0 0.0
    %449 = vmatpush1.msra.mxu0 0.0
    %450 = vmatprep.subr.mxu0 0.0
    %451 = vmatpush1.msra.mxu0 0.0
    %452 = vmatprep.subr.mxu0 0.0
    %453 = vmatpush1.msra.mxu0 0.0
    %454 = vmatprep.subr.mxu0 0.0
    %455 = vmatpush1.msra.mxu0 0.0
    %456 = vmatprep.subr.mxu0 0.0
    %457 = vmatpush1.msra.mxu0 0.0
    %458 = vmatprep.subr.mxu0 0.0
    %459 = vmatpush1.msra.mxu0 0.0
    %460 = vmatprep.subr.mxu0 0.0
    %461 = vmatpush1.msra.mxu0 0.0
    %462 = vmatprep.subr.mxu0 0.0
    %463 = vmatpush1.msra.mxu0 0.0
    %464 = vmatprep.subr.mxu0 0.0
    %465 = vmatpush1.msra.mxu0 0.0
    %466 = vmatprep.subr.mxu0 0.0
    %467 = vmatpush1.msra.mxu0 0.0
    %468 = vmatprep.subr.mxu0 0.0
    %469 = vmatpush1.msra.mxu0 0.0
    %470 = vmatprep.subr.mxu0 0.0
    %471 = vmatpush1.msra.mxu0 0.0
    %472 = vmatprep.subr.mxu0 0.0
    %473 = vmatpush1.msra.mxu0 0.0
    %474 = vmatprep.subr.mxu0 0.0
    %475 = vmatpush1.msra.mxu0 0.0
    %476 = vmatprep.subr.mxu0 0.0
    %477 = vmatpush1.msra.mxu0 0.0
    %478 = vmatprep.subr.mxu0 0.0
    %479 = vmatpush1.msra.mxu0 0.0
    %480 = vmatprep.subr.mxu0 0.0
    %481 = vmatpush1.msra.mxu0 0.0
    %482 = vmatprep.subr.mxu0 0.0
    %483 = vmatpush1.msra.mxu0 0.0
    %484 = vmatprep.mubr.f32.mxu0 0.0
    %485 = vmatmul.mubr.f32.gmra.mrb[0].mxu0 %v412
    %v486 = vpop.f32.mrb[0].mxu0
    %v487 = vadd.f32 0.0, %v486
    %v488 = vpop.f32.mrb[0].mxu0
    %489 = vmatprep.mubr.f32.mxu0 0.0
    %490 = vmatmul.mubr.f32.gmra.mrb[0].mxu0 %v415
    %v491 = vpop.f32.mrb[0].mxu0
    %v492 = vadd.f32 0.0, %v491
    %v493 = vpop.f32.mrb[0].mxu0
    %494 = vdwg.mxu0
    %v495 = vld [vmem:[%s6] sm:$0xff]
    %v496 = vld [vmem:[%s6 + $0x8] sm:$0xff]
    %497 = vrot.lane.b32.xlu0 %v280, 112
    %v498 = vpop.permute.xlu0 %497
    %499 = vrot.lane.b32.xlu0 %v285, 112
    %v500 = vpop.permute.xlu0 %499
    %501 = vrot.lane.b32.xlu0 %v280, 80
    %v502 = vpop.permute.xlu0 %501
    %503 = vrot.lane.b32.xlu0 %v285, 80
    %v504 = vpop.permute.xlu0 %503
    %v505 = vsel %vm294, %v498, 0
    %v507 = vsel %vm294, %v500, 0
    %v509 = vsel %vm294, %v502, 0
    %v511 = vsel %vm294, %v504, 0
    %513 = vmatprep.subr.mxu0 0.0
    %514 = vmatpush1.xpose.msra.mxu0 %v509
    %515 = vmatprep.subr.mxu0 0.0
    %516 = vmatpush1.xpose.msra.mxu0 %v511
    %517 = vmatprep.subr.mxu0 0.0
    %518 = vmatpush1.xpose.msra.mxu0 0.0
    %519 = vmatprep.subr.mxu0 0.0
    %520 = vmatpush1.xpose.msra.mxu0 0.0
    %521 = vmatprep.subr.mxu0 0.0
    %522 = vmatpush1.xpose.msra.mxu0 0.0
    %523 = vmatprep.subr.mxu0 0.0
    %524 = vmatpush1.xpose.msra.mxu0 0.0
    %525 = vmatprep.subr.mxu0 0.0
    %526 = vmatpush1.xpose.msra.mxu0 0.0
    %527 = vmatprep.subr.mxu0 0.0
    %528 = vmatpush1.xpose.msra.mxu0 0.0
    %529 = vmatprep.subr.mxu0 0.0
    %530 = vmatpush1.xpose.msra.mxu0 0.0
    %531 = vmatprep.subr.mxu0 0.0
    %532 = vmatpush1.xpose.msra.mxu0 0.0
    %533 = vmatprep.subr.mxu0 0.0
    %534 = vmatpush1.xpose.msra.mxu0 0.0
    %535 = vmatprep.subr.mxu0 0.0
    %536 = vmatpush1.xpose.msra.mxu0 0.0
    %537 = vmatprep.subr.mxu0 0.0
    %538 = vmatpush1.xpose.msra.mxu0 0.0
    %539 = vmatprep.subr.mxu0 0.0
    %540 = vmatpush1.xpose.msra.mxu0 0.0
    %541 = vmatprep.subr.mxu0 0.0
    %542 = vmatpush1.xpose.msra.mxu0 0.0
    %543 = vmatprep.subr.mxu0 0.0
    %544 = vmatpush1.xpose.msra.mxu0 0.0
    %545 = vmatprep.subr.mxu0 0.0
    %546 = vmatpush1.xpose.msra.mxu0 0.0
    %547 = vmatprep.subr.mxu0 0.0
    %548 = vmatpush1.xpose.msra.mxu0 0.0
    %549 = vmatprep.subr.mxu0 0.0
    %550 = vmatpush1.xpose.msra.mxu0 0.0
    %551 = vmatprep.subr.mxu0 0.0
    %552 = vmatpush1.xpose.msra.mxu0 0.0
    %553 = vmatprep.subr.mxu0 0.0
    %554 = vmatpush1.xpose.msra.mxu0 0.0
    %555 = vmatprep.subr.mxu0 0.0
    %556 = vmatpush1.xpose.msra.mxu0 0.0
    %557 = vmatprep.subr.mxu0 0.0
    %558 = vmatpush1.xpose.msra.mxu0 0.0
    %559 = vmatprep.subr.mxu0 0.0
    %560 = vmatpush1.xpose.msra.mxu0 0.0
    %561 = vmatprep.subr.mxu0 0.0
    %562 = vmatpush1.xpose.msra.mxu0 0.0
    %563 = vmatprep.subr.mxu0 0.0
    %564 = vmatpush1.xpose.msra.mxu0 0.0
    %565 = vmatprep.subr.mxu0 0.0
    %566 = vmatpush1.xpose.msra.mxu0 0.0
    %567 = vmatprep.subr.mxu0 0.0
    %568 = vmatpush1.xpose.msra.mxu0 0.0
    %569 = vmatprep.subr.mxu0 0.0
    %570 = vmatpush1.xpose.msra.mxu0 0.0
    %571 = vmatprep.subr.mxu0 0.0
    %572 = vmatpush1.xpose.msra.mxu0 0.0
    %573 = vmatprep.subr.mxu0 0.0
    %574 = vmatpush1.xpose.msra.mxu0 0.0
    %575 = vmatprep.subr.mxu0 0.0
    %576 = vmatpush1.xpose.msra.mxu0 0.0
    %577 = vmatprep.mubr.f32.mxu0 0.0
    %578 = vmatmul.mubr.f32.gmra.mrb[0].mxu0 %v505
    %v579 = vpop.f32.mrb[0].mxu0
    %v580 = vadd.f32 0.0, %v579
    %v581 = vpop.f32.mrb[0].mxu0
    %582 = vmatprep.mubr.f32.mxu0 0.0
    %583 = vmatmul.mubr.f32.gmra.mrb[0].mxu0 %v507
    %v584 = vpop.f32.mrb[0].mxu0
    %v585 = vadd.f32 0.0, %v584
    %v586 = vpop.f32.mrb[0].mxu0
    %587 = vdwg.mxu0
    %v588 = vmul.f32 %v580, 0.25
    %v589 = vmul.f32 %v585, 0.25
    %v590 = vadd.f32 %v588, %v155
    %v591 = vadd.f32 %v589, %v156
    %v592 = vsel %vm382, %v590, -inf
    %593 = vmax.xlane.f32.xlu0 %v592
    %v594 = vpop.xlane.xlu0 %593
    %v595 = vsel %vm386, %v591, -inf
    %596 = vmax.xlane.f32.xlu0 %v595
    %v597 = vpop.xlane.xlu0 %596
    %v598 = vsub.f32 %v590, %v594
    %v599 = vsub.f32 %v591, %v597
    %v600 = vmul.f32 %v598, 1.442695
    %v601 = vpow.pop %v600
    %v602 = vmul.f32 %v599, 1.442695
    %v603 = vpow.pop %v602
    %v604 = vsel %vm382, %v601, 0.0
    %605 = vadd.xlane.f32.xlu0 %v604
    %v606 = vpop.xlane.xlu0 %605
    %v607 = vsel %vm386, %v603, 0.0
    %608 = vadd.xlane.f32.xlu0 %v607
    %v609 = vpop.xlane.xlu0 %608
    %v610 = vrcp.pop %v606
    %v611 = vrcp.pop %v609
    %v612 = vmul.f32 %v601, %v610
    %v613 = vmul.f32 %v603, %v611
    %614 = vrot.lane.b32.xlu0 %v280, 48
    %v615 = vpop.permute.xlu0 %614
    %616 = vrot.lane.b32.xlu0 %v285, 48
    %v617 = vpop.permute.xlu0 %616
    %v620 = vsel %vm382, %v612, 0
    %v623 = vsel %vm382, %v613, 0
    %v625 = vsel %vm417, %v617, 0
    %627 = vmatprep.subr.mxu0 0.0
    %628 = vmatpush1.msra.mxu0 %v615
    %629 = vmatprep.subr.mxu0 0.0
    %630 = vmatpush1.msra.mxu0 %v625
    %631 = vmatprep.subr.mxu0 0.0
    %632 = vmatpush1.msra.mxu0 0.0
    %633 = vmatprep.subr.mxu0 0.0
    %634 = vmatpush1.msra.mxu0 0.0
    %635 = vmatprep.subr.mxu0 0.0
    %636 = vmatpush1.msra.mxu0 0.0
    %637 = vmatprep.subr.mxu0 0.0
    %638 = vmatpush1.msra.mxu0 0.0
    %639 = vmatprep.subr.mxu0 0.0
    %640 = vmatpush1.msra.mxu0 0.0
    %641 = vmatprep.subr.mxu0 0.0
    %642 = vmatpush1.msra.mxu0 0.0
    %643 = vmatprep.subr.mxu0 0.0
    %644 = vmatpush1.msra.mxu0 0.0
    %645 = vmatprep.subr.mxu0 0.0
    %646 = vmatpush1.msra.mxu0 0.0
    %647 = vmatprep.subr.mxu0 0.0
    %648 = vmatpush1.msra.mxu0 0.0
    %649 = vmatprep.subr.mxu0 0.0
    %650 = vmatpush1.msra.mxu0 0.0
    %651 = vmatprep.subr.mxu0 0.0
    %652 = vmatpush1.msra.mxu0 0.0
    %653 = vmatprep.subr.mxu0 0.0
    %654 = vmatpush1.msra.mxu0 0.0
    %655 = vmatprep.subr.mxu0 0.0
    %656 = vmatpush1.msra.mxu0 0.0
    %657 = vmatprep.subr.mxu0 0.0
    %658 = vmatpush1.msra.mxu0 0.0
    %659 = vmatprep.subr.mxu0 0.0
    %660 = vmatpush1.msra.mxu0 0.0
    %661 = vmatprep.subr.mxu0 0.0
    %662 = vmatpush1.msra.mxu0 0.0
    %663 = vmatprep.subr.mxu0 0.0
    %664 = vmatpush1.msra.mxu0 0.0
    %665 = vmatprep.subr.mxu0 0.0
    %666 = vmatpush1.msra.mxu0 0.0
    %667 = vmatprep.subr.mxu0 0.0
    %668 = vmatpush1.msra.mxu0 0.0
    %669 = vmatprep.subr.mxu0 0.0
    %670 = vmatpush1.msra.mxu0 0.0
    %671 = vmatprep.subr.mxu0 0.0
    %672 = vmatpush1.msra.mxu0 0.0
    %673 = vmatprep.subr.mxu0 0.0
    %674 = vmatpush1.msra.mxu0 0.0
    %675 = vmatprep.subr.mxu0 0.0
    %676 = vmatpush1.msra.mxu0 0.0
    %677 = vmatprep.subr.mxu0 0.0
    %678 = vmatpush1.msra.mxu0 0.0
    %679 = vmatprep.subr.mxu0 0.0
    %680 = vmatpush1.msra.mxu0 0.0
    %681 = vmatprep.subr.mxu0 0.0
    %682 = vmatpush1.msra.mxu0 0.0
    %683 = vmatprep.subr.mxu0 0.0
    %684 = vmatpush1.msra.mxu0 0.0
    %685 = vmatprep.subr.mxu0 0.0
    %686 = vmatpush1.msra.mxu0 0.0
    %687 = vmatprep.subr.mxu0 0.0
    %688 = vmatpush1.msra.mxu0 0.0
    %689 = vmatprep.subr.mxu0 0.0
    %690 = vmatpush1.msra.mxu0 0.0
    %691 = vmatprep.mubr.f32.mxu0 0.0
    %692 = vmatmul.mubr.f32.gmra.mrb[0].mxu0 %v620
    %v693 = vpop.f32.mrb[0].mxu0
    %v694 = vadd.f32 0.0, %v693
    %v695 = vpop.f32.mrb[0].mxu0
    %696 = vmatprep.mubr.f32.mxu0 0.0
    %697 = vmatmul.mubr.f32.gmra.mrb[0].mxu0 %v623
    %v698 = vpop.f32.mrb[0].mxu0
    %v699 = vadd.f32 0.0, %v698
    %v700 = vpop.f32.mrb[0].mxu0
    %701 = vdwg.mxu0
    %s702 = scalar_lea.vmem %s6, 16
    %v703 = vld [vmem:[%s702] sm:$0xff]
    %v704 = vld [vmem:[%s702 + $0x8] sm:$0xff]
    %v706 = vsel %vm294, %v694, 0
    %v709 = vsel %vm294, %v699, 0
    %711 = vmatprep.subr.mxu0 0.0
    %712 = vmatpush1.msra.mxu0 %v703
    %713 = vmatprep.subr.mxu0 0.0
    %714 = vmatpush1.msra.mxu0 %v704
    %715 = vmatprep.subr.mxu0 0.0
    %716 = vmatpush1.msra.mxu0 0.0
    %717 = vmatprep.subr.mxu0 0.0
    %718 = vmatpush1.msra.mxu0 0.0
    %719 = vmatprep.subr.mxu0 0.0
    %720 = vmatpush1.msra.mxu0 0.0
    %721 = vmatprep.subr.mxu0 0.0
    %722 = vmatpush1.msra.mxu0 0.0
    %723 = vmatprep.subr.mxu0 0.0
    %724 = vmatpush1.msra.mxu0 0.0
    %725 = vmatprep.subr.mxu0 0.0
    %726 = vmatpush1.msra.mxu0 0.0
    %727 = vmatprep.subr.mxu0 0.0
    %728 = vmatpush1.msra.mxu0 0.0
    %729 = vmatprep.subr.mxu0 0.0
    %730 = vmatpush1.msra.mxu0 0.0
    %731 = vmatprep.subr.mxu0 0.0
    %732 = vmatpush1.msra.mxu0 0.0
    %733 = vmatprep.subr.mxu0 0.0
    %734 = vmatpush1.msra.mxu0 0.0
    %735 = vmatprep.subr.mxu0 0.0
    %736 = vmatpush1.msra.mxu0 0.0
    %737 = vmatprep.subr.mxu0 0.0
    %738 = vmatpush1.msra.mxu0 0.0
    %739 = vmatprep.subr.mxu0 0.0
    %740 = vmatpush1.msra.mxu0 0.0
    %741 = vmatprep.subr.mxu0 0.0
    %742 = vmatpush1.msra.mxu0 0.0
    %743 = vmatprep.subr.mxu0 0.0
    %744 = vmatpush1.msra.mxu0 0.0
    %745 = vmatprep.subr.mxu0 0.0
    %746 = vmatpush1.msra.mxu0 0.0
    %747 = vmatprep.subr.mxu0 0.0
    %748 = vmatpush1.msra.mxu0 0.0
    %749 = vmatprep.subr.mxu0 0.0
    %750 = vmatpush1.msra.mxu0 0.0
    %751 = vmatprep.subr.mxu0 0.0
    %752 = vmatpush1.msra.mxu0 0.0
    %753 = vmatprep.subr.mxu0 0.0
    %754 = vmatpush1.msra.mxu0 0.0
    %755 = vmatprep.subr.mxu0 0.0
    %756 = vmatpush1.msra.mxu0 0.0
    %757 = vmatprep.subr.mxu0 0.0
    %758 = vmatpush1.msra.mxu0 0.0
    %759 = vmatprep.subr.mxu0 0.0
    %760 = vmatpush1.msra.mxu0 0.0
    %761 = vmatprep.subr.mxu0 0.0
    %762 = vmatpush1.msra.mxu0 0.0
    %763 = vmatprep.subr.mxu0 0.0
    %764 = vmatpush1.msra.mxu0 0.0
    %765 = vmatprep.subr.mxu0 0.0
    %766 = vmatpush1.msra.mxu0 0.0
    %767 = vmatprep.subr.mxu0 0.0
    %768 = vmatpush1.msra.mxu0 0.0
    %769 = vmatprep.subr.mxu0 0.0
    %770 = vmatpush1.msra.mxu0 0.0
    %771 = vmatprep.subr.mxu0 0.0
    %772 = vmatpush1.msra.mxu0 0.0
    %773 = vmatprep.subr.mxu0 0.0
    %774 = vmatpush1.msra.mxu0 0.0
    %775 = vmatprep.mubr.f32.mxu0 0.0
    %776 = vmatmul.mubr.f32.gmra.mrb[0].mxu0 %v706
    %v777 = vpop.f32.mrb[0].mxu0
    %v778 = vadd.f32 0.0, %v777
    %v779 = vpop.f32.mrb[0].mxu0
    %780 = vmatprep.mubr.f32.mxu0 0.0
    %781 = vmatmul.mubr.f32.gmra.mrb[0].mxu0 %v709
    %v782 = vpop.f32.mrb[0].mxu0
    %v783 = vadd.f32 0.0, %v782
    %v784 = vpop.f32.mrb[0].mxu0
    %785 = vdwg.mxu0
    %v787 = vsel %vm294, %v487, 0
    %v790 = vsel %vm294, %v492, 0
    %792 = vmatprep.subr.mxu0 0.0
    %793 = vmatpush1.msra.mxu0 %v495
    %794 = vmatprep.subr.mxu0 0.0
    %795 = vmatpush1.msra.mxu0 %v496
    %796 = vmatprep.subr.mxu0 0.0
    %797 = vmatpush1.msra.mxu0 0.0
    %798 = vmatprep.subr.mxu0 0.0
    %799 = vmatpush1.msra.mxu0 0.0
    %800 = vmatprep.subr.mxu0 0.0
    %801 = vmatpush1.msra.mxu0 0.0
    %802 = vmatprep.subr.mxu0 0.0
    %803 = vmatpush1.msra.mxu0 0.0
    %804 = vmatprep.subr.mxu0 0.0
    %805 = vmatpush1.msra.mxu0 0.0
    %806 = vmatprep.subr.mxu0 0.0
    %807 = vmatpush1.msra.mxu0 0.0
    %808 = vmatprep.subr.mxu0 0.0
    %809 = vmatpush1.msra.mxu0 0.0
    %810 = vmatprep.subr.mxu0 0.0
    %811 = vmatpush1.msra.mxu0 0.0
    %812 = vmatprep.subr.mxu0 0.0
    %813 = vmatpush1.msra.mxu0 0.0
    %814 = vmatprep.subr.mxu0 0.0
    %815 = vmatpush1.msra.mxu0 0.0
    %816 = vmatprep.subr.mxu0 0.0
    %817 = vmatpush1.msra.mxu0 0.0
    %818 = vmatprep.subr.mxu0 0.0
    %819 = vmatpush1.msra.mxu0 0.0
    %820 = vmatprep.subr.mxu0 0.0
    %821 = vmatpush1.msra.mxu0 0.0
    %822 = vmatprep.subr.mxu0 0.0
    %823 = vmatpush1.msra.mxu0 0.0
    %824 = vmatprep.subr.mxu0 0.0
    %825 = vmatpush1.msra.mxu0 0.0
    %826 = vmatprep.subr.mxu0 0.0
    %827 = vmatpush1.msra.mxu0 0.0
    %828 = vmatprep.subr.mxu0 0.0
    %829 = vmatpush1.msra.mxu0 0.0
    %830 = vmatprep.subr.mxu0 0.0
    %831 = vmatpush1.msra.mxu0 0.0
    %832 = vmatprep.subr.mxu0 0.0
    %833 = vmatpush1.msra.mxu0 0.0
    %834 = vmatprep.subr.mxu0 0.0
    %835 = vmatpush1.msra.mxu0 0.0
    %836 = vmatprep.subr.mxu0 0.0
    %837 = vmatpush1.msra.mxu0 0.0
    %838 = vmatprep.subr.mxu0 0.0
    %839 = vmatpush1.msra.mxu0 0.0
    %840 = vmatprep.subr.mxu0 0.0
    %841 = vmatpush1.msra.mxu0 0.0
    %842 = vmatprep.subr.mxu0 0.0
    %843 = vmatpush1.msra.mxu0 0.0
    %844 = vmatprep.subr.mxu0 0.0
    %845 = vmatpush1.msra.mxu0 0.0
    %846 = vmatprep.subr.mxu0 0.0
    %847 = vmatpush1.msra.mxu0 0.0
    %848 = vmatprep.subr.mxu0 0.0
    %849 = vmatpush1.msra.mxu0 0.0
    %850 = vmatprep.subr.mxu0 0.0
    %851 = vmatpush1.msra.mxu0 0.0
    %852 = vmatprep.subr.mxu0 0.0
    %853 = vmatpush1.msra.mxu0 0.0
    %854 = vmatprep.subr.mxu0 0.0
    %855 = vmatpush1.msra.mxu0 0.0
    %856 = vmatprep.mubr.f32.mxu0 0.0
    %857 = vmatmul.mubr.f32.gmra.mrb[0].mxu0 %v787
    %v858 = vpop.f32.mrb[0].mxu0
    %v859 = vadd.f32 %v778, %v858
    %v860 = vpop.f32.mrb[0].mxu0
    %861 = vmatprep.mubr.f32.mxu0 0.0
    %862 = vmatmul.mubr.f32.gmra.mrb[0].mxu0 %v790
    %v863 = vpop.f32.mrb[0].mxu0
    %v864 = vadd.f32 %v783, %v863
    %v865 = vpop.f32.mrb[0].mxu0
    %866 = vdwg.mxu0
    %v867 = vadd.f32 %v147, %v859
    %v868 = vadd.f32 %v152, %v864
    %v869 = vlaneseq
    %v870 = vshrl.u32 %v869, 7
    %v871 = vsub.s32 3, %v870
    %v872 = vrot.slane %v157, %v871
    %v873 = vadd.f32 %v867, %v872
    %v874 = vadd.f32 %v868, %v872
    %v875 = vsel %vm158, %v873, 0.0
    %876 = vadd.xlane.f32.xlu0 %v875
    %v877 = vpop.xlane.xlu0 %876
    %v878 = vsel %vm162, %v874, 0.0
    %879 = vadd.xlane.f32.xlu0 %v878
    %v880 = vpop.xlane.xlu0 %879
    %v881 = vmul.f32 %v877, %v166
    %v882 = vmul.f32 %v880, %v166
    %v883 = vsub.f32 %v873, %v881
    %v884 = vsub.f32 %v874, %v882
    %v885 = vmul.f32 %v883, %v883
    %v886 = vmul.f32 %v884, %v884
    %v887 = vsel %vm158, %v885, 0.0
    %888 = vadd.xlane.f32.xlu0 %v887
    %v889 = vpop.xlane.xlu0 %888
    %v890 = vsel %vm162, %v886, 0.0
    %891 = vadd.xlane.f32.xlu0 %v890
    %v892 = vpop.xlane.xlu0 %891
    %v893 = vmul.f32 %v889, %v166
    %v894 = vmul.f32 %v892, %v166
    %v895 = vadd.f32 %v893, 1e-12
    %v896 = vadd.f32 %v894, 1e-12
    %v897 = vrsqrt.pop %v895
    %v898 = vrsqrt.pop %v896
    %v899 = vmul.f32 %v883, %v897
    %v900 = vmul.f32 %v884, %v898
    %v901 = vlaneseq
    %v902 = vshrl.u32 %v901, 7
    %v903 = vsub.s32 4, %v902
    %v904 = vrot.slane %v157, %v903
    %v905 = vmul.f32 %v899, %v904
    %v906 = vmul.f32 %v900, %v904
    %v907 = vlaneseq
    %v908 = vshrl.u32 %v907, 7
    %v909 = vsub.s32 5, %v908
    %v910 = vrot.slane %v157, %v909
    %v911 = vadd.f32 %v905, %v910
    %v912 = vadd.f32 %v906, %v910
    %v913 = vld [vmem:[%s7] sm:$0xff]
    %v914 = vld [vmem:[%s7 + $0x8] sm:$0xff]
    %v915 = vld [vmem:[%s7 + $0x10] sm:$0xff]
    %v916 = vld [vmem:[%s7 + $0x18] sm:$0xff]
    %v917 = vlaneseq
    %v918 = vshrl.u32 %v917, 7
    %v919 = vsub.s32 6, %v918
    %v920 = vrot.slane %v157, %v919
    %v922 = vsel %vm158, %v911, 0
    %v925 = vsel %vm158, %v912, 0
    %927 = vmatprep.subr.mxu0 0.0
    %928 = vmatpush1.msra.mxu0 %v913
    %929 = vmatprep.subr.mxu0 0.0
    %930 = vmatpush1.msra.mxu0 %v914
    %931 = vmatprep.subr.mxu0 0.0
    %932 = vmatpush1.msra.mxu0 %v915
    %933 = vmatprep.subr.mxu0 0.0
    %934 = vmatpush1.msra.mxu0 %v916
    %935 = vmatprep.subr.mxu0 0.0
    %936 = vmatpush1.msra.mxu0 0.0
    %937 = vmatprep.subr.mxu0 0.0
    %938 = vmatpush1.msra.mxu0 0.0
    %939 = vmatprep.subr.mxu0 0.0
    %940 = vmatpush1.msra.mxu0 0.0
    %941 = vmatprep.subr.mxu0 0.0
    %942 = vmatpush1.msra.mxu0 0.0
    %943 = vmatprep.subr.mxu0 0.0
    %944 = vmatpush1.msra.mxu0 0.0
    %945 = vmatprep.subr.mxu0 0.0
    %946 = vmatpush1.msra.mxu0 0.0
    %947 = vmatprep.subr.mxu0 0.0
    %948 = vmatpush1.msra.mxu0 0.0
    %949 = vmatprep.subr.mxu0 0.0
    %950 = vmatpush1.msra.mxu0 0.0
    %951 = vmatprep.subr.mxu0 0.0
    %952 = vmatpush1.msra.mxu0 0.0
    %953 = vmatprep.subr.mxu0 0.0
    %954 = vmatpush1.msra.mxu0 0.0
    %955 = vmatprep.subr.mxu0 0.0
    %956 = vmatpush1.msra.mxu0 0.0
    %957 = vmatprep.subr.mxu0 0.0
    %958 = vmatpush1.msra.mxu0 0.0
    %959 = vmatprep.subr.mxu0 0.0
    %960 = vmatpush1.msra.mxu0 0.0
    %961 = vmatprep.subr.mxu0 0.0
    %962 = vmatpush1.msra.mxu0 0.0
    %963 = vmatprep.subr.mxu0 0.0
    %964 = vmatpush1.msra.mxu0 0.0
    %965 = vmatprep.subr.mxu0 0.0
    %966 = vmatpush1.msra.mxu0 0.0
    %967 = vmatprep.subr.mxu0 0.0
    %968 = vmatpush1.msra.mxu0 0.0
    %969 = vmatprep.subr.mxu0 0.0
    %970 = vmatpush1.msra.mxu0 0.0
    %971 = vmatprep.subr.mxu0 0.0
    %972 = vmatpush1.msra.mxu0 0.0
    %973 = vmatprep.subr.mxu0 0.0
    %974 = vmatpush1.msra.mxu0 0.0
    %975 = vmatprep.subr.mxu0 0.0
    %976 = vmatpush1.msra.mxu0 0.0
    %977 = vmatprep.subr.mxu0 0.0
    %978 = vmatpush1.msra.mxu0 0.0
    %979 = vmatprep.subr.mxu0 0.0
    %980 = vmatpush1.msra.mxu0 0.0
    %981 = vmatprep.subr.mxu0 0.0
    %982 = vmatpush1.msra.mxu0 0.0
    %983 = vmatprep.subr.mxu0 0.0
    %984 = vmatpush1.msra.mxu0 0.0
    %985 = vmatprep.subr.mxu0 0.0
    %986 = vmatpush1.msra.mxu0 0.0
    %987 = vmatprep.subr.mxu0 0.0
    %988 = vmatpush1.msra.mxu0 0.0
    %989 = vmatprep.subr.mxu0 0.0
    %990 = vmatpush1.msra.mxu0 0.0
    %991 = vmatprep.mubr.f32.mxu0 0.0
    %992 = vmatmul.mubr.f32.gmra.mrb[0].mxu0 %v922
    %v993 = vpop.f32.mrb[0].mxu0
    %v994 = vadd.f32 %v920, %v993
    %v995 = vpop.f32.mrb[0].mxu0
    %996 = vmatprep.mubr.f32.mxu0 0.0
    %997 = vmatmul.mubr.f32.gmra.mrb[0].mxu0 %v925
    %v998 = vpop.f32.mrb[0].mxu0
    %v999 = vadd.f32 %v920, %v998
    %v1000 = vpop.f32.mrb[0].mxu0
    %1001 = vdwg.mxu0
    %v1002 = vmul.f32 %v994, %v994
    %v1003 = vmul.f32 %v999, %v999
    %v1004 = vmul.f32 %v994, %v1002
    %v1005 = vmul.f32 %v999, %v1003
    %v1006 = vmul.f32 %v1004, 0.044715
    %v1007 = vmul.f32 %v1005, 0.044715
    %v1008 = vadd.f32 %v994, %v1006
    %v1009 = vadd.f32 %v999, %v1007
    %v1010 = vmul.f32 %v1008, 0.7978846
    %v1011 = vmul.f32 %v1009, 0.7978846
    %v1012 = vtanh.pop %v1010
    %v1013 = vtanh.pop %v1011
    %v1014 = vadd.f32 %v1012, 1.0
    %v1015 = vadd.f32 %v1013, 1.0
    %v1016 = vmul.f32 %v1014, 0.5
    %v1017 = vmul.f32 %v1015, 0.5
    %v1018 = vmul.f32 %v994, %v1016
    %v1019 = vmul.f32 %v999, %v1017
    %v1020 = vld [vmem:[%s8] sm:$0xff]
    %v1021 = vld [vmem:[%s8 + $0x8] sm:$0xff]
    %v1022 = vld [vmem:[%s8 + $0x10] sm:$0xff]
    %v1023 = vld [vmem:[%s8 + $0x18] sm:$0xff]
    %v1024 = vld [vmem:[%s8 + $0x20] sm:$0xff]
    %v1025 = vld [vmem:[%s8 + $0x28] sm:$0xff]
    %v1026 = vld [vmem:[%s8 + $0x30] sm:$0xff]
    %v1027 = vld [vmem:[%s8 + $0x38] sm:$0xff]
    %v1029 = vsel %vm73, %v1018, 0
    %v1032 = vsel %vm73, %v1019, 0
    %1034 = vmatprep.subr.mxu0 0.0
    %1035 = vmatpush1.msra.mxu0 %v1020
    %1036 = vmatprep.subr.mxu0 0.0
    %1037 = vmatpush1.msra.mxu0 %v1021
    %1038 = vmatprep.subr.mxu0 0.0
    %1039 = vmatpush1.msra.mxu0 %v1022
    %1040 = vmatprep.subr.mxu0 0.0
    %1041 = vmatpush1.msra.mxu0 %v1023
    %1042 = vmatprep.subr.mxu0 0.0
    %1043 = vmatpush1.msra.mxu0 %v1024
    %1044 = vmatprep.subr.mxu0 0.0
    %1045 = vmatpush1.msra.mxu0 %v1025
    %1046 = vmatprep.subr.mxu0 0.0
    %1047 = vmatpush1.msra.mxu0 %v1026
    %1048 = vmatprep.subr.mxu0 0.0
    %1049 = vmatpush1.msra.mxu0 %v1027
    %1050 = vmatprep.subr.mxu0 0.0
    %1051 = vmatpush1.msra.mxu0 0.0
    %1052 = vmatprep.subr.mxu0 0.0
    %1053 = vmatpush1.msra.mxu0 0.0
    %1054 = vmatprep.subr.mxu0 0.0
    %1055 = vmatpush1.msra.mxu0 0.0
    %1056 = vmatprep.subr.mxu0 0.0
    %1057 = vmatpush1.msra.mxu0 0.0
    %1058 = vmatprep.subr.mxu0 0.0
    %1059 = vmatpush1.msra.mxu0 0.0
    %1060 = vmatprep.subr.mxu0 0.0
    %1061 = vmatpush1.msra.mxu0 0.0
    %1062 = vmatprep.subr.mxu0 0.0
    %1063 = vmatpush1.msra.mxu0 0.0
    %1064 = vmatprep.subr.mxu0 0.0
    %1065 = vmatpush1.msra.mxu0 0.0
    %1066 = vmatprep.subr.mxu0 0.0
    %1067 = vmatpush1.msra.mxu0 0.0
    %1068 = vmatprep.subr.mxu0 0.0
    %1069 = vmatpush1.msra.mxu0 0.0
    %1070 = vmatprep.subr.mxu0 0.0
    %1071 = vmatpush1.msra.mxu0 0.0
    %1072 = vmatprep.subr.mxu0 0.0
    %1073 = vmatpush1.msra.mxu0 0.0
    %1074 = vmatprep.subr.mxu0 0.0
    %1075 = vmatpush1.msra.mxu0 0.0
    %1076 = vmatprep.subr.mxu0 0.0
    %1077 = vmatpush1.msra.mxu0 0.0
    %1078 = vmatprep.subr.mxu0 0.0
    %1079 = vmatpush1.msra.mxu0 0.0
    %1080 = vmatprep.subr.mxu0 0.0
    %1081 = vmatpush1.msra.mxu0 0.0
    %1082 = vmatprep.subr.mxu0 0.0
    %1083 = vmatpush1.msra.mxu0 0.0
    %1084 = vmatprep.subr.mxu0 0.0
    %1085 = vmatpush1.msra.mxu0 0.0
    %1086 = vmatprep.subr.mxu0 0.0
    %1087 = vmatpush1.msra.mxu0 0.0
    %1088 = vmatprep.subr.mxu0 0.0
    %1089 = vmatpush1.msra.mxu0 0.0
    %1090 = vmatprep.subr.mxu0 0.0
    %1091 = vmatpush1.msra.mxu0 0.0
    %1092 = vmatprep.subr.mxu0 0.0
    %1093 = vmatpush1.msra.mxu0 0.0
    %1094 = vmatprep.subr.mxu0 0.0
    %1095 = vmatpush1.msra.mxu0 0.0
    %1096 = vmatprep.subr.mxu0 0.0
    %1097 = vmatpush1.msra.mxu0 0.0
    %1098 = vmatprep.mubr.f32.mxu0 0.0
    %1099 = vmatmul.mubr.f32.gmra.mrb[0].mxu0 %v1029
    %v1100 = vpop.f32.mrb[0].mxu0
    %v1101 = vadd.f32 0.0, %v1100
    %v1102 = vpop.f32.mrb[0].mxu0
    %1103 = vmatprep.mubr.f32.mxu0 0.0
    %1104 = vmatmul.mubr.f32.gmra.mrb[0].mxu0 %v1032
    %v1105 = vpop.f32.mrb[0].mxu0
    %v1106 = vadd.f32 0.0, %v1105
    %v1107 = vpop.f32.mrb[0].mxu0
    %1108 = vdwg.mxu0
    %v1109 = vadd.f32 %v873, %v1101
    %v1110 = vadd.f32 %v874, %v1106
    %v1111 = vlaneseq
    %v1112 = vshrl.u32 %v1111, 7
    %v1113 = vsub.s32 7, %v1112
    %v1114 = vrot.slane %v157, %v1113
    %v1115 = vadd.f32 %v1109, %v1114
    %v1116 = vadd.f32 %v1110, %v1114
    %s1117 = scalar_lea.vmem %s9, 8
    %v1118 = vld [vmem:[%s1117] sm:$0xff]
    %v1119 = vsel %vm158, %v1115, 0.0
    %1120 = vadd.xlane.f32.xlu0 %v1119
    %v1121 = vpop.xlane.xlu0 %1120
    %v1122 = vsel %vm162, %v1116, 0.0
    %1123 = vadd.xlane.f32.xlu0 %v1122
    %v1124 = vpop.xlane.xlu0 %1123
    %v1125 = vmul.f32 %v1121, %v166
    %v1126 = vmul.f32 %v1124, %v166
    %v1127 = vsub.f32 %v1115, %v1125
    %v1128 = vsub.f32 %v1116, %v1126
    %v1129 = vmul.f32 %v1127, %v1127
    %v1130 = vmul.f32 %v1128, %v1128
    %v1131 = vsel %vm158, %v1129, 0.0
    %1132 = vadd.xlane.f32.xlu0 %v1131
    %v1133 = vpop.xlane.xlu0 %1132
    %v1134 = vsel %vm162, %v1130, 0.0
    %1135 = vadd.xlane.f32.xlu0 %v1134
    %v1136 = vpop.xlane.xlu0 %1135
    %v1137 = vmul.f32 %v1133, %v166
    %v1138 = vmul.f32 %v1136, %v166
    %v1139 = vadd.f32 %v1137, 1e-12
    %v1140 = vadd.f32 %v1138, 1e-12
    %v1141 = vrsqrt.pop %v1139
    %v1142 = vrsqrt.pop %v1140
    %v1143 = vmul.f32 %v1127, %v1141
    %v1144 = vmul.f32 %v1128, %v1142
    %v1145 = vlaneseq
    %v1146 = vshrl.u32 %v1145, 7
    %v1147 = vsub.s32 0, %v1146
    %v1148 = vrot.slane %v1118, %v1147
    %v1149 = vmul.f32 %v1143, %v1148
    %v1150 = vmul.f32 %v1144, %v1148
    %v1151 = vlaneseq
    %v1152 = vshrl.u32 %v1151, 7
    %v1153 = vsub.s32 1, %v1152
    %v1154 = vrot.slane %v1118, %v1153
    %v1155 = vadd.f32 %v1149, %v1154
    %v1156 = vadd.f32 %v1150, %v1154
    %s1157 = scalar_lea.vmem %s5, 32
    %v1158 = vld [vmem:[%s1157] sm:$0xff]
    %v1159 = vld [vmem:[%s1157 + $0x8] sm:$0xff]
    %v1160 = vld [vmem:[%s1157 + $0x10] sm:$0xff]
    %v1161 = vld [vmem:[%s1157 + $0x18] sm:$0xff]
    %v1162 = vlaneseq
    %v1163 = vshrl.u32 %v1162, 7
    %v1164 = vsub.s32 2, %v1163
    %v1165 = vrot.slane %v1118, %v1164
    %v1167 = vsel %vm158, %v1155, 0
    %v1170 = vsel %vm158, %v1156, 0
    %1172 = vmatprep.subr.mxu0 0.0
    %1173 = vmatpush1.msra.mxu0 %v1158
    %1174 = vmatprep.subr.mxu0 0.0
    %1175 = vmatpush1.msra.mxu0 %v1159
    %1176 = vmatprep.subr.mxu0 0.0
    %1177 = vmatpush1.msra.mxu0 %v1160
    %1178 = vmatprep.subr.mxu0 0.0
    %1179 = vmatpush1.msra.mxu0 %v1161
    %1180 = vmatprep.subr.mxu0 0.0
    %1181 = vmatpush1.msra.mxu0 0.0
    %1182 = vmatprep.subr.mxu0 0.0
    %1183 = vmatpush1.msra.mxu0 0.0
    %1184 = vmatprep.subr.mxu0 0.0
    %1185 = vmatpush1.msra.mxu0 0.0
    %1186 = vmatprep.subr.mxu0 0.0
    %1187 = vmatpush1.msra.mxu0 0.0
    %1188 = vmatprep.subr.mxu0 0.0
    %1189 = vmatpush1.msra.mxu0 0.0
    %1190 = vmatprep.subr.mxu0 0.0
    %1191 = vmatpush1.msra.mxu0 0.0
    %1192 = vmatprep.subr.mxu0 0.0
    %1193 = vmatpush1.msra.mxu0 0.0
    %1194 = vmatprep.subr.mxu0 0.0
    %1195 = vmatpush1.msra.mxu0 0.0
    %1196 = vmatprep.subr.mxu0 0.0
    %1197 = vmatpush1.msra.mxu0 0.0
    %1198 = vmatprep.subr.mxu0 0.0
    %1199 = vmatpush1.msra.mxu0 0.0
    %1200 = vmatprep.subr.mxu0 0.0
    %1201 = vmatpush1.msra.mxu0 0.0
    %1202 = vmatprep.subr.mxu0 0.0
    %1203 = vmatpush1.msra.mxu0 0.0
    %1204 = vmatprep.subr.mxu0 0.0
    %1205 = vmatpush1.msra.mxu0 0.0
    %1206 = vmatprep.subr.mxu0 0.0
    %1207 = vmatpush1.msra.mxu0 0.0
    %1208 = vmatprep.subr.mxu0 0.0
    %1209 = vmatpush1.msra.mxu0 0.0
    %1210 = vmatprep.subr.mxu0 0.0
    %1211 = vmatpush1.msra.mxu0 0.0
    %1212 = vmatprep.subr.mxu0 0.0
    %1213 = vmatpush1.msra.mxu0 0.0
    %1214 = vmatprep.subr.mxu0 0.0
    %1215 = vmatpush1.msra.mxu0 0.0
    %1216 = vmatprep.subr.mxu0 0.0
    %1217 = vmatpush1.msra.mxu0 0.0
    %1218 = vmatprep.subr.mxu0 0.0
    %1219 = vmatpush1.msra.mxu0 0.0
    %1220 = vmatprep.subr.mxu0 0.0
    %1221 = vmatpush1.msra.mxu0 0.0
    %1222 = vmatprep.subr.mxu0 0.0
    %1223 = vmatpush1.msra.mxu0 0.0
    %1224 = vmatprep.subr.mxu0 0.0
    %1225 = vmatpush1.msra.mxu0 0.0
    %1226 = vmatprep.subr.mxu0 0.0
    %1227 = vmatpush1.msra.mxu0 0.0
    %1228 = vmatprep.subr.mxu0 0.0
    %1229 = vmatpush1.msra.mxu0 0.0
    %1230 = vmatprep.subr.mxu0 0.0
    %1231 = vmatpush1.msra.mxu0 0.0
    %1232 = vmatprep.subr.mxu0 0.0
    %1233 = vmatpush1.msra.mxu0 0.0
    %1234 = vmatprep.subr.mxu0 0.0
    %1235 = vmatpush1.msra.mxu0 0.0
    %1236 = vmatprep.mubr.f32.mxu0 0.0
    %1237 = vmatmul.mubr.f32.gmra.mrb[0].mxu0 %v1167
    %v1238 = vpop.f32.mrb[0].mxu0
    %v1239 = vadd.f32 %v1165, %v1238
    %v1240 = vpop.f32.mrb[0].mxu0
    %1241 = vmatprep.mubr.f32.mxu0 0.0
    %1242 = vmatmul.mubr.f32.gmra.mrb[0].mxu0 %v1170
    %v1243 = vpop.f32.mrb[0].mxu0
    %v1244 = vadd.f32 %v1165, %v1243
    %v1245 = vpop.f32.mrb[0].mxu0
    %1246 = vdwg.mxu0
    %1249 = vrot.lane.b32.xlu0 %v1239, 96
    %v1250 = vpop.permute.xlu0 %1249
    %1251 = vrot.lane.b32.xlu0 %v1244, 96
    %v1252 = vpop.permute.xlu0 %1251
    %v1253 = vsel %vm294, %v1239, 0
    %v1255 = vsel %vm294, %v1244, 0
    %v1257 = vsel %vm294, %v1250, 0
    %v1259 = vsel %vm294, %v1252, 0
    %1261 = vmatprep.subr.mxu0 0.0
    %1262 = vmatpush1.xpose.msra.mxu0 %v1257
    %1263 = vmatprep.subr.mxu0 0.0
    %1264 = vmatpush1.xpose.msra.mxu0 %v1259
    %1265 = vmatprep.subr.mxu0 0.0
    %1266 = vmatpush1.xpose.msra.mxu0 0.0
    %1267 = vmatprep.subr.mxu0 0.0
    %1268 = vmatpush1.xpose.msra.mxu0 0.0
    %1269 = vmatprep.subr.mxu0 0.0
    %1270 = vmatpush1.xpose.msra.mxu0 0.0
    %1271 = vmatprep.subr.mxu0 0.0
    %1272 = vmatpush1.xpose.msra.mxu0 0.0
    %1273 = vmatprep.subr.mxu0 0.0
    %1274 = vmatpush1.xpose.msra.mxu0 0.0
    %1275 = vmatprep.subr.mxu0 0.0
    %1276 = vmatpush1.xpose.msra.mxu0 0.0
    %1277 = vmatprep.subr.mxu0 0.0
    %1278 = vmatpush1.xpose.msra.mxu0 0.0
    %1279 = vmatprep.subr.mxu0 0.0
    %1280 = vmatpush1.xpose.msra.mxu0 0.0
    %1281 = vmatprep.subr.mxu0 0.0
    %1282 = vmatpush1.xpose.msra.mxu0 0.0
    %1283 = vmatprep.subr.mxu0 0.0
    %1284 = vmatpush1.xpose.msra.mxu0 0.0
    %1285 = vmatprep.subr.mxu0 0.0
    %1286 = vmatpush1.xpose.msra.mxu0 0.0
    %1287 = vmatprep.subr.mxu0 0.0
    %1288 = vmatpush1.xpose.msra.mxu0 0.0
    %1289 = vmatprep.subr.mxu0 0.0
    %1290 = vmatpush1.xpose.msra.mxu0 0.0
    %1291 = vmatprep.subr.mxu0 0.0
    %1292 = vmatpush1.xpose.msra.mxu0 0.0
    %1293 = vmatprep.subr.mxu0 0.0
    %1294 = vmatpush1.xpose.msra.mxu0 0.0
    %1295 = vmatprep.subr.mxu0 0.0
    %1296 = vmatpush1.xpose.msra.mxu0 0.0
    %1297 = vmatprep.subr.mxu0 0.0
    %1298 = vmatpush1.xpose.msra.mxu0 0.0
    %1299 = vmatprep.subr.mxu0 0.0
    %1300 = vmatpush1.xpose.msra.mxu0 0.0
    %1301 = vmatprep.subr.mxu0 0.0
    %1302 = vmatpush1.xpose.msra.mxu0 0.0
    %1303 = vmatprep.subr.mxu0 0.0
    %1304 = vmatpush1.xpose.msra.mxu0 0.0
    %1305 = vmatprep.subr.mxu0 0.0
    %1306 = vmatpush1.xpose.msra.mxu0 0.0
    %1307 = vmatprep.subr.mxu0 0.0
    %1308 = vmatpush1.xpose.msra.mxu0 0.0
    %1309 = vmatprep.subr.mxu0 0.0
    %1310 = vmatpush1.xpose.msra.mxu0 0.0
    %1311 = vmatprep.subr.mxu0 0.0
    %1312 = vmatpush1.xpose.msra.mxu0 0.0
    %1313 = vmatprep.subr.mxu0 0.0
    %1314 = vmatpush1.xpose.msra.mxu0 0.0
    %1315 = vmatprep.subr.mxu0 0.0
    %1316 = vmatpush1.xpose.msra.mxu0 0.0
    %1317 = vmatprep.subr.mxu0 0.0
    %1318 = vmatpush1.xpose.msra.mxu0 0.0
    %1319 = vmatprep.subr.mxu0 0.0
    %1320 = vmatpush1.xpose.msra.mxu0 0.0
    %1321 = vmatprep.subr.mxu0 0.0
    %1322 = vmatpush1.xpose.msra.mxu0 0.0
    %1323 = vmatprep.subr.mxu0 0.0
    %1324 = vmatpush1.xpose.msra.mxu0 0.0
    %1325 = vmatprep.mubr.f32.mxu0 0.0
    %1326 = vmatmul.mubr.f32.gmra.mrb[0].mxu0 %v1253
    %v1327 = vpop.f32.mrb[0].mxu0
    %v1328 = vadd.f32 0.0, %v1327
    %v1329 = vpop.f32.mrb[0].mxu0
    %1330 = vmatprep.mubr.f32.mxu0 0.0
    %1331 = vmatmul.mubr.f32.gmra.mrb[0].mxu0 %v1255
    %v1332 = vpop.f32.mrb[0].mxu0
    %v1333 = vadd.f32 0.0, %v1332
    %v1334 = vpop.f32.mrb[0].mxu0
    %1335 = vdwg.mxu0
    %v1336 = vmul.f32 %v1328, 0.25
    %v1337 = vmul.f32 %v1333, 0.25
    %v1338 = vadd.f32 %v1336, %v155
    %v1339 = vadd.f32 %v1337, %v156
    %v1340 = vsel %vm382, %v1338, -inf
    %1341 = vmax.xlane.f32.xlu0 %v1340
    %v1342 = vpop.xlane.xlu0 %1341
    %v1343 = vsel %vm386, %v1339, -inf
    %1344 = vmax.xlane.f32.xlu0 %v1343
    %v1345 = vpop.xlane.xlu0 %1344
    %v1346 = vsub.f32 %v1338, %v1342
    %v1347 = vsub.f32 %v1339, %v1345
    %v1348 = vmul.f32 %v1346, 1.442695
    %v1349 = vpow.pop %v1348
    %v1350 = vmul.f32 %v1347, 1.442695
    %v1351 = vpow.pop %v1350
    %v1352 = vsel %vm382, %v1349, 0.0
    %1353 = vadd.xlane.f32.xlu0 %v1352
    %v1354 = vpop.xlane.xlu0 %1353
    %v1355 = vsel %vm386, %v1351, 0.0
    %1356 = vadd.xlane.f32.xlu0 %v1355
    %v1357 = vpop.xlane.xlu0 %1356
    %v1358 = vrcp.pop %v1354
    %v1359 = vrcp.pop %v1357
    %v1360 = vmul.f32 %v1349, %v1358
    %v1361 = vmul.f32 %v1351, %v1359
    %1362 = vrot.lane.b32.xlu0 %v1239, 64
    %v1363 = vpop.permute.xlu0 %1362
    %1364 = vrot.lane.b32.xlu0 %v1244, 64
    %v1365 = vpop.permute.xlu0 %1364
    %v1368 = vsel %vm382, %v1360, 0
    %v1371 = vsel %vm382, %v1361, 0
    %v1373 = vsel %vm417, %v1365, 0
    %1375 = vmatprep.subr.mxu0 0.0
    %1376 = vmatpush1.msra.mxu0 %v1363
    %1377 = vmatprep.subr.mxu0 0.0
    %1378 = vmatpush1.msra.mxu0 %v1373
    %1379 = vmatprep.subr.mxu0 0.0
    %1380 = vmatpush1.msra.mxu0 0.0
    %1381 = vmatprep.subr.mxu0 0.0
    %1382 = vmatpush1.msra.mxu0 0.0
    %1383 = vmatprep.subr.mxu0 0.0
    %1384 = vmatpush1.msra.mxu0 0.0
    %1385 = vmatprep.subr.mxu0 0.0
    %1386 = vmatpush1.msra.mxu0 0.0
    %1387 = vmatprep.subr.mxu0 0.0
    %1388 = vmatpush1.msra.mxu0 0.0
    %1389 = vmatprep.subr.mxu0 0.0
    %1390 = vmatpush1.msra.mxu0 0.0
    %1391 = vmatprep.subr.mxu0 0.0
    %1392 = vmatpush1.msra.mxu0 0.0
    %1393 = vmatprep.subr.mxu0 0.0
    %1394 = vmatpush1.msra.mxu0 0.0
    %1395 = vmatprep.subr.mxu0 0.0
    %1396 = vmatpush1.msra.mxu0 0.0
    %1397 = vmatprep.subr.mxu0 0.0
    %1398 = vmatpush1.msra.mxu0 0.0
    %1399 = vmatprep.subr.mxu0 0.0
    %1400 = vmatpush1.msra.mxu0 0.0
    %1401 = vmatprep.subr.mxu0 0.0
    %1402 = vmatpush1.msra.mxu0 0.0
    %1403 = vmatprep.subr.mxu0 0.0
    %1404 = vmatpush1.msra.mxu0 0.0
    %1405 = vmatprep.subr.mxu0 0.0
    %1406 = vmatpush1.msra.mxu0 0.0
    %1407 = vmatprep.subr.mxu0 0.0
    %1408 = vmatpush1.msra.mxu0 0.0
    %1409 = vmatprep.subr.mxu0 0.0
    %1410 = vmatpush1.msra.mxu0 0.0
    %1411 = vmatprep.subr.mxu0 0.0
    %1412 = vmatpush1.msra.mxu0 0.0
    %1413 = vmatprep.subr.mxu0 0.0
    %1414 = vmatpush1.msra.mxu0 0.0
    %1415 = vmatprep.subr.mxu0 0.0
    %1416 = vmatpush1.msra.mxu0 0.0
    %1417 = vmatprep.subr.mxu0 0.0
    %1418 = vmatpush1.msra.mxu0 0.0
    %1419 = vmatprep.subr.mxu0 0.0
    %1420 = vmatpush1.msra.mxu0 0.0
    %1421 = vmatprep.subr.mxu0 0.0
    %1422 = vmatpush1.msra.mxu0 0.0
    %1423 = vmatprep.subr.mxu0 0.0
    %1424 = vmatpush1.msra.mxu0 0.0
    %1425 = vmatprep.subr.mxu0 0.0
    %1426 = vmatpush1.msra.mxu0 0.0
    %1427 = vmatprep.subr.mxu0 0.0
    %1428 = vmatpush1.msra.mxu0 0.0
    %1429 = vmatprep.subr.mxu0 0.0
    %1430 = vmatpush1.msra.mxu0 0.0
    %1431 = vmatprep.subr.mxu0 0.0
    %1432 = vmatpush1.msra.mxu0 0.0
    %1433 = vmatprep.subr.mxu0 0.0
    %1434 = vmatpush1.msra.mxu0 0.0
    %1435 = vmatprep.subr.mxu0 0.0
    %1436 = vmatpush1.msra.mxu0 0.0
    %1437 = vmatprep.subr.mxu0 0.0
    %1438 = vmatpush1.msra.mxu0 0.0
    %1439 = vmatprep.mubr.f32.mxu0 0.0
    %1440 = vmatmul.mubr.f32.gmra.mrb[0].mxu0 %v1368
    %v1441 = vpop.f32.mrb[0].mxu0
    %v1442 = vadd.f32 0.0, %v1441
    %v1443 = vpop.f32.mrb[0].mxu0
    %1444 = vmatprep.mubr.f32.mxu0 0.0
    %1445 = vmatmul.mubr.f32.gmra.mrb[0].mxu0 %v1371
    %v1446 = vpop.f32.mrb[0].mxu0
    %v1447 = vadd.f32 0.0, %v1446
    %v1448 = vpop.f32.mrb[0].mxu0
    %1449 = vdwg.mxu0
    %s1450 = scalar_lea.vmem %s6, 32
    %v1451 = vld [vmem:[%s1450] sm:$0xff]
    %v1452 = vld [vmem:[%s1450 + $0x8] sm:$0xff]
    %1453 = vrot.lane.b32.xlu0 %v1239, 112
    %v1454 = vpop.permute.xlu0 %1453
    %1455 = vrot.lane.b32.xlu0 %v1244, 112
    %v1456 = vpop.permute.xlu0 %1455
    %1457 = vrot.lane.b32.xlu0 %v1239, 80
    %v1458 = vpop.permute.xlu0 %1457
    %1459 = vrot.lane.b32.xlu0 %v1244, 80
    %v1460 = vpop.permute.xlu0 %1459
    %v1461 = vsel %vm294, %v1454, 0
    %v1463 = vsel %vm294, %v1456, 0
    %v1465 = vsel %vm294, %v1458, 0
    %v1467 = vsel %vm294, %v1460, 0
    %1469 = vmatprep.subr.mxu0 0.0
    %1470 = vmatpush1.xpose.msra.mxu0 %v1465
    %1471 = vmatprep.subr.mxu0 0.0
    %1472 = vmatpush1.xpose.msra.mxu0 %v1467
    %1473 = vmatprep.subr.mxu0 0.0
    %1474 = vmatpush1.xpose.msra.mxu0 0.0
    %1475 = vmatprep.subr.mxu0 0.0
    %1476 = vmatpush1.xpose.msra.mxu0 0.0
    %1477 = vmatprep.subr.mxu0 0.0
    %1478 = vmatpush1.xpose.msra.mxu0 0.0
    %1479 = vmatprep.subr.mxu0 0.0
    %1480 = vmatpush1.xpose.msra.mxu0 0.0
    %1481 = vmatprep.subr.mxu0 0.0
    %1482 = vmatpush1.xpose.msra.mxu0 0.0
    %1483 = vmatprep.subr.mxu0 0.0
    %1484 = vmatpush1.xpose.msra.mxu0 0.0
    %1485 = vmatprep.subr.mxu0 0.0
    %1486 = vmatpush1.xpose.msra.mxu0 0.0
    %1487 = vmatprep.subr.mxu0 0.0
    %1488 = vmatpush1.xpose.msra.mxu0 0.0
    %1489 = vmatprep.subr.mxu0 0.0
    %1490 = vmatpush1.xpose.msra.mxu0 0.0
    %1491 = vmatprep.subr.mxu0 0.0
    %1492 = vmatpush1.xpose.msra.mxu0 0.0
    %1493 = vmatprep.subr.mxu0 0.0
    %1494 = vmatpush1.xpose.msra.mxu0 0.0
    %1495 = vmatprep.subr.mxu0 0.0
    %1496 = vmatpush1.xpose.msra.mxu0 0.0
    %1497 = vmatprep.subr.mxu0 0.0
    %1498 = vmatpush1.xpose.msra.mxu0 0.0
    %1499 = vmatprep.subr.mxu0 0.0
    %1500 = vmatpush1.xpose.msra.mxu0 0.0
    %1501 = vmatprep.subr.mxu0 0.0
    %1502 = vmatpush1.xpose.msra.mxu0 0.0
    %1503 = vmatprep.subr.mxu0 0.0
    %1504 = vmatpush1.xpose.msra.mxu0 0.0
    %1505 = vmatprep.subr.mxu0 0.0
    %1506 = vmatpush1.xpose.msra.mxu0 0.0
    %1507 = vmatprep.subr.mxu0 0.0
    %1508 = vmatpush1.xpose.msra.mxu0 0.0
    %1509 = vmatprep.subr.mxu0 0.0
    %1510 = vmatpush1.xpose.msra.mxu0 0.0
    %1511 = vmatprep.subr.mxu0 0.0
    %1512 = vmatpush1.xpose.msra.mxu0 0.0
    %1513 = vmatprep.subr.mxu0 0.0
    %1514 = vmatpush1.xpose.msra.mxu0 0.0
    %1515 = vmatprep.subr.mxu0 0.0
    %1516 = vmatpush1.xpose.msra.mxu0 0.0
    %1517 = vmatprep.subr.mxu0 0.0
    %1518 = vmatpush1.xpose.msra.mxu0 0.0
    %1519 = vmatprep.subr.mxu0 0.0
    %1520 = vmatpush1.xpose.msra.mxu0 0.0
    %1521 = vmatprep.subr.mxu0 0.0
    %1522 = vmatpush1.xpose.msra.mxu0 0.0
    %1523 = vmatprep.subr.mxu0 0.0
    %1524 = vmatpush1.xpose.msra.mxu0 0.0
    %1525 = vmatprep.subr.mxu0 0.0
    %1526 = vmatpush1.xpose.msra.mxu0 0.0
    %1527 = vmatprep.subr.mxu0 0.0
    %1528 = vmatpush1.xpose.msra.mxu0 0.0
    %1529 = vmatprep.subr.mxu0 0.0
    %1530 = vmatpush1.xpose.msra.mxu0 0.0
    %1531 = vmatprep.subr.mxu0 0.0
    %1532 = vmatpush1.xpose.msra.mxu0 0.0
    %1533 = vmatprep.mubr.f32.mxu0 0.0
    %1534 = vmatmul.mubr.f32.gmra.mrb[0].mxu0 %v1461
    %v1535 = vpop.f32.mrb[0].mxu0
    %v1536 = vadd.f32 0.0, %v1535
    %v1537 = vpop.f32.mrb[0].mxu0
    %1538 = vmatprep.mubr.f32.mxu0 0.0
    %1539 = vmatmul.mubr.f32.gmra.mrb[0].mxu0 %v1463
    %v1540 = vpop.f32.mrb[0].mxu0
    %v1541 = vadd.f32 0.0, %v1540
    %v1542 = vpop.f32.mrb[0].mxu0
    %1543 = vdwg.mxu0
    %v1544 = vmul.f32 %v1536, 0.25
    %v1545 = vmul.f32 %v1541, 0.25
    %v1546 = vadd.f32 %v1544, %v155
    %v1547 = vadd.f32 %v1545, %v156
    %v1548 = vsel %vm382, %v1546, -inf
    %1549 = vmax.xlane.f32.xlu0 %v1548
    %v1550 = vpop.xlane.xlu0 %1549
    %v1551 = vsel %vm386, %v1547, -inf
    %1552 = vmax.xlane.f32.xlu0 %v1551
    %v1553 = vpop.xlane.xlu0 %1552
    %v1554 = vsub.f32 %v1546, %v1550
    %v1555 = vsub.f32 %v1547, %v1553
    %v1556 = vmul.f32 %v1554, 1.442695
    %v1557 = vpow.pop %v1556
    %v1558 = vmul.f32 %v1555, 1.442695
    %v1559 = vpow.pop %v1558
    %v1560 = vsel %vm382, %v1557, 0.0
    %1561 = vadd.xlane.f32.xlu0 %v1560
    %v1562 = vpop.xlane.xlu0 %1561
    %v1563 = vsel %vm386, %v1559, 0.0
    %1564 = vadd.xlane.f32.xlu0 %v1563
    %v1565 = vpop.xlane.xlu0 %1564
    %v1566 = vrcp.pop %v1562
    %v1567 = vrcp.pop %v1565
    %v1568 = vmul.f32 %v1557, %v1566
    %v1569 = vmul.f32 %v1559, %v1567
    %1570 = vrot.lane.b32.xlu0 %v1239, 48
    %v1571 = vpop.permute.xlu0 %1570
    %1572 = vrot.lane.b32.xlu0 %v1244, 48
    %v1573 = vpop.permute.xlu0 %1572
    %v1576 = vsel %vm382, %v1568, 0
    %v1579 = vsel %vm382, %v1569, 0
    %v1581 = vsel %vm417, %v1573, 0
    %1583 = vmatprep.subr.mxu0 0.0
    %1584 = vmatpush1.msra.mxu0 %v1571
    %1585 = vmatprep.subr.mxu0 0.0
    %1586 = vmatpush1.msra.mxu0 %v1581
    %1587 = vmatprep.subr.mxu0 0.0
    %1588 = vmatpush1.msra.mxu0 0.0
    %1589 = vmatprep.subr.mxu0 0.0
    %1590 = vmatpush1.msra.mxu0 0.0
    %1591 = vmatprep.subr.mxu0 0.0
    %1592 = vmatpush1.msra.mxu0 0.0
    %1593 = vmatprep.subr.mxu0 0.0
    %1594 = vmatpush1.msra.mxu0 0.0
    %1595 = vmatprep.subr.mxu0 0.0
    %1596 = vmatpush1.msra.mxu0 0.0
    %1597 = vmatprep.subr.mxu0 0.0
    %1598 = vmatpush1.msra.mxu0 0.0
    %1599 = vmatprep.subr.mxu0 0.0
    %1600 = vmatpush1.msra.mxu0 0.0
    %1601 = vmatprep.subr.mxu0 0.0
    %1602 = vmatpush1.msra.mxu0 0.0
    %1603 = vmatprep.subr.mxu0 0.0
    %1604 = vmatpush1.msra.mxu0 0.0
    %1605 = vmatprep.subr.mxu0 0.0
    %1606 = vmatpush1.msra.mxu0 0.0
    %1607 = vmatprep.subr.mxu0 0.0
    %1608 = vmatpush1.msra.mxu0 0.0
    %1609 = vmatprep.subr.mxu0 0.0
    %1610 = vmatpush1.msra.mxu0 0.0
    %1611 = vmatprep.subr.mxu0 0.0
    %1612 = vmatpush1.msra.mxu0 0.0
    %1613 = vmatprep.subr.mxu0 0.0
    %1614 = vmatpush1.msra.mxu0 0.0
    %1615 = vmatprep.subr.mxu0 0.0
    %1616 = vmatpush1.msra.mxu0 0.0
    %1617 = vmatprep.subr.mxu0 0.0
    %1618 = vmatpush1.msra.mxu0 0.0
    %1619 = vmatprep.subr.mxu0 0.0
    %1620 = vmatpush1.msra.mxu0 0.0
    %1621 = vmatprep.subr.mxu0 0.0
    %1622 = vmatpush1.msra.mxu0 0.0
    %1623 = vmatprep.subr.mxu0 0.0
    %1624 = vmatpush1.msra.mxu0 0.0
    %1625 = vmatprep.subr.mxu0 0.0
    %1626 = vmatpush1.msra.mxu0 0.0
    %1627 = vmatprep.subr.mxu0 0.0
    %1628 = vmatpush1.msra.mxu0 0.0
    %1629 = vmatprep.subr.mxu0 0.0
    %1630 = vmatpush1.msra.mxu0 0.0
    %1631 = vmatprep.subr.mxu0 0.0
    %1632 = vmatpush1.msra.mxu0 0.0
    %1633 = vmatprep.subr.mxu0 0.0
    %1634 = vmatpush1.msra.mxu0 0.0
    %1635 = vmatprep.subr.mxu0 0.0
    %1636 = vmatpush1.msra.mxu0 0.0
    %1637 = vmatprep.subr.mxu0 0.0
    %1638 = vmatpush1.msra.mxu0 0.0
    %1639 = vmatprep.subr.mxu0 0.0
    %1640 = vmatpush1.msra.mxu0 0.0
    %1641 = vmatprep.subr.mxu0 0.0
    %1642 = vmatpush1.msra.mxu0 0.0
    %1643 = vmatprep.subr.mxu0 0.0
    %1644 = vmatpush1.msra.mxu0 0.0
    %1645 = vmatprep.subr.mxu0 0.0
    %1646 = vmatpush1.msra.mxu0 0.0
    %1647 = vmatprep.mubr.f32.mxu0 0.0
    %1648 = vmatmul.mubr.f32.gmra.mrb[0].mxu0 %v1576
    %v1649 = vpop.f32.mrb[0].mxu0
    %v1650 = vadd.f32 0.0, %v1649
    %v1651 = vpop.f32.mrb[0].mxu0
    %1652 = vmatprep.mubr.f32.mxu0 0.0
    %1653 = vmatmul.mubr.f32.gmra.mrb[0].mxu0 %v1579
    %v1654 = vpop.f32.mrb[0].mxu0
    %v1655 = vadd.f32 0.0, %v1654
    %v1656 = vpop.f32.mrb[0].mxu0
    %1657 = vdwg.mxu0
    %s1658 = scalar_lea.vmem %s6, 48
    %v1659 = vld [vmem:[%s1658] sm:$0xff]
    %v1660 = vld [vmem:[%s1658 + $0x8] sm:$0xff]
    %v1662 = vsel %vm294, %v1650, 0
    %v1665 = vsel %vm294, %v1655, 0
    %1667 = vmatprep.subr.mxu0 0.0
    %1668 = vmatpush1.msra.mxu0 %v1659
    %1669 = vmatprep.subr.mxu0 0.0
    %1670 = vmatpush1.msra.mxu0 %v1660
    %1671 = vmatprep.subr.mxu0 0.0
    %1672 = vmatpush1.msra.mxu0 0.0
    %1673 = vmatprep.subr.mxu0 0.0
    %1674 = vmatpush1.msra.mxu0 0.0
    %1675 = vmatprep.subr.mxu0 0.0
    %1676 = vmatpush1.msra.mxu0 0.0
    %1677 = vmatprep.subr.mxu0 0.0
    %1678 = vmatpush1.msra.mxu0 0.0
    %1679 = vmatprep.subr.mxu0 0.0
    %1680 = vmatpush1.msra.mxu0 0.0
    %1681 = vmatprep.subr.mxu0 0.0
    %1682 = vmatpush1.msra.mxu0 0.0
    %1683 = vmatprep.subr.mxu0 0.0
    %1684 = vmatpush1.msra.mxu0 0.0
    %1685 = vmatprep.subr.mxu0 0.0
    %1686 = vmatpush1.msra.mxu0 0.0
    %1687 = vmatprep.subr.mxu0 0.0
    %1688 = vmatpush1.msra.mxu0 0.0
    %1689 = vmatprep.subr.mxu0 0.0
    %1690 = vmatpush1.msra.mxu0 0.0
    %1691 = vmatprep.subr.mxu0 0.0
    %1692 = vmatpush1.msra.mxu0 0.0
    %1693 = vmatprep.subr.mxu0 0.0
    %1694 = vmatpush1.msra.mxu0 0.0
    %1695 = vmatprep.subr.mxu0 0.0
    %1696 = vmatpush1.msra.mxu0 0.0
    %1697 = vmatprep.subr.mxu0 0.0
    %1698 = vmatpush1.msra.mxu0 0.0
    %1699 = vmatprep.subr.mxu0 0.0
    %1700 = vmatpush1.msra.mxu0 0.0
    %1701 = vmatprep.subr.mxu0 0.0
    %1702 = vmatpush1.msra.mxu0 0.0
    %1703 = vmatprep.subr.mxu0 0.0
    %1704 = vmatpush1.msra.mxu0 0.0
    %1705 = vmatprep.subr.mxu0 0.0
    %1706 = vmatpush1.msra.mxu0 0.0
    %1707 = vmatprep.subr.mxu0 0.0
    %1708 = vmatpush1.msra.mxu0 0.0
    %1709 = vmatprep.subr.mxu0 0.0
    %1710 = vmatpush1.msra.mxu0 0.0
    %1711 = vmatprep.subr.mxu0 0.0
    %1712 = vmatpush1.msra.mxu0 0.0
    %1713 = vmatprep.subr.mxu0 0.0
    %1714 = vmatpush1.msra.mxu0 0.0
    %1715 = vmatprep.subr.mxu0 0.0
    %1716 = vmatpush1.msra.mxu0 0.0
    %1717 = vmatprep.subr.mxu0 0.0
    %1718 = vmatpush1.msra.mxu0 0.0
    %1719 = vmatprep.subr.mxu0 0.0
    %1720 = vmatpush1.msra.mxu0 0.0
    %1721 = vmatprep.subr.mxu0 0.0
    %1722 = vmatpush1.msra.mxu0 0.0
    %1723 = vmatprep.subr.mxu0 0.0
    %1724 = vmatpush1.msra.mxu0 0.0
    %1725 = vmatprep.subr.mxu0 0.0
    %1726 = vmatpush1.msra.mxu0 0.0
    %1727 = vmatprep.subr.mxu0 0.0
    %1728 = vmatpush1.msra.mxu0 0.0
    %1729 = vmatprep.subr.mxu0 0.0
    %1730 = vmatpush1.msra.mxu0 0.0
    %1731 = vmatprep.mubr.f32.mxu0 0.0
    %1732 = vmatmul.mubr.f32.gmra.mrb[0].mxu0 %v1662
    %v1733 = vpop.f32.mrb[0].mxu0
    %v1734 = vadd.f32 0.0, %v1733
    %v1735 = vpop.f32.mrb[0].mxu0
    %1736 = vmatprep.mubr.f32.mxu0 0.0
    %1737 = vmatmul.mubr.f32.gmra.mrb[0].mxu0 %v1665
    %v1738 = vpop.f32.mrb[0].mxu0
    %v1739 = vadd.f32 0.0, %v1738
    %v1740 = vpop.f32.mrb[0].mxu0
    %1741 = vdwg.mxu0
    %v1743 = vsel %vm294, %v1442, 0
    %v1746 = vsel %vm294, %v1447, 0
    %1748 = vmatprep.subr.mxu0 0.0
    %1749 = vmatpush1.msra.mxu0 %v1451
    %1750 = vmatprep.subr.mxu0 0.0
    %1751 = vmatpush1.msra.mxu0 %v1452
    %1752 = vmatprep.subr.mxu0 0.0
    %1753 = vmatpush1.msra.mxu0 0.0
    %1754 = vmatprep.subr.mxu0 0.0
    %1755 = vmatpush1.msra.mxu0 0.0
    %1756 = vmatprep.subr.mxu0 0.0
    %1757 = vmatpush1.msra.mxu0 0.0
    %1758 = vmatprep.subr.mxu0 0.0
    %1759 = vmatpush1.msra.mxu0 0.0
    %1760 = vmatprep.subr.mxu0 0.0
    %1761 = vmatpush1.msra.mxu0 0.0
    %1762 = vmatprep.subr.mxu0 0.0
    %1763 = vmatpush1.msra.mxu0 0.0
    %1764 = vmatprep.subr.mxu0 0.0
    %1765 = vmatpush1.msra.mxu0 0.0
    %1766 = vmatprep.subr.mxu0 0.0
    %1767 = vmatpush1.msra.mxu0 0.0
    %1768 = vmatprep.subr.mxu0 0.0
    %1769 = vmatpush1.msra.mxu0 0.0
    %1770 = vmatprep.subr.mxu0 0.0
    %1771 = vmatpush1.msra.mxu0 0.0
    %1772 = vmatprep.subr.mxu0 0.0
    %1773 = vmatpush1.msra.mxu0 0.0
    %1774 = vmatprep.subr.mxu0 0.0
    %1775 = vmatpush1.msra.mxu0 0.0
    %1776 = vmatprep.subr.mxu0 0.0
    %1777 = vmatpush1.msra.mxu0 0.0
    %1778 = vmatprep.subr.mxu0 0.0
    %1779 = vmatpush1.msra.mxu0 0.0
    %1780 = vmatprep.subr.mxu0 0.0
    %1781 = vmatpush1.msra.mxu0 0.0
    %1782 = vmatprep.subr.mxu0 0.0
    %1783 = vmatpush1.msra.mxu0 0.0
    %1784 = vmatprep.subr.mxu0 0.0
    %1785 = vmatpush1.msra.mxu0 0.0
    %1786 = vmatprep.subr.mxu0 0.0
    %1787 = vmatpush1.msra.mxu0 0.0
    %1788 = vmatprep.subr.mxu0 0.0
    %1789 = vmatpush1.msra.mxu0 0.0
    %1790 = vmatprep.subr.mxu0 0.0
    %1791 = vmatpush1.msra.mxu0 0.0
    %1792 = vmatprep.subr.mxu0 0.0
    %1793 = vmatpush1.msra.mxu0 0.0
    %1794 = vmatprep.subr.mxu0 0.0
    %1795 = vmatpush1.msra.mxu0 0.0
    %1796 = vmatprep.subr.mxu0 0.0
    %1797 = vmatpush1.msra.mxu0 0.0
    %1798 = vmatprep.subr.mxu0 0.0
    %1799 = vmatpush1.msra.mxu0 0.0
    %1800 = vmatprep.subr.mxu0 0.0
    %1801 = vmatpush1.msra.mxu0 0.0
    %1802 = vmatprep.subr.mxu0 0.0
    %1803 = vmatpush1.msra.mxu0 0.0
    %1804 = vmatprep.subr.mxu0 0.0
    %1805 = vmatpush1.msra.mxu0 0.0
    %1806 = vmatprep.subr.mxu0 0.0
    %1807 = vmatpush1.msra.mxu0 0.0
    %1808 = vmatprep.subr.mxu0 0.0
    %1809 = vmatpush1.msra.mxu0 0.0
    %1810 = vmatprep.subr.mxu0 0.0
    %1811 = vmatpush1.msra.mxu0 0.0
    %1812 = vmatprep.mubr.f32.mxu0 0.0
    %1813 = vmatmul.mubr.f32.gmra.mrb[0].mxu0 %v1743
    %v1814 = vpop.f32.mrb[0].mxu0
    %v1815 = vadd.f32 %v1734, %v1814
    %v1816 = vpop.f32.mrb[0].mxu0
    %1817 = vmatprep.mubr.f32.mxu0 0.0
    %1818 = vmatmul.mubr.f32.gmra.mrb[0].mxu0 %v1746
    %v1819 = vpop.f32.mrb[0].mxu0
    %v1820 = vadd.f32 %v1739, %v1819
    %v1821 = vpop.f32.mrb[0].mxu0
    %1822 = vdwg.mxu0
    %v1823 = vadd.f32 %v1115, %v1815
    %v1824 = vadd.f32 %v1116, %v1820
    %v1825 = vlaneseq
    %v1826 = vshrl.u32 %v1825, 7
    %v1827 = vsub.s32 3, %v1826
    %v1828 = vrot.slane %v1118, %v1827
    %v1829 = vadd.f32 %v1823, %v1828
    %v1830 = vadd.f32 %v1824, %v1828
    %v1831 = vsel %vm158, %v1829, 0.0
    %1832 = vadd.xlane.f32.xlu0 %v1831
    %v1833 = vpop.xlane.xlu0 %1832
    %v1834 = vsel %vm162, %v1830, 0.0
    %1835 = vadd.xlane.f32.xlu0 %v1834
    %v1836 = vpop.xlane.xlu0 %1835
    %v1837 = vmul.f32 %v1833, %v166
    %v1838 = vmul.f32 %v1836, %v166
    %v1839 = vsub.f32 %v1829, %v1837
    %v1840 = vsub.f32 %v1830, %v1838
    %v1841 = vmul.f32 %v1839, %v1839
    %v1842 = vmul.f32 %v1840, %v1840
    %v1843 = vsel %vm158, %v1841, 0.0
    %1844 = vadd.xlane.f32.xlu0 %v1843
    %v1845 = vpop.xlane.xlu0 %1844
    %v1846 = vsel %vm162, %v1842, 0.0
    %1847 = vadd.xlane.f32.xlu0 %v1846
    %v1848 = vpop.xlane.xlu0 %1847
    %v1849 = vmul.f32 %v1845, %v166
    %v1850 = vmul.f32 %v1848, %v166
    %v1851 = vadd.f32 %v1849, 1e-12
    %v1852 = vadd.f32 %v1850, 1e-12
    %v1853 = vrsqrt.pop %v1851
    %v1854 = vrsqrt.pop %v1852
    %v1855 = vmul.f32 %v1839, %v1853
    %v1856 = vmul.f32 %v1840, %v1854
    %v1857 = vlaneseq
    %v1858 = vshrl.u32 %v1857, 7
    %v1859 = vsub.s32 4, %v1858
    %v1860 = vrot.slane %v1118, %v1859
    %v1861 = vmul.f32 %v1855, %v1860
    %v1862 = vmul.f32 %v1856, %v1860
    %v1863 = vlaneseq
    %v1864 = vshrl.u32 %v1863, 7
    %v1865 = vsub.s32 5, %v1864
    %v1866 = vrot.slane %v1118, %v1865
    %v1867 = vadd.f32 %v1861, %v1866
    %v1868 = vadd.f32 %v1862, %v1866
    %s1869 = scalar_lea.vmem %s7, 32
    %v1870 = vld [vmem:[%s1869] sm:$0xff]
    %v1871 = vld [vmem:[%s1869 + $0x8] sm:$0xff]
    %v1872 = vld [vmem:[%s1869 + $0x10] sm:$0xff]
    %v1873 = vld [vmem:[%s1869 + $0x18] sm:$0xff]
    %v1874 = vlaneseq
    %v1875 = vshrl.u32 %v1874, 7
    %v1876 = vsub.s32 6, %v1875
    %v1877 = vrot.slane %v1118, %v1876
    %v1879 = vsel %vm158, %v1867, 0
    %v1882 = vsel %vm158, %v1868, 0
    %1884 = vmatprep.subr.mxu0 0.0
    %1885 = vmatpush1.msra.mxu0 %v1870
    %1886 = vmatprep.subr.mxu0 0.0
    %1887 = vmatpush1.msra.mxu0 %v1871
    %1888 = vmatprep.subr.mxu0 0.0
    %1889 = vmatpush1.msra.mxu0 %v1872
    %1890 = vmatprep.subr.mxu0 0.0
    %1891 = vmatpush1.msra.mxu0 %v1873
    %1892 = vmatprep.subr.mxu0 0.0
    %1893 = vmatpush1.msra.mxu0 0.0
    %1894 = vmatprep.subr.mxu0 0.0
    %1895 = vmatpush1.msra.mxu0 0.0
    %1896 = vmatprep.subr.mxu0 0.0
    %1897 = vmatpush1.msra.mxu0 0.0
    %1898 = vmatprep.subr.mxu0 0.0
    %1899 = vmatpush1.msra.mxu0 0.0
    %1900 = vmatprep.subr.mxu0 0.0
    %1901 = vmatpush1.msra.mxu0 0.0
    %1902 = vmatprep.subr.mxu0 0.0
    %1903 = vmatpush1.msra.mxu0 0.0
    %1904 = vmatprep.subr.mxu0 0.0
    %1905 = vmatpush1.msra.mxu0 0.0
    %1906 = vmatprep.subr.mxu0 0.0
    %1907 = vmatpush1.msra.mxu0 0.0
    %1908 = vmatprep.subr.mxu0 0.0
    %1909 = vmatpush1.msra.mxu0 0.0
    %1910 = vmatprep.subr.mxu0 0.0
    %1911 = vmatpush1.msra.mxu0 0.0
    %1912 = vmatprep.subr.mxu0 0.0
    %1913 = vmatpush1.msra.mxu0 0.0
    %1914 = vmatprep.subr.mxu0 0.0
    %1915 = vmatpush1.msra.mxu0 0.0
    %1916 = vmatprep.subr.mxu0 0.0
    %1917 = vmatpush1.msra.mxu0 0.0
    %1918 = vmatprep.subr.mxu0 0.0
    %1919 = vmatpush1.msra.mxu0 0.0
    %1920 = vmatprep.subr.mxu0 0.0
    %1921 = vmatpush1.msra.mxu0 0.0
    %1922 = vmatprep.subr.mxu0 0.0
    %1923 = vmatpush1.msra.mxu0 0.0
    %1924 = vmatprep.subr.mxu0 0.0
    %1925 = vmatpush1.msra.mxu0 0.0
    %1926 = vmatprep.subr.mxu0 0.0
    %1927 = vmatpush1.msra.mxu0 0.0
    %1928 = vmatprep.subr.mxu0 0.0
    %1929 = vmatpush1.msra.mxu0 0.0
    %1930 = vmatprep.subr.mxu0 0.0
    %1931 = vmatpush1.msra.mxu0 0.0
    %1932 = vmatprep.subr.mxu0 0.0
    %1933 = vmatpush1.msra.mxu0 0.0
    %1934 = vmatprep.subr.mxu0 0.0
    %1935 = vmatpush1.msra.mxu0 0.0
    %1936 = vmatprep.subr.mxu0 0.0
    %1937 = vmatpush1.msra.mxu0 0.0
    %1938 = vmatprep.subr.mxu0 0.0
    %1939 = vmatpush1.msra.mxu0 0.0
    %1940 = vmatprep.subr.mxu0 0.0
    %1941 = vmatpush1.msra.mxu0 0.0
    %1942 = vmatprep.subr.mxu0 0.0
    %1943 = vmatpush1.msra.mxu0 0.0
    %1944 = vmatprep.subr.mxu0 0.0
    %1945 = vmatpush1.msra.mxu0 0.0
    %1946 = vmatprep.subr.mxu0 0.0
    %1947 = vmatpush1.msra.mxu0 0.0
    %1948 = vmatprep.mubr.f32.mxu0 0.0
    %1949 = vmatmul.mubr.f32.gmra.mrb[0].mxu0 %v1879
    %v1950 = vpop.f32.mrb[0].mxu0
    %v1951 = vadd.f32 %v1877, %v1950
    %v1952 = vpop.f32.mrb[0].mxu0
    %1953 = vmatprep.mubr.f32.mxu0 0.0
    %1954 = vmatmul.mubr.f32.gmra.mrb[0].mxu0 %v1882
    %v1955 = vpop.f32.mrb[0].mxu0
    %v1956 = vadd.f32 %v1877, %v1955
    %v1957 = vpop.f32.mrb[0].mxu0
    %1958 = vdwg.mxu0
    %v1959 = vmul.f32 %v1951, %v1951
    %v1960 = vmul.f32 %v1956, %v1956
    %v1961 = vmul.f32 %v1951, %v1959
    %v1962 = vmul.f32 %v1956, %v1960
    %v1963 = vmul.f32 %v1961, 0.044715
    %v1964 = vmul.f32 %v1962, 0.044715
    %v1965 = vadd.f32 %v1951, %v1963
    %v1966 = vadd.f32 %v1956, %v1964
    %v1967 = vmul.f32 %v1965, 0.7978846
    %v1968 = vmul.f32 %v1966, 0.7978846
    %v1969 = vtanh.pop %v1967
    %v1970 = vtanh.pop %v1968
    %v1971 = vadd.f32 %v1969, 1.0
    %v1972 = vadd.f32 %v1970, 1.0
    %v1973 = vmul.f32 %v1971, 0.5
    %v1974 = vmul.f32 %v1972, 0.5
    %v1975 = vmul.f32 %v1951, %v1973
    %v1976 = vmul.f32 %v1956, %v1974
    %s1977 = scalar_lea.vmem %s8, 64
    %v1978 = vld [vmem:[%s1977] sm:$0xff]
    %v1979 = vld [vmem:[%s1977 + $0x8] sm:$0xff]
    %v1980 = vld [vmem:[%s1977 + $0x10] sm:$0xff]
    %v1981 = vld [vmem:[%s1977 + $0x18] sm:$0xff]
    %v1982 = vld [vmem:[%s1977 + $0x20] sm:$0xff]
    %v1983 = vld [vmem:[%s1977 + $0x28] sm:$0xff]
    %v1984 = vld [vmem:[%s1977 + $0x30] sm:$0xff]
    %v1985 = vld [vmem:[%s1977 + $0x38] sm:$0xff]
    %v1987 = vsel %vm73, %v1975, 0
    %v1990 = vsel %vm73, %v1976, 0
    %1992 = vmatprep.subr.mxu0 0.0
    %1993 = vmatpush1.msra.mxu0 %v1978
    %1994 = vmatprep.subr.mxu0 0.0
    %1995 = vmatpush1.msra.mxu0 %v1979
    %1996 = vmatprep.subr.mxu0 0.0
    %1997 = vmatpush1.msra.mxu0 %v1980
    %1998 = vmatprep.subr.mxu0 0.0
    %1999 = vmatpush1.msra.mxu0 %v1981
    %2000 = vmatprep.subr.mxu0 0.0
    %2001 = vmatpush1.msra.mxu0 %v1982
    %2002 = vmatprep.subr.mxu0 0.0
    %2003 = vmatpush1.msra.mxu0 %v1983
    %2004 = vmatprep.subr.mxu0 0.0
    %2005 = vmatpush1.msra.mxu0 %v1984
    %2006 = vmatprep.subr.mxu0 0.0
    %2007 = vmatpush1.msra.mxu0 %v1985
    %2008 = vmatprep.subr.mxu0 0.0
    %2009 = vmatpush1.msra.mxu0 0.0
    %2010 = vmatprep.subr.mxu0 0.0
    %2011 = vmatpush1.msra.mxu0 0.0
    %2012 = vmatprep.subr.mxu0 0.0
    %2013 = vmatpush1.msra.mxu0 0.0
    %2014 = vmatprep.subr.mxu0 0.0
    %2015 = vmatpush1.msra.mxu0 0.0
    %2016 = vmatprep.subr.mxu0 0.0
    %2017 = vmatpush1.msra.mxu0 0.0
    %2018 = vmatprep.subr.mxu0 0.0
    %2019 = vmatpush1.msra.mxu0 0.0
    %2020 = vmatprep.subr.mxu0 0.0
    %2021 = vmatpush1.msra.mxu0 0.0
    %2022 = vmatprep.subr.mxu0 0.0
    %2023 = vmatpush1.msra.mxu0 0.0
    %2024 = vmatprep.subr.mxu0 0.0
    %2025 = vmatpush1.msra.mxu0 0.0
    %2026 = vmatprep.subr.mxu0 0.0
    %2027 = vmatpush1.msra.mxu0 0.0
    %2028 = vmatprep.subr.mxu0 0.0
    %2029 = vmatpush1.msra.mxu0 0.0
    %2030 = vmatprep.subr.mxu0 0.0
    %2031 = vmatpush1.msra.mxu0 0.0
    %2032 = vmatprep.subr.mxu0 0.0
    %2033 = vmatpush1.msra.mxu0 0.0
    %2034 = vmatprep.subr.mxu0 0.0
    %2035 = vmatpush1.msra.mxu0 0.0
    %2036 = vmatprep.subr.mxu0 0.0
    %2037 = vmatpush1.msra.mxu0 0.0
    %2038 = vmatprep.subr.mxu0 0.0
    %2039 = vmatpush1.msra.mxu0 0.0
    %2040 = vmatprep.subr.mxu0 0.0
    %2041 = vmatpush1.msra.mxu0 0.0
    %2042 = vmatprep.subr.mxu0 0.0
    %2043 = vmatpush1.msra.mxu0 0.0
    %2044 = vmatprep.subr.mxu0 0.0
    %2045 = vmatpush1.msra.mxu0 0.0
    %2046 = vmatprep.subr.mxu0 0.0
    %2047 = vmatpush1.msra.mxu0 0.0
    %2048 = vmatprep.subr.mxu0 0.0
    %2049 = vmatpush1.msra.mxu0 0.0
    %2050 = vmatprep.subr.mxu0 0.0
    %2051 = vmatpush1.msra.mxu0 0.0
    %2052 = vmatprep.subr.mxu0 0.0
    %2053 = vmatpush1.msra.mxu0 0.0
    %2054 = vmatprep.subr.mxu0 0.0
    %2055 = vmatpush1.msra.mxu0 0.0
    %2056 = vmatprep.mubr.f32.mxu0 0.0
    %2057 = vmatmul.mubr.f32.gmra.mrb[0].mxu0 %v1987
    %v2058 = vpop.f32.mrb[0].mxu0
    %v2059 = vadd.f32 0.0, %v2058
    %v2060 = vpop.f32.mrb[0].mxu0
    %2061 = vmatprep.mubr.f32.mxu0 0.0
    %2062 = vmatmul.mubr.f32.gmra.mrb[0].mxu0 %v1990
    %v2063 = vpop.f32.mrb[0].mxu0
    %v2064 = vpop.f32.mrb[0].mxu0
    %2065 = vdwg.mxu0
    %v2066 = vadd.f32 %v1829, %v2059
    %v2067 = vlaneseq
    %v2068 = vshrl.u32 %v2067, 7
    %v2069 = vsub.s32 7, %v2068
    %v2070 = vrot.slane %v1118, %v2069
    %v2071 = vadd.f32 %v2066, %v2070
    %v2072 = vld [vmem:[%s11] sm:$0xff]
    %v2074 = vrot.slane %v2071, 4
    %vm2076 = vcmask 1040384
    %v2077 = vsel %vm2076, %v2071, %v2074
    %v2078 = vsel %vm162, %v2077, 0.0
    %2079 = vadd.xlane.f32.xlu0 %v2078
    %v2080 = vpop.xlane.xlu0 %2079
    %v2081 = vmul.f32 %v2080, %v166
    %v2082 = vsub.f32 %v2077, %v2081
    %v2083 = vmul.f32 %v2082, %v2082
    %v2084 = vsel %vm162, %v2083, 0.0
    %2085 = vadd.xlane.f32.xlu0 %v2084
    %v2086 = vpop.xlane.xlu0 %2085
    %v2087 = vmul.f32 %v2086, %v166
    %v2088 = vadd.f32 %v2087, 1e-12
    %v2089 = vrsqrt.pop %v2088
    %v2090 = vmul.f32 %v2082, %v2089
    %v2091 = vlaneseq
    %v2092 = vshrl.u32 %v2091, 7
    %v2093 = vsub.s32 0, %v2092
    %v2094 = vrot.slane %v2072, %v2093
    %v2095 = vmul.f32 %v2090, %v2094
    %v2096 = vlaneseq
    %v2097 = vshrl.u32 %v2096, 7
    %v2098 = vsub.s32 1, %v2097
    %v2099 = vrot.slane %v2072, %v2098
    %v2100 = vadd.f32 %v2095, %v2099
    %s2101 = sld [smem:[#allocation2]]
    %v2102 = vstv %s2101
    %v2103 = vrcp.pop %v2102
    %s2104 = vtos %v2103
    %v2105 = vstv %s2104
    %v2106 = vmul.f32 %v2072, %v2105
    %vm2107 = vcmask 10242
    %v2108 = vsel %vm2107, %v2106, -inf
    %2109 = vmax.xlane.f32.xlu0 %v2108
    %v2110 = vpop.xlane.xlu0 %2109
    %v2111 = vsub.f32 %v2106, %v2110
    %v2112 = vmul.f32 %v2111, 1.442695
    %v2113 = vpow.pop %v2112
    %v2114 = vsel %vm2107, %v2113, 0.0
    %2115 = vadd.xlane.f32.xlu0 %v2114
    %v2116 = vpop.xlane.xlu0 %2115
    %v2117 = vrcp.pop %v2116
    %v2118 = vmul.f32 %v2113, %v2117
    %2119 = vst [vmem:[#allocation3] sm:$0xff] 0.0
    %v2120 = vld [vmem:[%s10] sm:$0xff]
    %v2121 = vld [vmem:[%s10 + $0x8] sm:$0xff]
    %v2122 = vld [vmem:[%s10 + $0x10] sm:$0xff]
    %v2123 = vld [vmem:[%s10 + $0x18] sm:$0xff]
    %v2124 = vlaneseq
    %v2125 = vshrl.u32 %v2124, 7
    %v2126 = vsub.s32 3, %v2125
    %v2127 = vrot.slane %v2072, %v2126
    %v2129 = vsel %vm158, %v2100, 0
    %2131 = vmatprep.subr.mxu0 0.0
    %2132 = vmatpush1.msra.mxu0 %v2120
    %2133 = vmatprep.subr.mxu0 0.0
    %2134 = vmatpush1.msra.mxu0 %v2121
    %2135 = vmatprep.subr.mxu0 0.0
    %2136 = vmatpush1.msra.mxu0 %v2122
    %2137 = vmatprep.subr.mxu0 0.0
    %2138 = vmatpush1.msra.mxu0 %v2123
    %2139 = vmatprep.subr.mxu0 0.0
    %2140 = vmatpush1.msra.mxu0 0.0
    %2141 = vmatprep.subr.mxu0 0.0
    %2142 = vmatpush1.msra.mxu0 0.0
    %2143 = vmatprep.subr.mxu0 0.0
    %2144 = vmatpush1.msra.mxu0 0.0
    %2145 = vmatprep.subr.mxu0 0.0
    %2146 = vmatpush1.msra.mxu0 0.0
    %2147 = vmatprep.subr.mxu0 0.0
    %2148 = vmatpush1.msra.mxu0 0.0
    %2149 = vmatprep.subr.mxu0 0.0
    %2150 = vmatpush1.msra.mxu0 0.0
    %2151 = vmatprep.subr.mxu0 0.0
    %2152 = vmatpush1.msra.mxu0 0.0
    %2153 = vmatprep.subr.mxu0 0.0
    %2154 = vmatpush1.msra.mxu0 0.0
    %2155 = vmatprep.subr.mxu0 0.0
    %2156 = vmatpush1.msra.mxu0 0.0
    %2157 = vmatprep.subr.mxu0 0.0
    %2158 = vmatpush1.msra.mxu0 0.0
    %2159 = vmatprep.subr.mxu0 0.0
    %2160 = vmatpush1.msra.mxu0 0.0
    %2161 = vmatprep.subr.mxu0 0.0
    %2162 = vmatpush1.msra.mxu0 0.0
    %2163 = vmatprep.subr.mxu0 0.0
    %2164 = vmatpush1.msra.mxu0 0.0
    %2165 = vmatprep.subr.mxu0 0.0
    %2166 = vmatpush1.msra.mxu0 0.0
    %2167 = vmatprep.subr.mxu0 0.0
    %2168 = vmatpush1.msra.mxu0 0.0
    %2169 = vmatprep.subr.mxu0 0.0
    %2170 = vmatpush1.msra.mxu0 0.0
    %2171 = vmatprep.subr.mxu0 0.0
    %2172 = vmatpush1.msra.mxu0 0.0
    %2173 = vmatprep.subr.mxu0 0.0
    %2174 = vmatpush1.msra.mxu0 0.0
    %2175 = vmatprep.subr.mxu0 0.0
    %2176 = vmatpush1.msra.mxu0 0.0
    %2177 = vmatprep.subr.mxu0 0.0
    %2178 = vmatpush1.msra.mxu0 0.0
    %2179 = vmatprep.subr.mxu0 0.0
    %2180 = vmatpush1.msra.mxu0 0.0
    %2181 = vmatprep.subr.mxu0 0.0
    %2182 = vmatpush1.msra.mxu0 0.0
    %2183 = vmatprep.subr.mxu0 0.0
    %2184 = vmatpush1.msra.mxu0 0.0
    %2185 = vmatprep.subr.mxu0 0.0
    %2186 = vmatpush1.msra.mxu0 0.0
    %2187 = vmatprep.subr.mxu0 0.0
    %2188 = vmatpush1.msra.mxu0 0.0
    %2189 = vmatprep.subr.mxu0 0.0
    %2190 = vmatpush1.msra.mxu0 0.0
    %2191 = vmatprep.subr.mxu0 0.0
    %2192 = vmatpush1.msra.mxu0 0.0
    %2193 = vmatprep.subr.mxu0 0.0
    %2194 = vmatpush1.msra.mxu0 0.0
    %2195 = vmatprep.mubr.f32.mxu0 0.0
    %2196 = vmatmul.mubr.f32.gmra.mrb[0].mxu0 %v2129
    %v2197 = vpop.f32.mrb[0].mxu0
    %v2198 = vadd.f32 %v2127, %v2197
    %v2199 = vpop.f32.mrb[0].mxu0
    %2200 = vdwg.mxu0
    %v2201 = vmul.f32 %v2198, %v2105
    %vm2202 = vcmask 58368
    %v2203 = vsel %vm2202, %v2201, -inf
    %2204 = vmax.xlane.f32.xlu0 %v2203
    %v2205 = vpop.xlane.xlu0 %2204
    %v2206 = vsub.f32 %v2201, %v2205
    %v2207 = vmul.f32 %v2206, 1.442695
    %v2208 = vpow.pop %v2207
    %v2209 = vsel %vm2202, %v2208, 0.0
    %2210 = vadd.xlane.f32.xlu0 %v2209
    %v2211 = vpop.xlane.xlu0 %2210
    %v2212 = vrcp.pop %v2211
    %v2213 = vmul.f32 %v2208, %v2212
    %v2214 = vsel %vm2202, %v2213, -inf
    %2215 = vmax.xlane.f32.xlu0 %v2214
    %v2216 = vpop.xlane.xlu0 %2215
    %v2218 = vrot.slane %v2118, 2
    %s2219 = vtos %v2218
    %v2220 = vstv %s2219
    %v2222 = vmul.f32 %v2220, %v2198
    %v2223 = vadd.f32 %v2222, 0.0
    %2224 = vst.msk [vmem:[#allocation3] sm:$0x3] %vm2202, %v2198
    %vm2225 = vcmask 66624
    %2226 = vst.msk [vmem:[#allocation3] sm:$0x3] %vm2225, %v2216
    %s2227 = scalar_lea.vmem %s10, 32
    %v2228 = vld [vmem:[%s2227] sm:$0xff]
    %v2229 = vld [vmem:[%s2227 + $0x8] sm:$0xff]
    %v2230 = vld [vmem:[%s2227 + $0x10] sm:$0xff]
    %v2231 = vld [vmem:[%s2227 + $0x18] sm:$0xff]
    %v2232 = vlaneseq
    %v2233 = vshrl.u32 %v2232, 7
    %v2234 = vsub.s32 4, %v2233
    %v2235 = vrot.slane %v2072, %v2234
    %2236 = vmatprep.subr.mxu0 0.0
    %2237 = vmatpush1.msra.mxu0 %v2228
    %2238 = vmatprep.subr.mxu0 0.0
    %2239 = vmatpush1.msra.mxu0 %v2229
    %2240 = vmatprep.subr.mxu0 0.0
    %2241 = vmatpush1.msra.mxu0 %v2230
    %2242 = vmatprep.subr.mxu0 0.0
    %2243 = vmatpush1.msra.mxu0 %v2231
    %2244 = vmatprep.subr.mxu0 0.0
    %2245 = vmatpush1.msra.mxu0 0.0
    %2246 = vmatprep.subr.mxu0 0.0
    %2247 = vmatpush1.msra.mxu0 0.0
    %2248 = vmatprep.subr.mxu0 0.0
    %2249 = vmatpush1.msra.mxu0 0.0
    %2250 = vmatprep.subr.mxu0 0.0
    %2251 = vmatpush1.msra.mxu0 0.0
    %2252 = vmatprep.subr.mxu0 0.0
    %2253 = vmatpush1.msra.mxu0 0.0
    %2254 = vmatprep.subr.mxu0 0.0
    %2255 = vmatpush1.msra.mxu0 0.0
    %2256 = vmatprep.subr.mxu0 0.0
    %2257 = vmatpush1.msra.mxu0 0.0
    %2258 = vmatprep.subr.mxu0 0.0
    %2259 = vmatpush1.msra.mxu0 0.0
    %2260 = vmatprep.subr.mxu0 0.0
    %2261 = vmatpush1.msra.mxu0 0.0
    %2262 = vmatprep.subr.mxu0 0.0
    %2263 = vmatpush1.msra.mxu0 0.0
    %2264 = vmatprep.subr.mxu0 0.0
    %2265 = vmatpush1.msra.mxu0 0.0
    %2266 = vmatprep.subr.mxu0 0.0
    %2267 = vmatpush1.msra.mxu0 0.0
    %2268 = vmatprep.subr.mxu0 0.0
    %2269 = vmatpush1.msra.mxu0 0.0
    %2270 = vmatprep.subr.mxu0 0.0
    %2271 = vmatpush1.msra.mxu0 0.0
    %2272 = vmatprep.subr.mxu0 0.0
    %2273 = vmatpush1.msra.mxu0 0.0
    %2274 = vmatprep.subr.mxu0 0.0
    %2275 = vmatpush1.msra.mxu0 0.0
    %2276 = vmatprep.subr.mxu0 0.0
    %2277 = vmatpush1.msra.mxu0 0.0
    %2278 = vmatprep.subr.mxu0 0.0
    %2279 = vmatpush1.msra.mxu0 0.0
    %2280 = vmatprep.subr.mxu0 0.0
    %2281 = vmatpush1.msra.mxu0 0.0
    %2282 = vmatprep.subr.mxu0 0.0
    %2283 = vmatpush1.msra.mxu0 0.0
    %2284 = vmatprep.subr.mxu0 0.0
    %2285 = vmatpush1.msra.mxu0 0.0
    %2286 = vmatprep.subr.mxu0 0.0
    %2287 = vmatpush1.msra.mxu0 0.0
    %2288 = vmatprep.subr.mxu0 0.0
    %2289 = vmatpush1.msra.mxu0 0.0
    %2290 = vmatprep.subr.mxu0 0.0
    %2291 = vmatpush1.msra.mxu0 0.0
    %2292 = vmatprep.subr.mxu0 0.0
    %2293 = vmatpush1.msra.mxu0 0.0
    %2294 = vmatprep.subr.mxu0 0.0
    %2295 = vmatpush1.msra.mxu0 0.0
    %2296 = vmatprep.subr.mxu0 0.0
    %2297 = vmatpush1.msra.mxu0 0.0
    %2298 = vmatprep.subr.mxu0 0.0
    %2299 = vmatpush1.msra.mxu0 0.0
    %2300 = vmatprep.mubr.f32.mxu0 0.0
    %2301 = vmatmul.mubr.f32.gmra.mrb[0].mxu0 %v2129
    %v2302 = vpop.f32.mrb[0].mxu0
    %v2303 = vadd.f32 %v2235, %v2302
    %v2304 = vpop.f32.mrb[0].mxu0
    %2305 = vdwg.mxu0
    %v2306 = vmul.f32 %v2303, %v2105
    %v2307 = vsel %vm2202, %v2306, -inf
    %2308 = vmax.xlane.f32.xlu0 %v2307
    %v2309 = vpop.xlane.xlu0 %2308
    %v2310 = vsub.f32 %v2306, %v2309
    %v2311 = vmul.f32 %v2310, 1.442695
    %v2312 = vpow.pop %v2311
    %v2313 = vsel %vm2202, %v2312, 0.0
    %2314 = vadd.xlane.f32.xlu0 %v2313
    %v2315 = vpop.xlane.xlu0 %2314
    %v2316 = vrcp.pop %v2315
    %v2317 = vmul.f32 %v2312, %v2316
    %v2318 = vsel %vm2202, %v2317, -inf
    %2319 = vmax.xlane.f32.xlu0 %v2318
    %v2320 = vpop.xlane.xlu0 %2319
    %2321 = vrot.lane.b32.xlu0 %v2218, 127
    %v2322 = vpop.permute.xlu0 %2321
    %s2323 = vtos %v2322
    %v2324 = vstv %s2323
    %v2326 = vmul.f32 %v2324, %v2303
    %v2327 = vadd.f32 %v2223, %v2326
    %2328 = vst.msk [vmem:[#allocation3 + $0x2] sm:$0x3] %vm2202, %v2303
    %2329 = vst.msk [vmem:[#allocation3 + $0x2] sm:$0x3] %vm2225, %v2320
    %2330 = vst.msk [vmem:[#allocation3 + $0x2] sm:$0x4] %vm2107, %v2118
    %2331 = vst.msk [vmem:[#allocation3 + $0x5] sm:$0x3] %vm2202, %v2327
    // Predicated region
    $region50: #{_fused_forward.1} parent=1 // pred_check
      _
    $region51: #{_fused_forward.1} parent=1 // pred_check_branch
      %2333 = sbr.rel (0) target = $region53
    $region52: #{_fused_forward.1} parent=1 // pred_region
      %s2335 = ssub.s32 128, 128
      %2336 = vsyncadd [#allocation4], %s2335
      %s2338 = sshll.u32 [#allocation3], 4
      %s2339 = int_to_ptr.vmem [resolvable:$true] %s2338
      %2341 = dma.vmem_to_hbm [thread:$0]  %s2339, 128, %s12, [#allocation4]
    $region53: #{_fused_forward.1} parent=1 // pred_fallthru
      _
    // Predicated region
    $region54: #{_fused_forward.1} parent=1 // pred_check
      _
    $region55: #{_fused_forward.1} parent=1 // pred_check_branch
      %2343 = sbr.rel (0) target = $region57
    $region56: #{_fused_forward.1} parent=1 // pred_region
      %2344 = dma.done [#allocation4], 128
    $region57: #{_fused_forward.1} parent=1 // pred_fallthru
      _
    %2345 = vsyncpa [#allocation4], 1

</llo_original>
